<compile_context>
chip_gen: v5e
topology: v5e:2x2
jax: 0.10.0
libtpu: 0.0.40
codegen_flags: <defaults>
</compile_context>

<pallas_src>
import functools

import jax
import jax.numpy as jnp
from jax.experimental import pallas as pl
from jax.experimental.pallas import tpu as pltpu

BN_EPS = 1e-5


# ----------------------------- in-kernel helpers ------------------------------

def _pad_hw(x, value):
    """Pad a (H, W, C) value with a 1-element halo along H and W (in-kernel)."""
    H, W, C = x.shape
    col = jnp.full((H, 1, C), value, x.dtype)
    x = jnp.concatenate([col, x, col], axis=1)            # (H, W+2, C)
    row = jnp.full((1, W + 2, C), value, x.dtype)
    return jnp.concatenate([row, x, row], axis=0)         # (H+2, W+2, C)


def _subsample_hw(x, s, Ho, Wo):
    """x[::s, ::s] using only unit-stride slices + concat (robust on Mosaic)."""
    if s == 1:
        return x
    rows = jnp.concatenate([x[i * s:i * s + 1] for i in range(Ho)], axis=0)
    cols = jnp.concatenate([rows[:, j * s:j * s + 1, :] for j in range(Wo)],
                           axis=1)
    return cols                                           # (Ho, Wo, C)


def _fused_stage(x, wtap_ref, bias, apply_relu, mxu_dtype):
    """[ReLU] -> fused depthwise-3x3 + pointwise-1x1 + BN-scale (small-cin path).

    Implemented as the im2col matmul expressed as 9 accumulated MXU dots with
    per-tap composite weights (avoids a lane-axis concat).  BN scale is already
    folded into `wtap`; only the bias add remains.
    """
    H, W, cin = x.shape
    cout = wtap_ref.shape[1]
    if apply_relu:
        x = jnp.maximum(x, 0.0)           # zero pad is ReLU-invariant
    xp = _pad_hw(x, 0.0)                                   # (H+2, W+2, cin)
    cols = [xp[:, kx:kx + W, :] for kx in range(3)]        # 3 W-shifted views
    wt = wtap_ref[...]                                     # (9*cin, cout), one load
    acc = jnp.zeros((H * W, cout), jnp.float32)
    for ky in range(3):
        for kx in range(3):
            k = ky * 3 + kx
            tap = cols[kx][ky:ky + H].reshape(H * W, cin).astype(mxu_dtype)
            wk = wt[k * cin:(k + 1) * cin, :]              # static slice
            acc = acc + jnp.dot(tap, wk, preferred_element_type=jnp.float32)
    return (acc + bias).reshape(H, W, cout)


def _sep_stage(x, dw, pw_ref, bias, apply_relu, mxu_dtype, vpu_dtype):
    """[ReLU] -> depthwise 3x3 (VPU) -> pointwise 1x1 (MXU, BN-scale folded) -> +bias.

    Large-cin path.  `vpu_dtype=bf16` is profitable on v6e/v7x (bf16 VALUs);
    keep f32 on v5e.
    """
    H, W, cin = x.shape
    cout = pw_ref.shape[1]
    if apply_relu:
        x = jnp.maximum(x, 0.0)
    xp = _pad_hw(x.astype(vpu_dtype), 0.0)                 # (H+2, W+2, cin)
    cols = [xp[:, kx:kx + W, :] for kx in range(3)]        # hoisted kx shifts
    # hoisted per-tap weight views (JAX does not CSE broadcast_in_dim)
    dwk = [dw[k].reshape(1, 1, cin).astype(vpu_dtype) for k in range(9)]
    acc = jnp.zeros((H, W, cin), jnp.float32)
    for ky in range(3):
        for kx in range(3):
            tap = cols[kx][ky:ky + H]                      # cheap outer-dim slice
            acc = acc + (tap * dwk[ky * 3 + kx]).astype(jnp.float32)
    # NOTE: casting the f32 accumulator to bf16 here loses a little precision on
    # the default path; the f32-MXU path keeps it exact.
    a2 = acc.reshape(H * W, cin).astype(mxu_dtype)
    y = jnp.dot(a2, pw_ref[...], preferred_element_type=jnp.float32)
    return (y + bias).reshape(H, W, cout)


def _maxpool3(y, s, Ho, Wo):
    """MaxPool2d(kernel=3, stride=s, padding=1) of a (H, W, C) value, in-kernel.

    Vertical 3-tap max is taken only at pooled rows BEFORE the horizontal 3-tap
    max, so the horizontal VPU work runs on Ho rows instead of H+2 (≈ s× less).
    pad=1 and s<=3 guarantee every window holds a valid element, so the -inf
    halo never reaches the output.
    """
    H, W, C = y.shape
    yp = _pad_hw(y, -jnp.inf)                              # (H+2, W+2, C)
    rows = [jnp.maximum(jnp.maximum(yp[i * s:i * s + 1],
                                    yp[i * s + 1:i * s + 2]),
                        yp[i * s + 2:i * s + 3]) for i in range(Ho)]
    vm = jnp.concatenate(rows, axis=0)                     # (Ho, W+2, C)
    h3 = jnp.maximum(jnp.maximum(vm[:, 0:W, :], vm[:, 1:W + 1, :]),
                     vm[:, 2:W + 2, :])                    # (Ho, W, C)
    return jnp.concatenate([h3[:, j * s:j * s + 1, :] for j in range(Wo)],
                           axis=1)                         # (Ho, Wo, C)


# --------------------------------- kernel -------------------------------------

def _block_kernel(*refs, relu_flags, fused, has_skip_conv, stride, out_hw,
                  mxu_dtype, vpu_dtype):
    """Entire Block forward for one batch element (NHWC), fully fused.

    refs = (x_ref,
            fused:      [wtap(9*cin,cout), bias(1,cout)] * n_stages,
            separable:  [dw(9,cin), pw(cin,cout), bias(1,cout)] * n_stages,
            [skip_w(cin,cout), skip_bias(1,cout)]   # optional
            o_ref)
    """
    x_ref = refs[0]
    o_ref = refs[-1]
    w = refs[1:-1]
    n_stages = len(relu_flags)
    per_stage = 2 if fused else 3
    Ho, Wo = out_hw
    _, H, W, cin0 = x_ref.shape
    cout = o_ref.shape[-1]

    # --- rep chain: [ReLU ->] SeparableConv2d -> BN, all stages in one kernel ---
    y = x_ref[...].reshape(H, W, cin0).astype(jnp.float32)
    for si in range(n_stages):
        ws = w[per_stage * si:per_stage * (si + 1)]
        if fused:
            y = _fused_stage(y, ws[0], ws[1][...].astype(jnp.float32),
                             relu_flags[si], mxu_dtype)
        else:
            y = _sep_stage(y, ws[0][...], ws[1],
                           ws[2][...].astype(jnp.float32),
                           relu_flags[si], mxu_dtype, vpu_dtype)

    # --- optional maxpool on the rep output ------------------------------------
    if stride != 1:
        y = _maxpool3(y, stride, Ho, Wo)

    # --- skip branch (re-read x_ref here: short live range across the rep chain)
    if has_skip_conv:
        sw_ref, sb_ref = w[per_stage * n_stages:per_stage * n_stages + 2]
        x_raw = x_ref[...].reshape(H, W, cin0)
        xs = _subsample_hw(x_raw, stride, Ho, Wo)          # stride folded in-kernel
        a2 = xs.reshape(Ho * Wo, cin0).astype(mxu_dtype)
        sk = jnp.dot(a2, sw_ref[...], preferred_element_type=jnp.float32)
        sk = (sk + sb_ref[...].astype(jnp.float32)).reshape(Ho, Wo, cout)
    else:
        sk = x_ref[...].reshape(H, W, cin0).astype(jnp.float32)   # identity

    o_ref[...] = (y + sk).reshape(1, Ho, Wo, cout).astype(o_ref.dtype)


# --------------------------------- wrapper ------------------------------------

def _default_vmem_limit():
    # Review: ~96-100 MiB on v5e/v6e (128 MiB physical), ~48 MiB on v7x (64 MiB).
    try:
        cap = pltpu.get_tpu_info().vmem_capacity_bytes
    except Exception:
        cap = 64 * 1024 * 1024
    return int(min(cap * 3 // 4, 100 * 1024 * 1024))


def block_forward(params, x_nchw, mxu_dtype=jnp.bfloat16, vpu_dtype=jnp.float32,
                  fuse_dw_pw_max_cin=32):
    """Block forward. NCHW in/out (PyTorch layout); one fused Pallas call inside.

    vpu_dtype: f32 (v5e-safe default); pass bf16 on v6e/v7x for the separable path.
    fuse_dw_pw_max_cin: channel threshold below which depthwise+pointwise are
      fused into composite-weight MXU matmuls (set 0 to force the separable path).
    """
    x = jnp.transpose(x_nchw, (0, 2, 3, 1))                # NHWC
    N, H, W, cin = x.shape
    stages, skip, s = params["stages"], params["skip"], params["strides"]
    cout = stages[-1]["pw"].shape[1]
    assert 1 <= s <= 3, "maxpool -inf halo assumes stride <= 3 with pad=1"
    assert skip is not None or s == 1, "identity skip requires stride == 1"
    # MaxPool2d(3, s, pad=1) and Conv2d(1x1, stride=s) both give (H-1)//s + 1.
    Ho = (H - 1) // s + 1
    Wo = (W - 1) // s + 1
    relu_flags = tuple(bool(st["relu"]) for st in stages)
    max_cin = max(st["dw"].shape[1] for st in stages)
    fused = max_cin <= fuse_dw_pw_max_cin

    operands = [x]
    in_specs = [pl.BlockSpec((1, H, W, cin), lambda n: (n, 0, 0, 0))]

    def add_weight(a):                                     # all weights are 2-D,
        operands.append(a)                                 # grid-invariant blocks
        in_specs.append(pl.BlockSpec(a.shape, lambda n: (0, 0),
                                     pipeline_mode=pl.Buffered(1)))

    flops = 0
    for st in stages:
        ci, co = st["dw"].shape[1], st["pw"].shape[1]
        pw_scaled = st["pw"] * st["scale"]                 # fold BN scale
        if fused:
            # composite weight: W[k*cin + c, o] = dw[k, c] * pw[c, o] * scale[o]
            wtap = (st["dw"][:, :, None] * pw_scaled[None, :, :]).reshape(9 * ci, co)
            add_weight(wtap.astype(mxu_dtype))
            add_weight(st["bias"])
            flops += 2 * N * H * W * 9 * ci * co
        else:
            add_weight(st["dw"])                           # f32 for the VPU
            add_weight(pw_scaled.astype(mxu_dtype))        # MXU operand
            add_weight(st["bias"])
            flops += 2 * N * H * W * ci * (9 + co)
    if skip is not None:
        add_weight((skip["w"] * skip["scale"]).astype(mxu_dtype))  # fold BN scale
        add_weight(skip["bias"])
        flops += 2 * N * Ho * Wo * cin * cout

    bytes_accessed = (int(x.size) * x.dtype.itemsize
                      + N * Ho * Wo * cout * x.dtype.itemsize
                      + sum(int(a.size) * a.dtype.itemsize for a in operands[1:]))

    kernel = functools.partial(
        _block_kernel, relu_flags=relu_flags, fused=fused,
        has_skip_conv=skip is not None, stride=s, out_hw=(Ho, Wo),
        mxu_dtype=mxu_dtype, vpu_dtype=vpu_dtype)

    y = pl.pallas_call(
        kernel,
        out_shape=jax.ShapeDtypeStruct((N, Ho, Wo, cout), x.dtype),
        grid=(N,),
        in_specs=in_specs,
        out_specs=pl.BlockSpec((1, Ho, Wo, cout), lambda n: (n, 0, 0, 0)),
        compiler_params=pltpu.CompilerParams(
            dimension_semantics=("parallel",),
            vmem_limit_bytes=_default_vmem_limit()),
        cost_estimate=pl.CostEstimate(flops=int(flops), transcendentals=0,
                                      bytes_accessed=int(bytes_accessed)),
    )(*operands)
    return jnp.transpose(y, (0, 3, 1, 2))                  # back to NCHW


# --------------------------- parameter setup (glue) ---------------------------

def init_block_params(key, in_channels, out_channels, reps, strides=1,
                      start_with_relu=True, grow_first=True, dtype=jnp.float32):
    keys = iter(jax.random.split(key, 64))

    def folded_bn(c):
        gamma = 1.0 + 0.1 * jax.random.normal(next(keys), (c,), dtype)
        beta = 0.1 * jax.random.normal(next(keys), (c,), dtype)
        mean = 0.1 * jax.random.normal(next(keys), (c,), dtype)
        var = jnp.abs(jax.random.normal(next(keys), (c,), dtype)) + 0.5
        scale = gamma / jnp.sqrt(var + BN_EPS)
        bias = beta - mean * scale
        return scale.reshape(1, c), bias.reshape(1, c)

    def sep_bn(cin, cout):
        # PyTorch shapes: depthwise (cin, 1, 3, 3), pointwise (cout, cin, 1, 1)
        dw_pt = 0.2 * jax.random.normal(next(keys), (cin, 1, 3, 3), dtype)
        pw_pt = 0.2 * jax.random.normal(next(keys), (cout, cin, 1, 1), dtype)
        dw = jnp.transpose(dw_pt[:, 0], (1, 2, 0)).reshape(9, cin)   # (9, cin)
        pw = jnp.transpose(pw_pt[:, :, 0, 0], (1, 0))                # (cin, cout)
        scale, bias = folded_bn(cout)
        return dict(dw=dw, pw=pw, scale=scale, bias=bias)

    # Mirror the PyTorch __init__ construction of `rep`.
    stages = []
    filters = in_channels
    if grow_first:
        stages.append(dict(relu=True, **sep_bn(in_channels, out_channels)))
        filters = out_channels
    for _ in range(reps - 1):
        stages.append(dict(relu=True, **sep_bn(filters, filters)))
    if not grow_first:
        stages.append(dict(relu=True, **sep_bn(in_channels, out_channels)))
    if not start_with_relu:
        stages[0]["relu"] = False

    if out_channels != in_channels or strides != 1:
        w_pt = 0.2 * jax.random.normal(next(keys),
                                       (out_channels, in_channels, 1, 1), dtype)
        sc, b = folded_bn(out_channels)
        skip = dict(w=jnp.transpose(w_pt[:, :, 0, 0], (1, 0)), scale=sc, bias=b)
    else:
        skip = None

    return dict(stages=stages, skip=skip, strides=strides)


# --------------------------- pure-JAX reference -------------------------------

def _ref_sep_stage(x, st, relu):
    cin = st["dw"].shape[1]
    if relu:
        x = jnp.maximum(x, 0.0)
    w_dw = st["dw"].reshape(3, 3, 1, cin)
    x = jax.lax.conv_general_dilated(
        x, w_dw, (1, 1), ((1, 1), (1, 1)),
        dimension_numbers=("NHWC", "HWIO", "NHWC"), feature_group_count=cin)
    x = jnp.einsum("nhwc,cd->nhwd", x, st["pw"])
    return x * st["scale"][0] + st["bias"][0]


def block_forward_reference(params, x_nchw):
    x = jnp.transpose(x_nchw, (0, 2, 3, 1))
    y = x
    for st in params["stages"]:
        y = _ref_sep_stage(y, st, st["relu"])
    s = params["strides"]
    if params["skip"] is not None:
        sk = jnp.einsum("nhwc,cd->nhwd", x[:, ::s, ::s, :], params["skip"]["w"])
        sk = sk * params["skip"]["scale"][0] + params["skip"]["bias"][0]
    else:
        sk = x
    if s != 1:
        y = jax.lax.reduce_window(y, -jnp.inf, jax.lax.max,
                                  (1, 3, 3, 1), (1, s, s, 1),
                                  ((0, 0), (1, 1), (1, 1), (0, 0)))
    return jnp.transpose(y + sk, (0, 3, 1, 2))


# ------------------------------------ main -------------------------------------

if __name__ == "__main__":
    key = jax.random.PRNGKey(0)
    kp1, kp2, kp3, kx = jax.random.split(key, 4)
    x = jax.random.normal(kx, (2, 4, 16, 16), jnp.float32)   # NCHW, like PyTorch

    # Config 1: Block(4->8, reps=2, strides=2): skip conv + BN + fused maxpool+add.
    params1 = init_block_params(kp1, 4, 8, reps=2, strides=2,
                                start_with_relu=True, grow_first=True)
    ref1 = block_forward_reference(params1, x)
    # fused small-C path, f32 MXU: tight tolerance (validates kernel logic).
    out1 = jax.block_until_ready(block_forward(params1, x, mxu_dtype=jnp.float32))
    assert out1.shape == (2, 8, 8, 8), out1.shape
    assert jnp.allclose(out1, ref1, rtol=1e-4, atol=1e-4), \
        float(jnp.max(jnp.abs(out1 - ref1)))
    # default bf16-MXU path: bf16-level tolerance vs the f32 reference.
    out1b = jax.block_until_ready(block_forward(params1, x))
    assert jnp.allclose(out1b, ref1, rtol=5e-2, atol=5e-2), \
        float(jnp.max(jnp.abs(out1b - ref1)))
    # force the separable (large-cin) path to validate it as well.
    out1s = jax.block_until_ready(block_forward(params1, x, mxu_dtype=jnp.float32,
                                                fuse_dw_pw_max_cin=0))
    assert jnp.allclose(out1s, ref1, rtol=1e-4, atol=1e-4), \
        float(jnp.max(jnp.abs(out1s - ref1)))

    # Config 2: Block(4->4, reps=2, strides=1): identity skip, fused residual add.
    params2 = init_block_params(kp2, 4, 4, reps=2, strides=1,
                                start_with_relu=True, grow_first=True)
    ref2 = block_forward_reference(params2, x)
    out2 = jax.block_until_ready(block_forward(params2, x, mxu_dtype=jnp.float32))
    assert out2.shape == (2, 4, 16, 16), out2.shape
    assert jnp.allclose(out2, ref2, rtol=1e-4, atol=1e-4), \
        float(jnp.max(jnp.abs(out2 - ref2)))
    out2s = jax.block_until_ready(block_forward(params2, x, mxu_dtype=jnp.float32,
                                                fuse_dw_pw_max_cin=0))
    assert jnp.allclose(out2s, ref2, rtol=1e-4, atol=1e-4), \
        float(jnp.max(jnp.abs(out2s - ref2)))

    # Config 3: Block(4->8, reps=1, strides=1, start_with_relu=False):
    # stride-1 skip conv, no leading ReLU, single fused stage.
    params3 = init_block_params(kp3, 4, 8, reps=1, strides=1,
                                start_with_relu=False, grow_first=True)
    ref3 = block_forward_reference(params3, x)
    out3 = jax.block_until_ready(block_forward(params3, x, mxu_dtype=jnp.float32))
    assert out3.shape == (2, 8, 16, 16), out3.shape
    assert jnp.allclose(out3, ref3, rtol=1e-4, atol=1e-4), \
        float(jnp.max(jnp.abs(out3 - ref3)))

    print("KERNEL_OK")
</pallas_src>

<mosaic_0001>
module attributes {stable_mosaic.version = 11 : i64} {
  func.func @_block_kernel(%arg0: i32, %arg1: memref<1x16x16x4xf32, #tpu.memory_space<vmem>>, %arg2: memref<36x8xf32, #tpu.memory_space<vmem>>, %arg3: memref<1x8xf32, #tpu.memory_space<vmem>>, %arg4: memref<72x8xf32, #tpu.memory_space<vmem>>, %arg5: memref<1x8xf32, #tpu.memory_space<vmem>>, %arg6: memref<4x8xf32, #tpu.memory_space<vmem>>, %arg7: memref<1x8xf32, #tpu.memory_space<vmem>>, %arg8: memref<1x8x8x8xf32, #tpu.memory_space<vmem>>) attributes {dimension_semantics = [#tpu.dimension_semantics<parallel>], iteration_bounds = array<i64: 2>, scalar_prefetch = 0 : i64, scratch_operands = 0 : i64, tpu.core_type = #tpu.core_type<tc>, window_params = [{transform_indices = @transform_0, window_bounds = array<i64: 1, 16, 16, 4>}, {pipeline_mode = #tpu.pipeline_mode<synchronous>, transform_indices = @transform_1, window_bounds = array<i64: 36, 8>}, {pipeline_mode = #tpu.pipeline_mode<synchronous>, transform_indices = @transform_2, window_bounds = array<i64: 1, 8>}, {pipeline_mode = #tpu.pipeline_mode<synchronous>, transform_indices = @transform_3, window_bounds = array<i64: 72, 8>}, {pipeline_mode = #tpu.pipeline_mode<synchronous>, transform_indices = @transform_4, window_bounds = array<i64: 1, 8>}, {pipeline_mode = #tpu.pipeline_mode<synchronous>, transform_indices = @transform_5, window_bounds = array<i64: 4, 8>}, {pipeline_mode = #tpu.pipeline_mode<synchronous>, transform_indices = @transform_6, window_bounds = array<i64: 1, 8>}, {transform_indices = @transform_7, window_bounds = array<i64: 1, 8, 8, 8>}]} {
    %c0 = arith.constant 0 : index
    %c0_0 = arith.constant 0 : index
    %c0_1 = arith.constant 0 : index
    %c0_2 = arith.constant 0 : index
    %0 = vector.load %arg1[%c0, %c0_0, %c0_1, %c0_2] : memref<1x16x16x4xf32, #tpu.memory_space<vmem>>, vector<1x16x16x4xf32>
    %1 = vector.shape_cast %0 : vector<1x16x16x4xf32> to vector<16x16x4xf32>
    %c0_3 = arith.constant 0 : index
    %c0_4 = arith.constant 0 : index
    %2 = vector.load %arg3[%c0_3, %c0_4] : memref<1x8xf32, #tpu.memory_space<vmem>>, vector<1x8xf32>
    %cst = arith.constant 0.000000e+00 : f32
    %3 = vector.broadcast %cst : f32 to vector<16x16x4xf32>
    %4 = arith.maximumf %1, %3 : vector<16x16x4xf32>
    %cst_5 = arith.constant 0.000000e+00 : f32
    %5 = vector.broadcast %cst_5 : f32 to vector<16x1x4xf32>
    %6 = tpu.concatenate %5, %4, %5 in 1 : vector<16x1x4xf32>, vector<16x16x4xf32>, vector<16x1x4xf32> -> vector<16x18x4xf32>
    %cst_6 = arith.constant 0.000000e+00 : f32
    %7 = vector.broadcast %cst_6 : f32 to vector<1x18x4xf32>
    %8 = tpu.concatenate %7, %6, %7 in 0 : vector<1x18x4xf32>, vector<16x18x4xf32>, vector<1x18x4xf32> -> vector<18x18x4xf32>
    %9 = vector.extract_strided_slice %8 {offsets = [0, 0, 0], sizes = [18, 16, 4], strides = [1, 1, 1]} : vector<18x18x4xf32> to vector<18x16x4xf32>
    %10 = vector.extract_strided_slice %8 {offsets = [0, 1, 0], sizes = [18, 16, 4], strides = [1, 1, 1]} : vector<18x18x4xf32> to vector<18x16x4xf32>
    %11 = vector.extract_strided_slice %8 {offsets = [0, 2, 0], sizes = [18, 16, 4], strides = [1, 1, 1]} : vector<18x18x4xf32> to vector<18x16x4xf32>
    %c0_7 = arith.constant 0 : index
    %c0_8 = arith.constant 0 : index
    %12 = vector.load %arg2[%c0_7, %c0_8] : memref<36x8xf32, #tpu.memory_space<vmem>>, vector<36x8xf32>
    %cst_9 = arith.constant 0.000000e+00 : f32
    %13 = vector.broadcast %cst_9 : f32 to vector<256x8xf32>
    %14 = vector.extract_strided_slice %9 {offsets = [0, 0, 0], sizes = [16, 16, 4], strides = [1, 1, 1]} : vector<18x16x4xf32> to vector<16x16x4xf32>
    %15 = vector.shape_cast %14 : vector<16x16x4xf32> to vector<256x4xf32>
    %16 = vector.extract_strided_slice %12 {offsets = [0, 0], sizes = [4, 8], strides = [1, 1]} : vector<36x8xf32> to vector<4x8xf32>
    %cst_10 = arith.constant dense<0.000000e+00> : vector<256x8xf32>
    %17 = tpu.matmul %15, %16, %cst_10 {dimension_numbers = #tpu.dot_dimension_numbers<[1], [0], [0], [1], [0, 0, 1, 1], [], []>} : vector<256x4xf32>, vector<4x8xf32>, vector<256x8xf32> -> vector<256x8xf32>
    %18 = arith.addf %13, %17 : vector<256x8xf32>
    %19 = vector.extract_strided_slice %10 {offsets = [0, 0, 0], sizes = [16, 16, 4], strides = [1, 1, 1]} : vector<18x16x4xf32> to vector<16x16x4xf32>
    %20 = vector.shape_cast %19 : vector<16x16x4xf32> to vector<256x4xf32>
    %21 = vector.extract_strided_slice %12 {offsets = [4, 0], sizes = [4, 8], strides = [1, 1]} : vector<36x8xf32> to vector<4x8xf32>
    %cst_11 = arith.constant dense<0.000000e+00> : vector<256x8xf32>
    %22 = tpu.matmul %20, %21, %cst_11 {dimension_numbers = #tpu.dot_dimension_numbers<[1], [0], [0], [1], [0, 0, 1, 1], [], []>} : vector<256x4xf32>, vector<4x8xf32>, vector<256x8xf32> -> vector<256x8xf32>
    %23 = arith.addf %18, %22 : vector<256x8xf32>
    %24 = vector.extract_strided_slice %11 {offsets = [0, 0, 0], sizes = [16, 16, 4], strides = [1, 1, 1]} : vector<18x16x4xf32> to vector<16x16x4xf32>
    %25 = vector.shape_cast %24 : vector<16x16x4xf32> to vector<256x4xf32>
    %26 = vector.extract_strided_slice %12 {offsets = [8, 0], sizes = [4, 8], strides = [1, 1]} : vector<36x8xf32> to vector<4x8xf32>
    %cst_12 = arith.constant dense<0.000000e+00> : vector<256x8xf32>
    %27 = tpu.matmul %25, %26, %cst_12 {dimension_numbers = #tpu.dot_dimension_numbers<[1], [0], [0], [1], [0, 0, 1, 1], [], []>} : vector<256x4xf32>, vector<4x8xf32>, vector<256x8xf32> -> vector<256x8xf32>
    %28 = arith.addf %23, %27 : vector<256x8xf32>
    %29 = vector.extract_strided_slice %9 {offsets = [1, 0, 0], sizes = [16, 16, 4], strides = [1, 1, 1]} : vector<18x16x4xf32> to vector<16x16x4xf32>
    %30 = vector.shape_cast %29 : vector<16x16x4xf32> to vector<256x4xf32>
    %31 = vector.extract_strided_slice %12 {offsets = [12, 0], sizes = [4, 8], strides = [1, 1]} : vector<36x8xf32> to vector<4x8xf32>
    %cst_13 = arith.constant dense<0.000000e+00> : vector<256x8xf32>
    %32 = tpu.matmul %30, %31, %cst_13 {dimension_numbers = #tpu.dot_dimension_numbers<[1], [0], [0], [1], [0, 0, 1, 1], [], []>} : vector<256x4xf32>, vector<4x8xf32>, vector<256x8xf32> -> vector<256x8xf32>
    %33 = arith.addf %28, %32 : vector<256x8xf32>
    %34 = vector.extract_strided_slice %10 {offsets = [1, 0, 0], sizes = [16, 16, 4], strides = [1, 1, 1]} : vector<18x16x4xf32> to vector<16x16x4xf32>
    %35 = vector.shape_cast %34 : vector<16x16x4xf32> to vector<256x4xf32>
    %36 = vector.extract_strided_slice %12 {offsets = [16, 0], sizes = [4, 8], strides = [1, 1]} : vector<36x8xf32> to vector<4x8xf32>
    %cst_14 = arith.constant dense<0.000000e+00> : vector<256x8xf32>
    %37 = tpu.matmul %35, %36, %cst_14 {dimension_numbers = #tpu.dot_dimension_numbers<[1], [0], [0], [1], [0, 0, 1, 1], [], []>} : vector<256x4xf32>, vector<4x8xf32>, vector<256x8xf32> -> vector<256x8xf32>
    %38 = arith.addf %33, %37 : vector<256x8xf32>
    %39 = vector.extract_strided_slice %11 {offsets = [1, 0, 0], sizes = [16, 16, 4], strides = [1, 1, 1]} : vector<18x16x4xf32> to vector<16x16x4xf32>
    %40 = vector.shape_cast %39 : vector<16x16x4xf32> to vector<256x4xf32>
    %41 = vector.extract_strided_slice %12 {offsets = [20, 0], sizes = [4, 8], strides = [1, 1]} : vector<36x8xf32> to vector<4x8xf32>
    %cst_15 = arith.constant dense<0.000000e+00> : vector<256x8xf32>
    %42 = tpu.matmul %40, %41, %cst_15 {dimension_numbers = #tpu.dot_dimension_numbers<[1], [0], [0], [1], [0, 0, 1, 1], [], []>} : vector<256x4xf32>, vector<4x8xf32>, vector<256x8xf32> -> vector<256x8xf32>
    %43 = arith.addf %38, %42 : vector<256x8xf32>
    %44 = vector.extract_strided_slice %9 {offsets = [2, 0, 0], sizes = [16, 16, 4], strides = [1, 1, 1]} : vector<18x16x4xf32> to vector<16x16x4xf32>
    %45 = vector.shape_cast %44 : vector<16x16x4xf32> to vector<256x4xf32>
    %46 = vector.extract_strided_slice %12 {offsets = [24, 0], sizes = [4, 8], strides = [1, 1]} : vector<36x8xf32> to vector<4x8xf32>
    %cst_16 = arith.constant dense<0.000000e+00> : vector<256x8xf32>
    %47 = tpu.matmul %45, %46, %cst_16 {dimension_numbers = #tpu.dot_dimension_numbers<[1], [0], [0], [1], [0, 0, 1, 1], [], []>} : vector<256x4xf32>, vector<4x8xf32>, vector<256x8xf32> -> vector<256x8xf32>
    %48 = arith.addf %43, %47 : vector<256x8xf32>
    %49 = vector.extract_strided_slice %10 {offsets = [2, 0, 0], sizes = [16, 16, 4], strides = [1, 1, 1]} : vector<18x16x4xf32> to vector<16x16x4xf32>
    %50 = vector.shape_cast %49 : vector<16x16x4xf32> to vector<256x4xf32>
    %51 = vector.extract_strided_slice %12 {offsets = [28, 0], sizes = [4, 8], strides = [1, 1]} : vector<36x8xf32> to vector<4x8xf32>
    %cst_17 = arith.constant dense<0.000000e+00> : vector<256x8xf32>
    %52 = tpu.matmul %50, %51, %cst_17 {dimension_numbers = #tpu.dot_dimension_numbers<[1], [0], [0], [1], [0, 0, 1, 1], [], []>} : vector<256x4xf32>, vector<4x8xf32>, vector<256x8xf32> -> vector<256x8xf32>
    %53 = arith.addf %48, %52 : vector<256x8xf32>
    %54 = vector.extract_strided_slice %11 {offsets = [2, 0, 0], sizes = [16, 16, 4], strides = [1, 1, 1]} : vector<18x16x4xf32> to vector<16x16x4xf32>
    %55 = vector.shape_cast %54 : vector<16x16x4xf32> to vector<256x4xf32>
    %56 = vector.extract_strided_slice %12 {offsets = [32, 0], sizes = [4, 8], strides = [1, 1]} : vector<36x8xf32> to vector<4x8xf32>
    %cst_18 = arith.constant dense<0.000000e+00> : vector<256x8xf32>
    %57 = tpu.matmul %55, %56, %cst_18 {dimension_numbers = #tpu.dot_dimension_numbers<[1], [0], [0], [1], [0, 0, 1, 1], [], []>} : vector<256x4xf32>, vector<4x8xf32>, vector<256x8xf32> -> vector<256x8xf32>
    %58 = arith.addf %53, %57 : vector<256x8xf32>
    %59 = vector.broadcast %2 : vector<1x8xf32> to vector<256x8xf32>
    %60 = arith.addf %58, %59 : vector<256x8xf32>
    %61 = vector.shape_cast %60 : vector<256x8xf32> to vector<16x16x8xf32>
    %c0_19 = arith.constant 0 : index
    %c0_20 = arith.constant 0 : index
    %62 = vector.load %arg5[%c0_19, %c0_20] : memref<1x8xf32, #tpu.memory_space<vmem>>, vector<1x8xf32>
    %cst_21 = arith.constant 0.000000e+00 : f32
    %63 = vector.broadcast %cst_21 : f32 to vector<16x16x8xf32>
    %64 = arith.maximumf %61, %63 : vector<16x16x8xf32>
    %cst_22 = arith.constant 0.000000e+00 : f32
    %65 = vector.broadcast %cst_22 : f32 to vector<16x1x8xf32>
    %66 = tpu.concatenate %65, %64, %65 in 1 : vector<16x1x8xf32>, vector<16x16x8xf32>, vector<16x1x8xf32> -> vector<16x18x8xf32>
    %cst_23 = arith.constant 0.000000e+00 : f32
    %67 = vector.broadcast %cst_23 : f32 to vector<1x18x8xf32>
    %68 = tpu.concatenate %67, %66, %67 in 0 : vector<1x18x8xf32>, vector<16x18x8xf32>, vector<1x18x8xf32> -> vector<18x18x8xf32>
    %69 = vector.extract_strided_slice %68 {offsets = [0, 0, 0], sizes = [18, 16, 8], strides = [1, 1, 1]} : vector<18x18x8xf32> to vector<18x16x8xf32>
    %70 = vector.extract_strided_slice %68 {offsets = [0, 1, 0], sizes = [18, 16, 8], strides = [1, 1, 1]} : vector<18x18x8xf32> to vector<18x16x8xf32>
    %71 = vector.extract_strided_slice %68 {offsets = [0, 2, 0], sizes = [18, 16, 8], strides = [1, 1, 1]} : vector<18x18x8xf32> to vector<18x16x8xf32>
    %c0_24 = arith.constant 0 : index
    %c0_25 = arith.constant 0 : index
    %72 = vector.load %arg4[%c0_24, %c0_25] : memref<72x8xf32, #tpu.memory_space<vmem>>, vector<72x8xf32>
    %cst_26 = arith.constant 0.000000e+00 : f32
    %73 = vector.broadcast %cst_26 : f32 to vector<256x8xf32>
    %74 = vector.extract_strided_slice %69 {offsets = [0, 0, 0], sizes = [16, 16, 8], strides = [1, 1, 1]} : vector<18x16x8xf32> to vector<16x16x8xf32>
    %75 = vector.shape_cast %74 : vector<16x16x8xf32> to vector<256x8xf32>
    %76 = vector.extract_strided_slice %72 {offsets = [0, 0], sizes = [8, 8], strides = [1, 1]} : vector<72x8xf32> to vector<8x8xf32>
    %cst_27 = arith.constant dense<0.000000e+00> : vector<256x8xf32>
    %77 = tpu.matmul %75, %76, %cst_27 {dimension_numbers = #tpu.dot_dimension_numbers<[1], [0], [0], [1], [0, 0, 1, 1], [], []>} : vector<256x8xf32>, vector<8x8xf32>, vector<256x8xf32> -> vector<256x8xf32>
    %78 = arith.addf %73, %77 : vector<256x8xf32>
    %79 = vector.extract_strided_slice %70 {offsets = [0, 0, 0], sizes = [16, 16, 8], strides = [1, 1, 1]} : vector<18x16x8xf32> to vector<16x16x8xf32>
    %80 = vector.shape_cast %79 : vector<16x16x8xf32> to vector<256x8xf32>
    %81 = vector.extract_strided_slice %72 {offsets = [8, 0], sizes = [8, 8], strides = [1, 1]} : vector<72x8xf32> to vector<8x8xf32>
    %cst_28 = arith.constant dense<0.000000e+00> : vector<256x8xf32>
    %82 = tpu.matmul %80, %81, %cst_28 {dimension_numbers = #tpu.dot_dimension_numbers<[1], [0], [0], [1], [0, 0, 1, 1], [], []>} : vector<256x8xf32>, vector<8x8xf32>, vector<256x8xf32> -> vector<256x8xf32>
    %83 = arith.addf %78, %82 : vector<256x8xf32>
    %84 = vector.extract_strided_slice %71 {offsets = [0, 0, 0], sizes = [16, 16, 8], strides = [1, 1, 1]} : vector<18x16x8xf32> to vector<16x16x8xf32>
    %85 = vector.shape_cast %84 : vector<16x16x8xf32> to vector<256x8xf32>
    %86 = vector.extract_strided_slice %72 {offsets = [16, 0], sizes = [8, 8], strides = [1, 1]} : vector<72x8xf32> to vector<8x8xf32>
    %cst_29 = arith.constant dense<0.000000e+00> : vector<256x8xf32>
    %87 = tpu.matmul %85, %86, %cst_29 {dimension_numbers = #tpu.dot_dimension_numbers<[1], [0], [0], [1], [0, 0, 1, 1], [], []>} : vector<256x8xf32>, vector<8x8xf32>, vector<256x8xf32> -> vector<256x8xf32>
    %88 = arith.addf %83, %87 : vector<256x8xf32>
    %89 = vector.extract_strided_slice %69 {offsets = [1, 0, 0], sizes = [16, 16, 8], strides = [1, 1, 1]} : vector<18x16x8xf32> to vector<16x16x8xf32>
    %90 = vector.shape_cast %89 : vector<16x16x8xf32> to vector<256x8xf32>
    %91 = vector.extract_strided_slice %72 {offsets = [24, 0], sizes = [8, 8], strides = [1, 1]} : vector<72x8xf32> to vector<8x8xf32>
    %cst_30 = arith.constant dense<0.000000e+00> : vector<256x8xf32>
    %92 = tpu.matmul %90, %91, %cst_30 {dimension_numbers = #tpu.dot_dimension_numbers<[1], [0], [0], [1], [0, 0, 1, 1], [], []>} : vector<256x8xf32>, vector<8x8xf32>, vector<256x8xf32> -> vector<256x8xf32>
    %93 = arith.addf %88, %92 : vector<256x8xf32>
    %94 = vector.extract_strided_slice %70 {offsets = [1, 0, 0], sizes = [16, 16, 8], strides = [1, 1, 1]} : vector<18x16x8xf32> to vector<16x16x8xf32>
    %95 = vector.shape_cast %94 : vector<16x16x8xf32> to vector<256x8xf32>
    %96 = vector.extract_strided_slice %72 {offsets = [32, 0], sizes = [8, 8], strides = [1, 1]} : vector<72x8xf32> to vector<8x8xf32>
    %cst_31 = arith.constant dense<0.000000e+00> : vector<256x8xf32>
    %97 = tpu.matmul %95, %96, %cst_31 {dimension_numbers = #tpu.dot_dimension_numbers<[1], [0], [0], [1], [0, 0, 1, 1], [], []>} : vector<256x8xf32>, vector<8x8xf32>, vector<256x8xf32> -> vector<256x8xf32>
    %98 = arith.addf %93, %97 : vector<256x8xf32>
    %99 = vector.extract_strided_slice %71 {offsets = [1, 0, 0], sizes = [16, 16, 8], strides = [1, 1, 1]} : vector<18x16x8xf32> to vector<16x16x8xf32>
    %100 = vector.shape_cast %99 : vector<16x16x8xf32> to vector<256x8xf32>
    %101 = vector.extract_strided_slice %72 {offsets = [40, 0], sizes = [8, 8], strides = [1, 1]} : vector<72x8xf32> to vector<8x8xf32>
    %cst_32 = arith.constant dense<0.000000e+00> : vector<256x8xf32>
    %102 = tpu.matmul %100, %101, %cst_32 {dimension_numbers = #tpu.dot_dimension_numbers<[1], [0], [0], [1], [0, 0, 1, 1], [], []>} : vector<256x8xf32>, vector<8x8xf32>, vector<256x8xf32> -> vector<256x8xf32>
    %103 = arith.addf %98, %102 : vector<256x8xf32>
    %104 = vector.extract_strided_slice %69 {offsets = [2, 0, 0], sizes = [16, 16, 8], strides = [1, 1, 1]} : vector<18x16x8xf32> to vector<16x16x8xf32>
    %105 = vector.shape_cast %104 : vector<16x16x8xf32> to vector<256x8xf32>
    %106 = vector.extract_strided_slice %72 {offsets = [48, 0], sizes = [8, 8], strides = [1, 1]} : vector<72x8xf32> to vector<8x8xf32>
    %cst_33 = arith.constant dense<0.000000e+00> : vector<256x8xf32>
    %107 = tpu.matmul %105, %106, %cst_33 {dimension_numbers = #tpu.dot_dimension_numbers<[1], [0], [0], [1], [0, 0, 1, 1], [], []>} : vector<256x8xf32>, vector<8x8xf32>, vector<256x8xf32> -> vector<256x8xf32>
    %108 = arith.addf %103, %107 : vector<256x8xf32>
    %109 = vector.extract_strided_slice %70 {offsets = [2, 0, 0], sizes = [16, 16, 8], strides = [1, 1, 1]} : vector<18x16x8xf32> to vector<16x16x8xf32>
    %110 = vector.shape_cast %109 : vector<16x16x8xf32> to vector<256x8xf32>
    %111 = vector.extract_strided_slice %72 {offsets = [56, 0], sizes = [8, 8], strides = [1, 1]} : vector<72x8xf32> to vector<8x8xf32>
    %cst_34 = arith.constant dense<0.000000e+00> : vector<256x8xf32>
    %112 = tpu.matmul %110, %111, %cst_34 {dimension_numbers = #tpu.dot_dimension_numbers<[1], [0], [0], [1], [0, 0, 1, 1], [], []>} : vector<256x8xf32>, vector<8x8xf32>, vector<256x8xf32> -> vector<256x8xf32>
    %113 = arith.addf %108, %112 : vector<256x8xf32>
    %114 = vector.extract_strided_slice %71 {offsets = [2, 0, 0], sizes = [16, 16, 8], strides = [1, 1, 1]} : vector<18x16x8xf32> to vector<16x16x8xf32>
    %115 = vector.shape_cast %114 : vector<16x16x8xf32> to vector<256x8xf32>
    %116 = vector.extract_strided_slice %72 {offsets = [64, 0], sizes = [8, 8], strides = [1, 1]} : vector<72x8xf32> to vector<8x8xf32>
    %cst_35 = arith.constant dense<0.000000e+00> : vector<256x8xf32>
    %117 = tpu.matmul %115, %116, %cst_35 {dimension_numbers = #tpu.dot_dimension_numbers<[1], [0], [0], [1], [0, 0, 1, 1], [], []>} : vector<256x8xf32>, vector<8x8xf32>, vector<256x8xf32> -> vector<256x8xf32>
    %118 = arith.addf %113, %117 : vector<256x8xf32>
    %119 = vector.broadcast %62 : vector<1x8xf32> to vector<256x8xf32>
    %120 = arith.addf %118, %119 : vector<256x8xf32>
    %121 = vector.shape_cast %120 : vector<256x8xf32> to vector<16x16x8xf32>
    %cst_36 = arith.constant 0xFF800000 : f32
    %122 = vector.broadcast %cst_36 : f32 to vector<16x1x8xf32>
    %123 = tpu.concatenate %122, %121, %122 in 1 : vector<16x1x8xf32>, vector<16x16x8xf32>, vector<16x1x8xf32> -> vector<16x18x8xf32>
    %cst_37 = arith.constant 0xFF800000 : f32
    %124 = vector.broadcast %cst_37 : f32 to vector<1x18x8xf32>
    %125 = tpu.concatenate %124, %123, %124 in 0 : vector<1x18x8xf32>, vector<16x18x8xf32>, vector<1x18x8xf32> -> vector<18x18x8xf32>
    %126 = vector.extract_strided_slice %125 {offsets = [0, 0, 0], sizes = [1, 18, 8], strides = [1, 1, 1]} : vector<18x18x8xf32> to vector<1x18x8xf32>
    %127 = vector.extract_strided_slice %125 {offsets = [1, 0, 0], sizes = [1, 18, 8], strides = [1, 1, 1]} : vector<18x18x8xf32> to vector<1x18x8xf32>
    %128 = arith.maximumf %126, %127 : vector<1x18x8xf32>
    %129 = vector.extract_strided_slice %125 {offsets = [2, 0, 0], sizes = [1, 18, 8], strides = [1, 1, 1]} : vector<18x18x8xf32> to vector<1x18x8xf32>
    %130 = arith.maximumf %128, %129 : vector<1x18x8xf32>
    %131 = vector.extract_strided_slice %125 {offsets = [2, 0, 0], sizes = [1, 18, 8], strides = [1, 1, 1]} : vector<18x18x8xf32> to vector<1x18x8xf32>
    %132 = vector.extract_strided_slice %125 {offsets = [3, 0, 0], sizes = [1, 18, 8], strides = [1, 1, 1]} : vector<18x18x8xf32> to vector<1x18x8xf32>
    %133 = arith.maximumf %131, %132 : vector<1x18x8xf32>
    %134 = vector.extract_strided_slice %125 {offsets = [4, 0, 0], sizes = [1, 18, 8], strides = [1, 1, 1]} : vector<18x18x8xf32> to vector<1x18x8xf32>
    %135 = arith.maximumf %133, %134 : vector<1x18x8xf32>
    %136 = vector.extract_strided_slice %125 {offsets = [4, 0, 0], sizes = [1, 18, 8], strides = [1, 1, 1]} : vector<18x18x8xf32> to vector<1x18x8xf32>
    %137 = vector.extract_strided_slice %125 {offsets = [5, 0, 0], sizes = [1, 18, 8], strides = [1, 1, 1]} : vector<18x18x8xf32> to vector<1x18x8xf32>
    %138 = arith.maximumf %136, %137 : vector<1x18x8xf32>
    %139 = vector.extract_strided_slice %125 {offsets = [6, 0, 0], sizes = [1, 18, 8], strides = [1, 1, 1]} : vector<18x18x8xf32> to vector<1x18x8xf32>
    %140 = arith.maximumf %138, %139 : vector<1x18x8xf32>
    %141 = vector.extract_strided_slice %125 {offsets = [6, 0, 0], sizes = [1, 18, 8], strides = [1, 1, 1]} : vector<18x18x8xf32> to vector<1x18x8xf32>
    %142 = vector.extract_strided_slice %125 {offsets = [7, 0, 0], sizes = [1, 18, 8], strides = [1, 1, 1]} : vector<18x18x8xf32> to vector<1x18x8xf32>
    %143 = arith.maximumf %141, %142 : vector<1x18x8xf32>
    %144 = vector.extract_strided_slice %125 {offsets = [8, 0, 0], sizes = [1, 18, 8], strides = [1, 1, 1]} : vector<18x18x8xf32> to vector<1x18x8xf32>
    %145 = arith.maximumf %143, %144 : vector<1x18x8xf32>
    %146 = vector.extract_strided_slice %125 {offsets = [8, 0, 0], sizes = [1, 18, 8], strides = [1, 1, 1]} : vector<18x18x8xf32> to vector<1x18x8xf32>
    %147 = vector.extract_strided_slice %125 {offsets = [9, 0, 0], sizes = [1, 18, 8], strides = [1, 1, 1]} : vector<18x18x8xf32> to vector<1x18x8xf32>
    %148 = arith.maximumf %146, %147 : vector<1x18x8xf32>
    %149 = vector.extract_strided_slice %125 {offsets = [10, 0, 0], sizes = [1, 18, 8], strides = [1, 1, 1]} : vector<18x18x8xf32> to vector<1x18x8xf32>
    %150 = arith.maximumf %148, %149 : vector<1x18x8xf32>
    %151 = vector.extract_strided_slice %125 {offsets = [10, 0, 0], sizes = [1, 18, 8], strides = [1, 1, 1]} : vector<18x18x8xf32> to vector<1x18x8xf32>
    %152 = vector.extract_strided_slice %125 {offsets = [11, 0, 0], sizes = [1, 18, 8], strides = [1, 1, 1]} : vector<18x18x8xf32> to vector<1x18x8xf32>
    %153 = arith.maximumf %151, %152 : vector<1x18x8xf32>
    %154 = vector.extract_strided_slice %125 {offsets = [12, 0, 0], sizes = [1, 18, 8], strides = [1, 1, 1]} : vector<18x18x8xf32> to vector<1x18x8xf32>
    %155 = arith.maximumf %153, %154 : vector<1x18x8xf32>
    %156 = vector.extract_strided_slice %125 {offsets = [12, 0, 0], sizes = [1, 18, 8], strides = [1, 1, 1]} : vector<18x18x8xf32> to vector<1x18x8xf32>
    %157 = vector.extract_strided_slice %125 {offsets = [13, 0, 0], sizes = [1, 18, 8], strides = [1, 1, 1]} : vector<18x18x8xf32> to vector<1x18x8xf32>
    %158 = arith.maximumf %156, %157 : vector<1x18x8xf32>
    %159 = vector.extract_strided_slice %125 {offsets = [14, 0, 0], sizes = [1, 18, 8], strides = [1, 1, 1]} : vector<18x18x8xf32> to vector<1x18x8xf32>
    %160 = arith.maximumf %158, %159 : vector<1x18x8xf32>
    %161 = vector.extract_strided_slice %125 {offsets = [14, 0, 0], sizes = [1, 18, 8], strides = [1, 1, 1]} : vector<18x18x8xf32> to vector<1x18x8xf32>
    %162 = vector.extract_strided_slice %125 {offsets = [15, 0, 0], sizes = [1, 18, 8], strides = [1, 1, 1]} : vector<18x18x8xf32> to vector<1x18x8xf32>
    %163 = arith.maximumf %161, %162 : vector<1x18x8xf32>
    %164 = vector.extract_strided_slice %125 {offsets = [16, 0, 0], sizes = [1, 18, 8], strides = [1, 1, 1]} : vector<18x18x8xf32> to vector<1x18x8xf32>
    %165 = arith.maximumf %163, %164 : vector<1x18x8xf32>
    %166 = tpu.concatenate %130, %135, %140, %145, %150, %155, %160, %165 in 0 : vector<1x18x8xf32>, vector<1x18x8xf32>, vector<1x18x8xf32>, vector<1x18x8xf32>, vector<1x18x8xf32>, vector<1x18x8xf32>, vector<1x18x8xf32>, vector<1x18x8xf32> -> vector<8x18x8xf32>
    %167 = vector.extract_strided_slice %166 {offsets = [0, 0, 0], sizes = [8, 16, 8], strides = [1, 1, 1]} : vector<8x18x8xf32> to vector<8x16x8xf32>
    %168 = vector.extract_strided_slice %166 {offsets = [0, 1, 0], sizes = [8, 16, 8], strides = [1, 1, 1]} : vector<8x18x8xf32> to vector<8x16x8xf32>
    %169 = arith.maximumf %167, %168 : vector<8x16x8xf32>
    %170 = vector.extract_strided_slice %166 {offsets = [0, 2, 0], sizes = [8, 16, 8], strides = [1, 1, 1]} : vector<8x18x8xf32> to vector<8x16x8xf32>
    %171 = arith.maximumf %169, %170 : vector<8x16x8xf32>
    %172 = vector.extract_strided_slice %171 {offsets = [0, 0, 0], sizes = [8, 1, 8], strides = [1, 1, 1]} : vector<8x16x8xf32> to vector<8x1x8xf32>
    %173 = vector.extract_strided_slice %171 {offsets = [0, 2, 0], sizes = [8, 1, 8], strides = [1, 1, 1]} : vector<8x16x8xf32> to vector<8x1x8xf32>
    %174 = vector.extract_strided_slice %171 {offsets = [0, 4, 0], sizes = [8, 1, 8], strides = [1, 1, 1]} : vector<8x16x8xf32> to vector<8x1x8xf32>
    %175 = vector.extract_strided_slice %171 {offsets = [0, 6, 0], sizes = [8, 1, 8], strides = [1, 1, 1]} : vector<8x16x8xf32> to vector<8x1x8xf32>
    %176 = vector.extract_strided_slice %171 {offsets = [0, 8, 0], sizes = [8, 1, 8], strides = [1, 1, 1]} : vector<8x16x8xf32> to vector<8x1x8xf32>
    %177 = vector.extract_strided_slice %171 {offsets = [0, 10, 0], sizes = [8, 1, 8], strides = [1, 1, 1]} : vector<8x16x8xf32> to vector<8x1x8xf32>
    %178 = vector.extract_strided_slice %171 {offsets = [0, 12, 0], sizes = [8, 1, 8], strides = [1, 1, 1]} : vector<8x16x8xf32> to vector<8x1x8xf32>
    %179 = vector.extract_strided_slice %171 {offsets = [0, 14, 0], sizes = [8, 1, 8], strides = [1, 1, 1]} : vector<8x16x8xf32> to vector<8x1x8xf32>
    %180 = tpu.concatenate %172, %173, %174, %175, %176, %177, %178, %179 in 1 : vector<8x1x8xf32>, vector<8x1x8xf32>, vector<8x1x8xf32>, vector<8x1x8xf32>, vector<8x1x8xf32>, vector<8x1x8xf32>, vector<8x1x8xf32>, vector<8x1x8xf32> -> vector<8x8x8xf32>
    %c0_38 = arith.constant 0 : index
    %c0_39 = arith.constant 0 : index
    %c0_40 = arith.constant 0 : index
    %c0_41 = arith.constant 0 : index
    %181 = vector.load %arg1[%c0_38, %c0_39, %c0_40, %c0_41] : memref<1x16x16x4xf32, #tpu.memory_space<vmem>>, vector<1x16x16x4xf32>
    %182 = vector.shape_cast %181 : vector<1x16x16x4xf32> to vector<16x16x4xf32>
    %183 = vector.extract_strided_slice %182 {offsets = [0, 0, 0], sizes = [1, 16, 4], strides = [1, 1, 1]} : vector<16x16x4xf32> to vector<1x16x4xf32>
    %184 = vector.extract_strided_slice %182 {offsets = [2, 0, 0], sizes = [1, 16, 4], strides = [1, 1, 1]} : vector<16x16x4xf32> to vector<1x16x4xf32>
    %185 = vector.extract_strided_slice %182 {offsets = [4, 0, 0], sizes = [1, 16, 4], strides = [1, 1, 1]} : vector<16x16x4xf32> to vector<1x16x4xf32>
    %186 = vector.extract_strided_slice %182 {offsets = [6, 0, 0], sizes = [1, 16, 4], strides = [1, 1, 1]} : vector<16x16x4xf32> to vector<1x16x4xf32>
    %187 = vector.extract_strided_slice %182 {offsets = [8, 0, 0], sizes = [1, 16, 4], strides = [1, 1, 1]} : vector<16x16x4xf32> to vector<1x16x4xf32>
    %188 = vector.extract_strided_slice %182 {offsets = [10, 0, 0], sizes = [1, 16, 4], strides = [1, 1, 1]} : vector<16x16x4xf32> to vector<1x16x4xf32>
    %189 = vector.extract_strided_slice %182 {offsets = [12, 0, 0], sizes = [1, 16, 4], strides = [1, 1, 1]} : vector<16x16x4xf32> to vector<1x16x4xf32>
    %190 = vector.extract_strided_slice %182 {offsets = [14, 0, 0], sizes = [1, 16, 4], strides = [1, 1, 1]} : vector<16x16x4xf32> to vector<1x16x4xf32>
    %191 = tpu.concatenate %183, %184, %185, %186, %187, %188, %189, %190 in 0 : vector<1x16x4xf32>, vector<1x16x4xf32>, vector<1x16x4xf32>, vector<1x16x4xf32>, vector<1x16x4xf32>, vector<1x16x4xf32>, vector<1x16x4xf32>, vector<1x16x4xf32> -> vector<8x16x4xf32>
    %192 = vector.extract_strided_slice %191 {offsets = [0, 0, 0], sizes = [8, 1, 4], strides = [1, 1, 1]} : vector<8x16x4xf32> to vector<8x1x4xf32>
    %193 = vector.extract_strided_slice %191 {offsets = [0, 2, 0], sizes = [8, 1, 4], strides = [1, 1, 1]} : vector<8x16x4xf32> to vector<8x1x4xf32>
    %194 = vector.extract_strided_slice %191 {offsets = [0, 4, 0], sizes = [8, 1, 4], strides = [1, 1, 1]} : vector<8x16x4xf32> to vector<8x1x4xf32>
    %195 = vector.extract_strided_slice %191 {offsets = [0, 6, 0], sizes = [8, 1, 4], strides = [1, 1, 1]} : vector<8x16x4xf32> to vector<8x1x4xf32>
    %196 = vector.extract_strided_slice %191 {offsets = [0, 8, 0], sizes = [8, 1, 4], strides = [1, 1, 1]} : vector<8x16x4xf32> to vector<8x1x4xf32>
    %197 = vector.extract_strided_slice %191 {offsets = [0, 10, 0], sizes = [8, 1, 4], strides = [1, 1, 1]} : vector<8x16x4xf32> to vector<8x1x4xf32>
    %198 = vector.extract_strided_slice %191 {offsets = [0, 12, 0], sizes = [8, 1, 4], strides = [1, 1, 1]} : vector<8x16x4xf32> to vector<8x1x4xf32>
    %199 = vector.extract_strided_slice %191 {offsets = [0, 14, 0], sizes = [8, 1, 4], strides = [1, 1, 1]} : vector<8x16x4xf32> to vector<8x1x4xf32>
    %200 = tpu.concatenate %192, %193, %194, %195, %196, %197, %198, %199 in 1 : vector<8x1x4xf32>, vector<8x1x4xf32>, vector<8x1x4xf32>, vector<8x1x4xf32>, vector<8x1x4xf32>, vector<8x1x4xf32>, vector<8x1x4xf32>, vector<8x1x4xf32> -> vector<8x8x4xf32>
    %201 = vector.shape_cast %200 : vector<8x8x4xf32> to vector<64x4xf32>
    %c0_42 = arith.constant 0 : index
    %c0_43 = arith.constant 0 : index
    %202 = vector.load %arg6[%c0_42, %c0_43] : memref<4x8xf32, #tpu.memory_space<vmem>>, vector<4x8xf32>
    %cst_44 = arith.constant dense<0.000000e+00> : vector<64x8xf32>
    %203 = tpu.matmul %201, %202, %cst_44 {dimension_numbers = #tpu.dot_dimension_numbers<[1], [0], [0], [1], [0, 0, 1, 1], [], []>} : vector<64x4xf32>, vector<4x8xf32>, vector<64x8xf32> -> vector<64x8xf32>
    %c0_45 = arith.constant 0 : index
    %c0_46 = arith.constant 0 : index
    %204 = vector.load %arg7[%c0_45, %c0_46] : memref<1x8xf32, #tpu.memory_space<vmem>>, vector<1x8xf32>
    %205 = vector.broadcast %204 : vector<1x8xf32> to vector<64x8xf32>
    %206 = arith.addf %203, %205 : vector<64x8xf32>
    %207 = vector.shape_cast %206 : vector<64x8xf32> to vector<8x8x8xf32>
    %208 = arith.addf %180, %207 : vector<8x8x8xf32>
    %209 = vector.shape_cast %208 : vector<8x8x8xf32> to vector<1x8x8x8xf32>
    %c0_47 = arith.constant 0 : index
    %c0_48 = arith.constant 0 : index
    %c0_49 = arith.constant 0 : index
    %c0_50 = arith.constant 0 : index
    %210 = vector.load %arg8[%c0_47, %c0_48, %c0_49, %c0_50] : memref<1x8x8x8xf32, #tpu.memory_space<vmem>>, vector<1x8x8x8xf32>
    tpu.vector_store %arg8[%c0_47, %c0_48, %c0_49, %c0_50], %209 {strides = array<i32>} : memref<1x8x8x8xf32, #tpu.memory_space<vmem>>, vector<1x8x8x8xf32>,
    return
  }
  func.func @transform_0(%arg0: i32) -> (i32, i32, i32, i32) {
    %c0_i32 = arith.constant 0 : i32
    %c0_i32_0 = arith.constant 0 : i32
    %c0_i32_1 = arith.constant 0 : i32
    %c0_i32_2 = arith.constant 0 : i32
    return %arg0, %c0_i32, %c0_i32_0, %c0_i32_1 : i32, i32, i32, i32
  }
  func.func @transform_1(%arg0: i32) -> (i32, i32) {
    %c0_i32 = arith.constant 0 : i32
    %c0_i32_0 = arith.constant 0 : i32
    %c0_i32_1 = arith.constant 0 : i32
    return %c0_i32, %c0_i32_0 : i32, i32
  }
  func.func @transform_2(%arg0: i32) -> (i32, i32) {
    %c0_i32 = arith.constant 0 : i32
    %c0_i32_0 = arith.constant 0 : i32
    %c0_i32_1 = arith.constant 0 : i32
    return %c0_i32, %c0_i32_0 : i32, i32
  }
  func.func @transform_3(%arg0: i32) -> (i32, i32) {
    %c0_i32 = arith.constant 0 : i32
    %c0_i32_0 = arith.constant 0 : i32
    %c0_i32_1 = arith.constant 0 : i32
    return %c0_i32, %c0_i32_0 : i32, i32
  }
  func.func @transform_4(%arg0: i32) -> (i32, i32) {
    %c0_i32 = arith.constant 0 : i32
    %c0_i32_0 = arith.constant 0 : i32
    %c0_i32_1 = arith.constant 0 : i32
    return %c0_i32, %c0_i32_0 : i32, i32
  }
  func.func @transform_5(%arg0: i32) -> (i32, i32) {
    %c0_i32 = arith.constant 0 : i32
    %c0_i32_0 = arith.constant 0 : i32
    %c0_i32_1 = arith.constant 0 : i32
    return %c0_i32, %c0_i32_0 : i32, i32
  }
  func.func @transform_6(%arg0: i32) -> (i32, i32) {
    %c0_i32 = arith.constant 0 : i32
    %c0_i32_0 = arith.constant 0 : i32
    %c0_i32_1 = arith.constant 0 : i32
    return %c0_i32, %c0_i32_0 : i32, i32
  }
  func.func @transform_7(%arg0: i32) -> (i32, i32, i32, i32) {
    %c0_i32 = arith.constant 0 : i32
    %c0_i32_0 = arith.constant 0 : i32
    %c0_i32_1 = arith.constant 0 : i32
    %c0_i32_2 = arith.constant 0 : i32
    return %arg0, %c0_i32, %c0_i32_0, %c0_i32_1 : i32, i32, i32, i32
  }
}

</mosaic_0001>

<llo_original>
// kernel: tpu_custom_call.1
$region0: #{tpu_custom_call.1}
  #allocation0 [shape = 'u32[]', space=smem, size = 0x4, offset = 0x4, fixed_abs, tag = 'smem constant byte address 0x4 - core index']
  #allocation1 [shape = 'u32[72,128]{1,0:T(1,128)}', space=vmem, size = 0x9000, scoped, tag = 'internal scratch']
  %s0 = inlined_call_operand.vmem [shape: f32[2,16,16,4], index: 0, kind: input, shape index: {}]
  %s1 = inlined_call_operand.vmem [shape: f32[36,8], index: 1, kind: input, shape index: {}]
  %s2 = inlined_call_operand.vmem [shape: f32[1,8], index: 2, kind: input, shape index: {}]
  %s3 = inlined_call_operand.vmem [shape: f32[72,8], index: 3, kind: input, shape index: {}]
  %s4 = inlined_call_operand.vmem [shape: f32[1,8], index: 4, kind: input, shape index: {}]
  %s5 = inlined_call_operand.vmem [shape: f32[4,8], index: 5, kind: input, shape index: {}]
  %s6 = inlined_call_operand.vmem [shape: f32[1,8], index: 6, kind: input, shape index: {}]
  %s7 = inlined_call_operand.hbm [shape: f32[2,8,8,8], index: 7, kind: output, shape index: {}]
  %s8 = sld [smem:[#allocation0]]
  $region61: #{tpu_custom_call.1} parent=0
    _
  %s10 = ssub.s32 1, %s8
  %s11 = scalar_select 0, %s10, %s8
  $region1: #{tpu_custom_call.1} parent=0
    #allocation2 [shape = 'u8[65536]{0}', space=vmem, size = 0x10000, scoped, tag = 'output window, operand 0']
    #allocation3 [shape = 's32[2]{0}', space=sflag, size = 0x8, scoped, tag = 'scoped memory for tpu_custom_call.1']
    %12 = vsyncpa [#allocation3], 0
    %s13 = scalar_lea.sflag [#allocation3], 1
    %14 = vsyncpa %s13, 0
    loop: start=0, step=1, limit=4
    $region2: #{tpu_custom_call.1} parent=1 // loop_pre_header
      _
    $region3: #{tpu_custom_call.1} parent=1 // loop_header
      %s16 = sphi 0, %s20
      %p17 = scmp.ge.s32.totalorder %s16, 4
      %s26 = sphi 0, %s28
      %s29 = sphi 0, %s26
      %s30 = sphi 0, %s29
      %s46 = sphi 0, %s30
      %s50 = sphi 0, %s50
      %s52 = sphi 0, %s50
      %s53 = sphi 0, %s52
      %s67 = sphi 0, %s53
      %s71 = sphi 0, %s71
      %s73 = sphi 0, %s71
      %s74 = sphi 0, %s73
      %s88 = sphi 0, %s74
      %s92 = sphi 0, %s92
      %s94 = sphi 0, %s92
      %s95 = sphi 0, %s94
      %s109 = sphi 0, %s95
      %s113 = sphi 0, %s113
      %s115 = sphi 0, %s113
      %s116 = sphi 0, %s115
      %s130 = sphi 0, %s116
      %s134 = sphi 0, %s134
      %s136 = sphi 0, %s134
      %s137 = sphi 0, %s136
      %s151 = sphi 0, %s137
      %s155 = sphi 0, %s155
      %s157 = sphi 0, %s155
      %s158 = sphi 0, %s157
      %s172 = sphi 0, %s158
      %s178 = sphi 0, %s180
      %s181 = sphi 0, %s178
      %s182 = sphi 0, %s181
      %s198 = sphi 0, %s182
    $region4: #{tpu_custom_call.1} parent=1 // loop_header_branch
      %19 = sbr.rel (%p17) target = $region8
    $region5: #{tpu_custom_call.1} parent=1 // loop_body
      %s21 = ssub.s32 %s16, 1
      %s22 = ssub.s32 %s16, 2
      %s23 = sadd.s32 %s16, 1
      %s24 = ssub.s32 %s16, %s23
      %p25 = scmp.eq.s32.totalorder %s24, 0
      %s27 = sadd.s32 %s26, 1
      %s28 = scalar_select %p25, %s26, %s27
      %p31 = pneg %p25
      %p32 = scmp.eq.s32.totalorder %s16, 1
      %p33 = por %p31, %p32
      %p34 = scmp.ne.s32.totalorder %s26, %s29
      %p35 = scmp.eq.s32.totalorder %s16, 0
      %p36 = por %p34, %p35
      %p37 = scmp.ne.s32.totalorder %s26, %s29
      %p38 = scmp.eq.s32.totalorder %s21, 1
      %p39 = por %p37, %p38
      %p40 = scmp.ne.s32.totalorder %s29, %s30
      %p41 = scmp.eq.s32.totalorder %s21, 0
      %p42 = por %p40, %p41
      %p43 = scmp.ne.s32.totalorder %s29, %s30
      %p44 = scmp.eq.s32.totalorder %s22, 1
      %p45 = por %p43, %p44
      %p47 = scmp.ne.s32.totalorder %s30, %s46
      %p48 = scmp.eq.s32.totalorder %s22, 0
      %p49 = por %p47, %p48
      %s51 = sadd.s32 %s50, 1
      %p54 = scmp.eq.s32.totalorder %s16, 1
      %p55 = scmp.ne.s32.totalorder %s50, %s52
      %p56 = scmp.eq.s32.totalorder %s16, 0
      %p57 = por %p55, %p56
      %p58 = scmp.ne.s32.totalorder %s50, %s52
      %p59 = scmp.eq.s32.totalorder %s21, 1
      %p60 = por %p58, %p59
      %p61 = scmp.ne.s32.totalorder %s52, %s53
      %p62 = scmp.eq.s32.totalorder %s21, 0
      %p63 = por %p61, %p62
      %p64 = scmp.ne.s32.totalorder %s52, %s53
      %p65 = scmp.eq.s32.totalorder %s22, 1
      %p66 = por %p64, %p65
      %p68 = scmp.ne.s32.totalorder %s53, %s67
      %p69 = scmp.eq.s32.totalorder %s22, 0
      %p70 = por %p68, %p69
      %s72 = sadd.s32 %s71, 1
      %p75 = scmp.eq.s32.totalorder %s16, 1
      %p76 = scmp.ne.s32.totalorder %s71, %s73
      %p77 = scmp.eq.s32.totalorder %s16, 0
      %p78 = por %p76, %p77
      %p79 = scmp.ne.s32.totalorder %s71, %s73
      %p80 = scmp.eq.s32.totalorder %s21, 1
      %p81 = por %p79, %p80
      %p82 = scmp.ne.s32.totalorder %s73, %s74
      %p83 = scmp.eq.s32.totalorder %s21, 0
      %p84 = por %p82, %p83
      %p85 = scmp.ne.s32.totalorder %s73, %s74
      %p86 = scmp.eq.s32.totalorder %s22, 1
      %p87 = por %p85, %p86
      %p89 = scmp.ne.s32.totalorder %s74, %s88
      %p90 = scmp.eq.s32.totalorder %s22, 0
      %p91 = por %p89, %p90
      %s93 = sadd.s32 %s92, 1
      %p96 = scmp.eq.s32.totalorder %s16, 1
      %p97 = scmp.ne.s32.totalorder %s92, %s94
      %p98 = scmp.eq.s32.totalorder %s16, 0
      %p99 = por %p97, %p98
      %p100 = scmp.ne.s32.totalorder %s92, %s94
      %p101 = scmp.eq.s32.totalorder %s21, 1
      %p102 = por %p100, %p101
      %p103 = scmp.ne.s32.totalorder %s94, %s95
      %p104 = scmp.eq.s32.totalorder %s21, 0
      %p105 = por %p103, %p104
      %p106 = scmp.ne.s32.totalorder %s94, %s95
      %p107 = scmp.eq.s32.totalorder %s22, 1
      %p108 = por %p106, %p107
      %p110 = scmp.ne.s32.totalorder %s95, %s109
      %p111 = scmp.eq.s32.totalorder %s22, 0
      %p112 = por %p110, %p111
      %s114 = sadd.s32 %s113, 1
      %p117 = scmp.eq.s32.totalorder %s16, 1
      %p118 = scmp.ne.s32.totalorder %s113, %s115
      %p119 = scmp.eq.s32.totalorder %s16, 0
      %p120 = por %p118, %p119
      %p121 = scmp.ne.s32.totalorder %s113, %s115
      %p122 = scmp.eq.s32.totalorder %s21, 1
      %p123 = por %p121, %p122
      %p124 = scmp.ne.s32.totalorder %s115, %s116
      %p125 = scmp.eq.s32.totalorder %s21, 0
      %p126 = por %p124, %p125
      %p127 = scmp.ne.s32.totalorder %s115, %s116
      %p128 = scmp.eq.s32.totalorder %s22, 1
      %p129 = por %p127, %p128
      %p131 = scmp.ne.s32.totalorder %s116, %s130
      %p132 = scmp.eq.s32.totalorder %s22, 0
      %p133 = por %p131, %p132
      %s135 = sadd.s32 %s134, 1
      %p138 = scmp.eq.s32.totalorder %s16, 1
      %p139 = scmp.ne.s32.totalorder %s134, %s136
      %p140 = scmp.eq.s32.totalorder %s16, 0
      %p141 = por %p139, %p140
      %p142 = scmp.ne.s32.totalorder %s134, %s136
      %p143 = scmp.eq.s32.totalorder %s21, 1
      %p144 = por %p142, %p143
      %p145 = scmp.ne.s32.totalorder %s136, %s137
      %p146 = scmp.eq.s32.totalorder %s21, 0
      %p147 = por %p145, %p146
      %p148 = scmp.ne.s32.totalorder %s136, %s137
      %p149 = scmp.eq.s32.totalorder %s22, 1
      %p150 = por %p148, %p149
      %p152 = scmp.ne.s32.totalorder %s137, %s151
      %p153 = scmp.eq.s32.totalorder %s22, 0
      %p154 = por %p152, %p153
      %s156 = sadd.s32 %s155, 1
      %p159 = scmp.eq.s32.totalorder %s16, 1
      %p160 = scmp.ne.s32.totalorder %s155, %s157
      %p161 = scmp.eq.s32.totalorder %s16, 0
      %p162 = por %p160, %p161
      %p163 = scmp.ne.s32.totalorder %s155, %s157
      %p164 = scmp.eq.s32.totalorder %s21, 1
      %p165 = por %p163, %p164
      %p166 = scmp.ne.s32.totalorder %s157, %s158
      %p167 = scmp.eq.s32.totalorder %s21, 0
      %p168 = por %p166, %p167
      %p169 = scmp.ne.s32.totalorder %s157, %s158
      %p170 = scmp.eq.s32.totalorder %s22, 1
      %p171 = por %p169, %p170
      %p173 = scmp.ne.s32.totalorder %s158, %s172
      %p174 = scmp.eq.s32.totalorder %s22, 0
      %p175 = por %p173, %p174
      %s176 = ssub.s32 %s16, %s23
      %p177 = scmp.eq.s32.totalorder %s176, 0
      %s179 = sadd.s32 %s178, 1
      %s180 = scalar_select %p177, %s178, %s179
      %p183 = pneg %p177
      %p184 = scmp.eq.s32.totalorder %s16, 1
      %p185 = por %p183, %p184
      %p186 = scmp.ne.s32.totalorder %s178, %s181
      %p187 = scmp.eq.s32.totalorder %s16, 0
      %p188 = por %p186, %p187
      %p189 = scmp.ne.s32.totalorder %s178, %s181
      %p190 = scmp.eq.s32.totalorder %s21, 1
      %p191 = por %p189, %p190
      %p192 = scmp.ne.s32.totalorder %s181, %s182
      %p193 = scmp.eq.s32.totalorder %s21, 0
      %p194 = por %p192, %p193
      %p195 = scmp.ne.s32.totalorder %s181, %s182
      %p196 = scmp.eq.s32.totalorder %s22, 1
      %p197 = por %p195, %p196
      %p199 = scmp.ne.s32.totalorder %s182, %s198
      %p200 = scmp.eq.s32.totalorder %s22, 0
      %p201 = por %p199, %p200
      %p202 = scmp.le.s32.totalorder 1, %s16
      %p203 = scmp.lt.s32.totalorder %s16, 3
      %p204 = pnand %p202, %p203
      %p205 = pneg %p204
      // Predicated region
      $region9: #{tpu_custom_call.1} parent=5 // pred_check
        _
      $region10: #{tpu_custom_call.1} parent=5 // pred_check_branch
        %207 = sbr.rel (%p204) target = $region12
      $region11: #{tpu_custom_call.1} parent=5 // pred_region
        %s208 = ssub.s32 %s16, 1
        // Predicated region
        $region13: #{tpu_custom_call.1} parent=11 // pred_check
          %p209 = pneg %p63
        $region14: #{tpu_custom_call.1} parent=11 // pred_check_branch
          %211 = sbr.rel (%p209) target = $region16
        $region15: #{tpu_custom_call.1} parent=11 // pred_region
          _
        $region16: #{tpu_custom_call.1} parent=11 // pred_fallthru
          _
        // Predicated region
        $region17: #{tpu_custom_call.1} parent=11 // pred_check
          %p212 = pneg %p84
        $region18: #{tpu_custom_call.1} parent=11 // pred_check_branch
          %214 = sbr.rel (%p212) target = $region20
        $region19: #{tpu_custom_call.1} parent=11 // pred_region
          _
        $region20: #{tpu_custom_call.1} parent=11 // pred_fallthru
          _
        // Predicated region
        $region21: #{tpu_custom_call.1} parent=11 // pred_check
          %p215 = pneg %p105
        $region22: #{tpu_custom_call.1} parent=11 // pred_check_branch
          %217 = sbr.rel (%p215) target = $region24
        $region23: #{tpu_custom_call.1} parent=11 // pred_region
          _
        $region24: #{tpu_custom_call.1} parent=11 // pred_fallthru
          _
        // Predicated region
        $region25: #{tpu_custom_call.1} parent=11 // pred_check
          %p218 = pneg %p126
        $region26: #{tpu_custom_call.1} parent=11 // pred_check_branch
          %220 = sbr.rel (%p218) target = $region28
        $region27: #{tpu_custom_call.1} parent=11 // pred_region
          _
        $region28: #{tpu_custom_call.1} parent=11 // pred_fallthru
          _
        // Predicated region
        $region29: #{tpu_custom_call.1} parent=11 // pred_check
          %p221 = pneg %p147
        $region30: #{tpu_custom_call.1} parent=11 // pred_check_branch
          %223 = sbr.rel (%p221) target = $region32
        $region31: #{tpu_custom_call.1} parent=11 // pred_region
          _
        $region32: #{tpu_custom_call.1} parent=11 // pred_fallthru
          _
        // Predicated region
        $region33: #{tpu_custom_call.1} parent=11 // pred_check
          %p224 = pneg %p168
        $region34: #{tpu_custom_call.1} parent=11 // pred_check_branch
          %226 = sbr.rel (%p224) target = $region36
        $region35: #{tpu_custom_call.1} parent=11 // pred_region
          _
        $region36: #{tpu_custom_call.1} parent=11 // pred_fallthru
          _
      $region12: #{tpu_custom_call.1} parent=5 // pred_fallthru
        _
      %p227 = scmp.lt.s32.totalorder %s16, 2
      // Predicated region
      $region37: #{tpu_custom_call.1} parent=5 // pred_check
        %p228 = pneg %p227
      $region38: #{tpu_custom_call.1} parent=5 // pred_check_branch
        %230 = sbr.rel (%p228) target = $region40
      $region39: #{tpu_custom_call.1} parent=5 // pred_region
        // Predicated region
        $region41: #{tpu_custom_call.1} parent=39 // pred_check
          %p231 = pneg %p36
        $region42: #{tpu_custom_call.1} parent=39 // pred_check_branch
          %233 = sbr.rel (%p231) target = $region44
        $region43: #{tpu_custom_call.1} parent=39 // pred_region
          %p234 = scmp.lt.s32.totalorder %s16, 1
          %s235 = scalar_select %p234, %s16, 1
          %s236 = smul.addr %s235, 32
          %s237 = smul.addr %s236, 8
          %s238 = scalar_lea.vmem %s0, %s237
        $region44: #{tpu_custom_call.1} parent=39 // pred_fallthru
          _
      $region40: #{tpu_custom_call.1} parent=5 // pred_fallthru
        _
      %p239 = scmp.le.s32.totalorder 1, %s16
      %p240 = scmp.lt.s32.totalorder %s16, 3
      %p241 = pnand %p239, %p240
      %p242 = pneg %p241
      // Predicated region
      $region45: #{tpu_custom_call.1} parent=5 // pred_check
        _
      $region46: #{tpu_custom_call.1} parent=5 // pred_check_branch
        %244 = sbr.rel (%p241) target = $region48
      $region47: #{tpu_custom_call.1} parent=5 // pred_region
        %s245 = ssub.s32 %s16, 1
        %p246 = scmp.lt.s32.totalorder %s21, 1
        %s247 = scalar_select %p246, %s21, 1
        %s248 = smul.addr %s247, 32
        %s249 = smul.addr %s248, 8
        %s250 = scalar_lea.vmem %s0, %s249
        %p251 = pneg %p42
        %p252 = pneg %p39
        %p253 = pneg %p63
        %p254 = pneg %p60
        %p255 = pneg %p84
        %p256 = pneg %p81
        %p257 = pneg %p105
        %p258 = pneg %p102
        %p259 = pneg %p126
        %p260 = pneg %p123
        %p261 = pneg %p147
        %p262 = pneg %p144
        %p263 = pneg %p168
        %p264 = pneg %p165
        %p265 = pneg %p194
        %p266 = pneg %p191
        %s267 = sand.u32 %s181, 1
        %s268 = scalar_lea.sflag [#allocation3], %s267
        %s269 = sand.u32 %s181, 1
        %s270 = smul.addr %s269, 64
        %s271 = scalar_lea.vmem [#allocation2], %s270
        %p272 = scmp.lt.s32.totalorder %s21, 1
        %s273 = scalar_select %p272, %s21, 1
        %s274 = smul.addr %s273, 32
        %s275 = smul.addr %s274, 8
        %s276 = scalar_lea.vmem %s0, %s275
        %v277 = vld [vmem:[%s276] sm:$0xff]
        %v278 = vld [vmem:[%s276 + $0x8] sm:$0xff]
        %v279 = vld [vmem:[%s276 + $0x10] sm:$0xff]
        %v280 = vld [vmem:[%s276 + $0x18] sm:$0xff]
        %v281 = vld [vmem:[%s276 + $0x20] sm:$0xff]
        %v282 = vld [vmem:[%s276 + $0x28] sm:$0xff]
        %v283 = vld [vmem:[%s276 + $0x30] sm:$0xff]
        %v284 = vld [vmem:[%s276 + $0x38] sm:$0xff]
        %v285 = vld [vmem:[%s276 + $0x40] sm:$0xff]
        %v286 = vld [vmem:[%s276 + $0x48] sm:$0xff]
        %v287 = vld [vmem:[%s276 + $0x50] sm:$0xff]
        %v288 = vld [vmem:[%s276 + $0x58] sm:$0xff]
        %v289 = vld [vmem:[%s276 + $0x60] sm:$0xff]
        %v290 = vld [vmem:[%s276 + $0x68] sm:$0xff]
        %v291 = vld [vmem:[%s276 + $0x70] sm:$0xff]
        %v292 = vld [vmem:[%s276 + $0x78] sm:$0xff]
        %v293 = vld [vmem:[%s276 + $0x80] sm:$0xff]
        %v294 = vld [vmem:[%s276 + $0x88] sm:$0xff]
        %v295 = vld [vmem:[%s276 + $0x90] sm:$0xff]
        %v296 = vld [vmem:[%s276 + $0x98] sm:$0xff]
        %v297 = vld [vmem:[%s276 + $0xa0] sm:$0xff]
        %v298 = vld [vmem:[%s276 + $0xa8] sm:$0xff]
        %v299 = vld [vmem:[%s276 + $0xb0] sm:$0xff]
        %v300 = vld [vmem:[%s276 + $0xb8] sm:$0xff]
        %v301 = vld [vmem:[%s276 + $0xc0] sm:$0xff]
        %v302 = vld [vmem:[%s276 + $0xc8] sm:$0xff]
        %v303 = vld [vmem:[%s276 + $0xd0] sm:$0xff]
        %v304 = vld [vmem:[%s276 + $0xd8] sm:$0xff]
        %v305 = vld [vmem:[%s276 + $0xe0] sm:$0xff]
        %v306 = vld [vmem:[%s276 + $0xe8] sm:$0xff]
        %v307 = vld [vmem:[%s276 + $0xf0] sm:$0xff]
        %v308 = vld [vmem:[%s276 + $0xf8] sm:$0xff]
        %v309 = vld [vmem:[%s2] sm:$0x1]
        %v310 = vmax.f32 %v277, 0.0
        %v311 = vmax.f32 %v278, 0.0
        %v312 = vmax.f32 %v279, 0.0
        %v313 = vmax.f32 %v280, 0.0
        %v314 = vmax.f32 %v281, 0.0
        %v315 = vmax.f32 %v282, 0.0
        %v316 = vmax.f32 %v283, 0.0
        %v317 = vmax.f32 %v284, 0.0
        %v318 = vmax.f32 %v285, 0.0
        %v319 = vmax.f32 %v286, 0.0
        %v320 = vmax.f32 %v287, 0.0
        %v321 = vmax.f32 %v288, 0.0
        %v322 = vmax.f32 %v289, 0.0
        %v323 = vmax.f32 %v290, 0.0
        %v324 = vmax.f32 %v291, 0.0
        %v325 = vmax.f32 %v292, 0.0
        %v326 = vmax.f32 %v293, 0.0
        %v327 = vmax.f32 %v294, 0.0
        %v328 = vmax.f32 %v295, 0.0
        %v329 = vmax.f32 %v296, 0.0
        %v330 = vmax.f32 %v297, 0.0
        %v331 = vmax.f32 %v298, 0.0
        %v332 = vmax.f32 %v299, 0.0
        %v333 = vmax.f32 %v300, 0.0
        %v334 = vmax.f32 %v301, 0.0
        %v335 = vmax.f32 %v302, 0.0
        %v336 = vmax.f32 %v303, 0.0
        %v337 = vmax.f32 %v304, 0.0
        %v338 = vmax.f32 %v305, 0.0
        %v339 = vmax.f32 %v306, 0.0
        %v340 = vmax.f32 %v307, 0.0
        %v341 = vmax.f32 %v308, 0.0
        %vm374 = vcmask 1040384
        %v375 = vrot.slane %v310, 7
        %v376 = vrot.slane %v311, 7
        %v377 = vsel %vm374, %v375, %v376
        %v378 = vrot.slane %v312, 7
        %v379 = vrot.slane %v313, 7
        %v380 = vsel %vm374, %v378, %v379
        %v381 = vrot.slane %v314, 7
        %v382 = vrot.slane %v315, 7
        %v383 = vsel %vm374, %v381, %v382
        %v384 = vrot.slane %v316, 7
        %v385 = vrot.slane %v317, 7
        %v386 = vsel %vm374, %v384, %v385
        %v387 = vrot.slane %v318, 7
        %v388 = vrot.slane %v319, 7
        %v389 = vsel %vm374, %v387, %v388
        %v390 = vrot.slane %v320, 7
        %v391 = vrot.slane %v321, 7
        %v392 = vsel %vm374, %v390, %v391
        %v393 = vrot.slane %v322, 7
        %v394 = vrot.slane %v323, 7
        %v395 = vsel %vm374, %v393, %v394
        %v396 = vrot.slane %v324, 7
        %v397 = vrot.slane %v325, 7
        %v398 = vsel %vm374, %v396, %v397
        %v399 = vrot.slane %v326, 7
        %v400 = vrot.slane %v327, 7
        %v401 = vsel %vm374, %v399, %v400
        %v402 = vrot.slane %v328, 7
        %v403 = vrot.slane %v329, 7
        %v404 = vsel %vm374, %v402, %v403
        %v405 = vrot.slane %v330, 7
        %v406 = vrot.slane %v331, 7
        %v407 = vsel %vm374, %v405, %v406
        %v408 = vrot.slane %v332, 7
        %v409 = vrot.slane %v333, 7
        %v410 = vsel %vm374, %v408, %v409
        %v411 = vrot.slane %v334, 7
        %v412 = vrot.slane %v335, 7
        %v413 = vsel %vm374, %v411, %v412
        %v414 = vrot.slane %v336, 7
        %v415 = vrot.slane %v337, 7
        %v416 = vsel %vm374, %v414, %v415
        %v417 = vrot.slane %v338, 7
        %v418 = vrot.slane %v339, 7
        %v419 = vsel %vm374, %v417, %v418
        %v420 = vrot.slane %v340, 7
        %v421 = vrot.slane %v341, 7
        %v422 = vsel %vm374, %v420, %v421
        %v455 = vsel %vm374, 0.0, %v375
        %v456 = vsel %vm374, 0.0, %v378
        %v457 = vsel %vm374, 0.0, %v381
        %v458 = vsel %vm374, 0.0, %v384
        %v459 = vsel %vm374, 0.0, %v387
        %v460 = vsel %vm374, 0.0, %v390
        %v461 = vsel %vm374, 0.0, %v393
        %v462 = vsel %vm374, 0.0, %v396
        %v463 = vsel %vm374, 0.0, %v399
        %v464 = vsel %vm374, 0.0, %v402
        %v465 = vsel %vm374, 0.0, %v405
        %v466 = vsel %vm374, 0.0, %v408
        %v467 = vsel %vm374, 0.0, %v411
        %v468 = vsel %vm374, 0.0, %v414
        %v469 = vsel %vm374, 0.0, %v417
        %v470 = vsel %vm374, 0.0, %v420
        %v471 = vsel %vm374, %v376, 0.0
        %v472 = vsel %vm374, %v379, 0.0
        %v473 = vsel %vm374, %v382, 0.0
        %v474 = vsel %vm374, %v385, 0.0
        %v475 = vsel %vm374, %v388, 0.0
        %v476 = vsel %vm374, %v391, 0.0
        %v477 = vsel %vm374, %v394, 0.0
        %v478 = vsel %vm374, %v397, 0.0
        %v479 = vsel %vm374, %v400, 0.0
        %v480 = vsel %vm374, %v403, 0.0
        %v481 = vsel %vm374, %v406, 0.0
        %v482 = vsel %vm374, %v409, 0.0
        %v483 = vsel %vm374, %v412, 0.0
        %v484 = vsel %vm374, %v415, 0.0
        %v485 = vsel %vm374, %v418, 0.0
        %v486 = vsel %vm374, %v421, 0.0
        %v487 = vld [vmem:[%s1] sm:$0xff]
        %v488 = vld [vmem:[%s1 + $0x8] sm:$0xff]
        %v489 = vld [vmem:[%s1 + $0x10] sm:$0xff]
        %v490 = vld [vmem:[%s1 + $0x18] sm:$0xff]
        %v491 = vld [vmem:[%s1 + $0x20] sm:$0xf]
        %vm523 = vcmask 1046528
        %v524 = vrot.slane 0.0, 1
        %v525 = vsel %vm523, %v524, %v524
        %v526 = vrot.slane %v455, 1
        %v527 = vrot.slane %v377, 1
        %v528 = vsel %vm523, %v526, %v527
        %v529 = vrot.slane %v471, 1
        %v530 = vsel %vm523, %v527, %v529
        %v531 = vrot.slane %v456, 1
        %v532 = vrot.slane %v380, 1
        %v533 = vsel %vm523, %v531, %v532
        %v534 = vrot.slane %v472, 1
        %v535 = vsel %vm523, %v532, %v534
        %v536 = vrot.slane %v457, 1
        %v537 = vrot.slane %v383, 1
        %v538 = vsel %vm523, %v536, %v537
        %v539 = vrot.slane %v473, 1
        %v540 = vsel %vm523, %v537, %v539
        %v541 = vrot.slane %v458, 1
        %v542 = vrot.slane %v386, 1
        %v543 = vsel %vm523, %v541, %v542
        %v544 = vrot.slane %v474, 1
        %v545 = vsel %vm523, %v542, %v544
        %v546 = vrot.slane %v459, 1
        %v547 = vrot.slane %v389, 1
        %v548 = vsel %vm523, %v546, %v547
        %v549 = vrot.slane %v475, 1
        %v550 = vsel %vm523, %v547, %v549
        %v551 = vrot.slane %v460, 1
        %v552 = vrot.slane %v392, 1
        %v553 = vsel %vm523, %v551, %v552
        %v554 = vrot.slane %v476, 1
        %v555 = vsel %vm523, %v552, %v554
        %v556 = vrot.slane %v461, 1
        %v557 = vrot.slane %v395, 1
        %v558 = vsel %vm523, %v556, %v557
        %v559 = vrot.slane %v477, 1
        %v560 = vsel %vm523, %v557, %v559
        %v561 = vrot.slane %v462, 1
        %v562 = vrot.slane %v398, 1
        %v563 = vsel %vm523, %v561, %v562
        %v564 = vrot.slane %v478, 1
        %v565 = vsel %vm523, %v562, %v564
        %v566 = vrot.slane %v463, 1
        %v567 = vrot.slane %v401, 1
        %v568 = vsel %vm523, %v566, %v567
        %v569 = vrot.slane %v479, 1
        %v570 = vsel %vm523, %v567, %v569
        %v571 = vrot.slane %v464, 1
        %v572 = vrot.slane %v404, 1
        %v573 = vsel %vm523, %v571, %v572
        %v574 = vrot.slane %v480, 1
        %v575 = vsel %vm523, %v572, %v574
        %v576 = vrot.slane %v465, 1
        %v577 = vrot.slane %v407, 1
        %v578 = vsel %vm523, %v576, %v577
        %v579 = vrot.slane %v481, 1
        %v580 = vsel %vm523, %v577, %v579
        %v581 = vrot.slane %v466, 1
        %v582 = vrot.slane %v410, 1
        %v583 = vsel %vm523, %v581, %v582
        %v584 = vrot.slane %v482, 1
        %v585 = vsel %vm523, %v582, %v584
        %v586 = vrot.slane %v467, 1
        %v587 = vrot.slane %v413, 1
        %v588 = vsel %vm523, %v586, %v587
        %v589 = vrot.slane %v483, 1
        %v590 = vsel %vm523, %v587, %v589
        %v591 = vrot.slane %v468, 1
        %v592 = vrot.slane %v416, 1
        %v593 = vsel %vm523, %v591, %v592
        %v594 = vrot.slane %v484, 1
        %v595 = vsel %vm523, %v592, %v594
        %v596 = vrot.slane %v469, 1
        %v597 = vrot.slane %v419, 1
        %v598 = vsel %vm523, %v596, %v597
        %v599 = vrot.slane %v485, 1
        %v600 = vsel %vm523, %v597, %v599
        %v602 = vrot.slane %v487, 4
        %vm603 = vcmask 31744
        %v604 = vsel %vm603, %v525, 0
        %v606 = vsel %vm603, %v528, 0
        %v608 = vsel %vm603, %v530, 0
        %v610 = vsel %vm603, %v533, 0
        %v612 = vsel %vm603, %v535, 0
        %v614 = vsel %vm603, %v538, 0
        %v616 = vsel %vm603, %v540, 0
        %v618 = vsel %vm603, %v543, 0
        %v620 = vsel %vm603, %v545, 0
        %v622 = vsel %vm603, %v548, 0
        %v624 = vsel %vm603, %v550, 0
        %v626 = vsel %vm603, %v553, 0
        %v628 = vsel %vm603, %v555, 0
        %v630 = vsel %vm603, %v558, 0
        %v632 = vsel %vm603, %v560, 0
        %v634 = vsel %vm603, %v563, 0
        %v636 = vsel %vm603, %v565, 0
        %v638 = vsel %vm603, %v568, 0
        %v640 = vsel %vm603, %v570, 0
        %v642 = vsel %vm603, %v573, 0
        %v644 = vsel %vm603, %v575, 0
        %v646 = vsel %vm603, %v578, 0
        %v648 = vsel %vm603, %v580, 0
        %v650 = vsel %vm603, %v583, 0
        %v652 = vsel %vm603, %v585, 0
        %v654 = vsel %vm603, %v588, 0
        %v656 = vsel %vm603, %v590, 0
        %v658 = vsel %vm603, %v593, 0
        %v660 = vsel %vm603, %v595, 0
        %v662 = vsel %vm603, %v598, 0
        %v664 = vsel %vm603, %v600, 0
        %vm666 = vcmask 1043456
        %v667 = vsel %vm666, %v602, 0
        %669 = vmatpush.msra.mxu0 0.0
        %670 = vmatpush.msra.mxu0 0.0
        %671 = vmatpush.msra.mxu0 0.0
        %672 = vmatpush.msra.mxu0 0.0
        %673 = vmatpush.msra.mxu0 0.0
        %674 = vmatpush.msra.mxu0 0.0
        %675 = vmatpush.msra.mxu0 0.0
        %676 = vmatpush.msra.mxu0 0.0
        %677 = vmatpush.msra.mxu0 0.0
        %678 = vmatpush.msra.mxu0 0.0
        %679 = vmatpush.msra.mxu0 0.0
        %680 = vmatpush.msra.mxu0 0.0
        %681 = vmatpush.msra.mxu0 0.0
        %682 = vmatpush.msra.mxu0 0.0
        %683 = vmatpush.msra.mxu0 0.0
        %684 = vmatpush.msra.mxu0 %v667
        %685 = vmatmul.f32.gmra.mxu0 %v604
        %v686 = vpop.f32.mrf.mxu0
        %v687 = vadd.f32 0.0, %v686
        %688 = vmatmul.f32.gmra.mxu0 %v604
        %v689 = vpop.f32.mrf.mxu0
        %v690 = vadd.f32 0.0, %v689
        %691 = vmatmul.f32.gmra.mxu0 %v606
        %v692 = vpop.f32.mrf.mxu0
        %v693 = vadd.f32 0.0, %v692
        %694 = vmatmul.f32.gmra.mxu0 %v608
        %v695 = vpop.f32.mrf.mxu0
        %v696 = vadd.f32 0.0, %v695
        %697 = vmatmul.f32.gmra.mxu0 %v610
        %v698 = vpop.f32.mrf.mxu0
        %v699 = vadd.f32 0.0, %v698
        %700 = vmatmul.f32.gmra.mxu0 %v612
        %v701 = vpop.f32.mrf.mxu0
        %v702 = vadd.f32 0.0, %v701
        %703 = vmatmul.f32.gmra.mxu0 %v614
        %v704 = vpop.f32.mrf.mxu0
        %v705 = vadd.f32 0.0, %v704
        %706 = vmatmul.f32.gmra.mxu0 %v616
        %v707 = vpop.f32.mrf.mxu0
        %v708 = vadd.f32 0.0, %v707
        %709 = vmatmul.f32.gmra.mxu0 %v618
        %v710 = vpop.f32.mrf.mxu0
        %v711 = vadd.f32 0.0, %v710
        %712 = vmatmul.f32.gmra.mxu0 %v620
        %v713 = vpop.f32.mrf.mxu0
        %v714 = vadd.f32 0.0, %v713
        %715 = vmatmul.f32.gmra.mxu0 %v622
        %v716 = vpop.f32.mrf.mxu0
        %v717 = vadd.f32 0.0, %v716
        %718 = vmatmul.f32.gmra.mxu0 %v624
        %v719 = vpop.f32.mrf.mxu0
        %v720 = vadd.f32 0.0, %v719
        %721 = vmatmul.f32.gmra.mxu0 %v626
        %v722 = vpop.f32.mrf.mxu0
        %v723 = vadd.f32 0.0, %v722
        %724 = vmatmul.f32.gmra.mxu0 %v628
        %v725 = vpop.f32.mrf.mxu0
        %v726 = vadd.f32 0.0, %v725
        %727 = vmatmul.f32.gmra.mxu0 %v630
        %v728 = vpop.f32.mrf.mxu0
        %v729 = vadd.f32 0.0, %v728
        %730 = vmatmul.f32.gmra.mxu0 %v632
        %v731 = vpop.f32.mrf.mxu0
        %v732 = vadd.f32 0.0, %v731
        %733 = vmatmul.f32.gmra.mxu0 %v634
        %v734 = vpop.f32.mrf.mxu0
        %v735 = vadd.f32 0.0, %v734
        %736 = vmatmul.f32.gmra.mxu0 %v636
        %v737 = vpop.f32.mrf.mxu0
        %v738 = vadd.f32 0.0, %v737
        %739 = vmatmul.f32.gmra.mxu0 %v638
        %v740 = vpop.f32.mrf.mxu0
        %v741 = vadd.f32 0.0, %v740
        %742 = vmatmul.f32.gmra.mxu0 %v640
        %v743 = vpop.f32.mrf.mxu0
        %v744 = vadd.f32 0.0, %v743
        %745 = vmatmul.f32.gmra.mxu0 %v642
        %v746 = vpop.f32.mrf.mxu0
        %v747 = vadd.f32 0.0, %v746
        %748 = vmatmul.f32.gmra.mxu0 %v644
        %v749 = vpop.f32.mrf.mxu0
        %v750 = vadd.f32 0.0, %v749
        %751 = vmatmul.f32.gmra.mxu0 %v646
        %v752 = vpop.f32.mrf.mxu0
        %v753 = vadd.f32 0.0, %v752
        %754 = vmatmul.f32.gmra.mxu0 %v648
        %v755 = vpop.f32.mrf.mxu0
        %v756 = vadd.f32 0.0, %v755
        %757 = vmatmul.f32.gmra.mxu0 %v650
        %v758 = vpop.f32.mrf.mxu0
        %v759 = vadd.f32 0.0, %v758
        %760 = vmatmul.f32.gmra.mxu0 %v652
        %v761 = vpop.f32.mrf.mxu0
        %v762 = vadd.f32 0.0, %v761
        %763 = vmatmul.f32.gmra.mxu0 %v654
        %v764 = vpop.f32.mrf.mxu0
        %v765 = vadd.f32 0.0, %v764
        %766 = vmatmul.f32.gmra.mxu0 %v656
        %v767 = vpop.f32.mrf.mxu0
        %v768 = vadd.f32 0.0, %v767
        %769 = vmatmul.f32.gmra.mxu0 %v658
        %v770 = vpop.f32.mrf.mxu0
        %v771 = vadd.f32 0.0, %v770
        %772 = vmatmul.f32.gmra.mxu0 %v660
        %v773 = vpop.f32.mrf.mxu0
        %v774 = vadd.f32 0.0, %v773
        %775 = vmatmul.f32.gmra.mxu0 %v662
        %v776 = vpop.f32.mrf.mxu0
        %v777 = vadd.f32 0.0, %v776
        %778 = vmatmul.f32.gmra.mxu0 %v664
        %v779 = vpop.f32.mrf.mxu0
        %v780 = vadd.f32 0.0, %v779
        %781 = vdwg.mxu0
        %v782 = vsel %vm603, 0.0, 0
        %v784 = vsel %vm603, %v455, 0
        %v786 = vsel %vm603, %v377, 0
        %v788 = vsel %vm603, %v456, 0
        %v790 = vsel %vm603, %v380, 0
        %v792 = vsel %vm603, %v457, 0
        %v794 = vsel %vm603, %v383, 0
        %v796 = vsel %vm603, %v458, 0
        %v798 = vsel %vm603, %v386, 0
        %v800 = vsel %vm603, %v459, 0
        %v802 = vsel %vm603, %v389, 0
        %v804 = vsel %vm603, %v460, 0
        %v806 = vsel %vm603, %v392, 0
        %v808 = vsel %vm603, %v461, 0
        %v810 = vsel %vm603, %v395, 0
        %v812 = vsel %vm603, %v462, 0
        %v814 = vsel %vm603, %v398, 0
        %v816 = vsel %vm603, %v463, 0
        %v818 = vsel %vm603, %v401, 0
        %v820 = vsel %vm603, %v464, 0
        %v822 = vsel %vm603, %v404, 0
        %v824 = vsel %vm603, %v465, 0
        %v826 = vsel %vm603, %v407, 0
        %v828 = vsel %vm603, %v466, 0
        %v830 = vsel %vm603, %v410, 0
        %v832 = vsel %vm603, %v467, 0
        %v834 = vsel %vm603, %v413, 0
        %v836 = vsel %vm603, %v468, 0
        %v838 = vsel %vm603, %v416, 0
        %v840 = vsel %vm603, %v469, 0
        %v842 = vsel %vm603, %v419, 0
        %v844 = vsel %vm666, %v487, 0
        %846 = vmatpush.msra.mxu0 0.0
        %847 = vmatpush.msra.mxu0 0.0
        %848 = vmatpush.msra.mxu0 0.0
        %849 = vmatpush.msra.mxu0 0.0
        %850 = vmatpush.msra.mxu0 0.0
        %851 = vmatpush.msra.mxu0 0.0
        %852 = vmatpush.msra.mxu0 0.0
        %853 = vmatpush.msra.mxu0 0.0
        %854 = vmatpush.msra.mxu0 0.0
        %855 = vmatpush.msra.mxu0 0.0
        %856 = vmatpush.msra.mxu0 0.0
        %857 = vmatpush.msra.mxu0 0.0
        %858 = vmatpush.msra.mxu0 0.0
        %859 = vmatpush.msra.mxu0 0.0
        %860 = vmatpush.msra.mxu0 0.0
        %861 = vmatpush.msra.mxu0 %v844
        %862 = vmatmul.f32.gmra.mxu0 %v782
        %v863 = vpop.f32.mrf.mxu0
        %v864 = vadd.f32 %v687, %v863
        %865 = vmatmul.f32.gmra.mxu0 %v782
        %v866 = vpop.f32.mrf.mxu0
        %v867 = vadd.f32 %v690, %v866
        %868 = vmatmul.f32.gmra.mxu0 %v784
        %v869 = vpop.f32.mrf.mxu0
        %v870 = vadd.f32 %v693, %v869
        %871 = vmatmul.f32.gmra.mxu0 %v786
        %v872 = vpop.f32.mrf.mxu0
        %v873 = vadd.f32 %v696, %v872
        %874 = vmatmul.f32.gmra.mxu0 %v788
        %v875 = vpop.f32.mrf.mxu0
        %v876 = vadd.f32 %v699, %v875
        %877 = vmatmul.f32.gmra.mxu0 %v790
        %v878 = vpop.f32.mrf.mxu0
        %v879 = vadd.f32 %v702, %v878
        %880 = vmatmul.f32.gmra.mxu0 %v792
        %v881 = vpop.f32.mrf.mxu0
        %v882 = vadd.f32 %v705, %v881
        %883 = vmatmul.f32.gmra.mxu0 %v794
        %v884 = vpop.f32.mrf.mxu0
        %v885 = vadd.f32 %v708, %v884
        %886 = vmatmul.f32.gmra.mxu0 %v796
        %v887 = vpop.f32.mrf.mxu0
        %v888 = vadd.f32 %v711, %v887
        %889 = vmatmul.f32.gmra.mxu0 %v798
        %v890 = vpop.f32.mrf.mxu0
        %v891 = vadd.f32 %v714, %v890
        %892 = vmatmul.f32.gmra.mxu0 %v800
        %v893 = vpop.f32.mrf.mxu0
        %v894 = vadd.f32 %v717, %v893
        %895 = vmatmul.f32.gmra.mxu0 %v802
        %v896 = vpop.f32.mrf.mxu0
        %v897 = vadd.f32 %v720, %v896
        %898 = vmatmul.f32.gmra.mxu0 %v804
        %v899 = vpop.f32.mrf.mxu0
        %v900 = vadd.f32 %v723, %v899
        %901 = vmatmul.f32.gmra.mxu0 %v806
        %v902 = vpop.f32.mrf.mxu0
        %v903 = vadd.f32 %v726, %v902
        %904 = vmatmul.f32.gmra.mxu0 %v808
        %v905 = vpop.f32.mrf.mxu0
        %v906 = vadd.f32 %v729, %v905
        %907 = vmatmul.f32.gmra.mxu0 %v810
        %v908 = vpop.f32.mrf.mxu0
        %v909 = vadd.f32 %v732, %v908
        %910 = vmatmul.f32.gmra.mxu0 %v812
        %v911 = vpop.f32.mrf.mxu0
        %v912 = vadd.f32 %v735, %v911
        %913 = vmatmul.f32.gmra.mxu0 %v814
        %v914 = vpop.f32.mrf.mxu0
        %v915 = vadd.f32 %v738, %v914
        %916 = vmatmul.f32.gmra.mxu0 %v816
        %v917 = vpop.f32.mrf.mxu0
        %v918 = vadd.f32 %v741, %v917
        %919 = vmatmul.f32.gmra.mxu0 %v818
        %v920 = vpop.f32.mrf.mxu0
        %v921 = vadd.f32 %v744, %v920
        %922 = vmatmul.f32.gmra.mxu0 %v820
        %v923 = vpop.f32.mrf.mxu0
        %v924 = vadd.f32 %v747, %v923
        %925 = vmatmul.f32.gmra.mxu0 %v822
        %v926 = vpop.f32.mrf.mxu0
        %v927 = vadd.f32 %v750, %v926
        %928 = vmatmul.f32.gmra.mxu0 %v824
        %v929 = vpop.f32.mrf.mxu0
        %v930 = vadd.f32 %v753, %v929
        %931 = vmatmul.f32.gmra.mxu0 %v826
        %v932 = vpop.f32.mrf.mxu0
        %v933 = vadd.f32 %v756, %v932
        %934 = vmatmul.f32.gmra.mxu0 %v828
        %v935 = vpop.f32.mrf.mxu0
        %v936 = vadd.f32 %v759, %v935
        %937 = vmatmul.f32.gmra.mxu0 %v830
        %v938 = vpop.f32.mrf.mxu0
        %v939 = vadd.f32 %v762, %v938
        %940 = vmatmul.f32.gmra.mxu0 %v832
        %v941 = vpop.f32.mrf.mxu0
        %v942 = vadd.f32 %v765, %v941
        %943 = vmatmul.f32.gmra.mxu0 %v834
        %v944 = vpop.f32.mrf.mxu0
        %v945 = vadd.f32 %v768, %v944
        %946 = vmatmul.f32.gmra.mxu0 %v836
        %v947 = vpop.f32.mrf.mxu0
        %v948 = vadd.f32 %v771, %v947
        %949 = vmatmul.f32.gmra.mxu0 %v838
        %v950 = vpop.f32.mrf.mxu0
        %v951 = vadd.f32 %v774, %v950
        %952 = vmatmul.f32.gmra.mxu0 %v840
        %v953 = vpop.f32.mrf.mxu0
        %v954 = vadd.f32 %v777, %v953
        %955 = vmatmul.f32.gmra.mxu0 %v842
        %v956 = vpop.f32.mrf.mxu0
        %v957 = vadd.f32 %v780, %v956
        %958 = vdwg.mxu0
        %vm959 = vcmask 1045504
        %v960 = vrot.slane 0.0, 2
        %v961 = vsel %vm959, %v960, %v960
        %v962 = vrot.slane %v455, 2
        %v963 = vrot.slane %v377, 2
        %v964 = vsel %vm959, %v962, %v963
        %v965 = vrot.slane %v471, 2
        %v966 = vsel %vm959, %v963, %v965
        %v967 = vrot.slane %v456, 2
        %v968 = vrot.slane %v380, 2
        %v969 = vsel %vm959, %v967, %v968
        %v970 = vrot.slane %v472, 2
        %v971 = vsel %vm959, %v968, %v970
        %v972 = vrot.slane %v457, 2
        %v973 = vrot.slane %v383, 2
        %v974 = vsel %vm959, %v972, %v973
        %v975 = vrot.slane %v473, 2
        %v976 = vsel %vm959, %v973, %v975
        %v977 = vrot.slane %v458, 2
        %v978 = vrot.slane %v386, 2
        %v979 = vsel %vm959, %v977, %v978
        %v980 = vrot.slane %v474, 2
        %v981 = vsel %vm959, %v978, %v980
        %v982 = vrot.slane %v459, 2
        %v983 = vrot.slane %v389, 2
        %v984 = vsel %vm959, %v982, %v983
        %v985 = vrot.slane %v475, 2
        %v986 = vsel %vm959, %v983, %v985
        %v987 = vrot.slane %v460, 2
        %v988 = vrot.slane %v392, 2
        %v989 = vsel %vm959, %v987, %v988
        %v990 = vrot.slane %v476, 2
        %v991 = vsel %vm959, %v988, %v990
        %v992 = vrot.slane %v461, 2
        %v993 = vrot.slane %v395, 2
        %v994 = vsel %vm959, %v992, %v993
        %v995 = vrot.slane %v477, 2
        %v996 = vsel %vm959, %v993, %v995
        %v997 = vrot.slane %v462, 2
        %v998 = vrot.slane %v398, 2
        %v999 = vsel %vm959, %v997, %v998
        %v1000 = vrot.slane %v478, 2
        %v1001 = vsel %vm959, %v998, %v1000
        %v1002 = vrot.slane %v463, 2
        %v1003 = vrot.slane %v401, 2
        %v1004 = vsel %vm959, %v1002, %v1003
        %v1005 = vrot.slane %v479, 2
        %v1006 = vsel %vm959, %v1003, %v1005
        %v1007 = vrot.slane %v464, 2
        %v1008 = vrot.slane %v404, 2
        %v1009 = vsel %vm959, %v1007, %v1008
        %v1010 = vrot.slane %v480, 2
        %v1011 = vsel %vm959, %v1008, %v1010
        %v1012 = vrot.slane %v465, 2
        %v1013 = vrot.slane %v407, 2
        %v1014 = vsel %vm959, %v1012, %v1013
        %v1015 = vrot.slane %v481, 2
        %v1016 = vsel %vm959, %v1013, %v1015
        %v1017 = vrot.slane %v466, 2
        %v1018 = vrot.slane %v410, 2
        %v1019 = vsel %vm959, %v1017, %v1018
        %v1020 = vrot.slane %v482, 2
        %v1021 = vsel %vm959, %v1018, %v1020
        %v1022 = vrot.slane %v467, 2
        %v1023 = vrot.slane %v413, 2
        %v1024 = vsel %vm959, %v1022, %v1023
        %v1025 = vrot.slane %v483, 2
        %v1026 = vsel %vm959, %v1023, %v1025
        %v1027 = vrot.slane %v468, 2
        %v1028 = vrot.slane %v416, 2
        %v1029 = vsel %vm959, %v1027, %v1028
        %v1030 = vrot.slane %v484, 2
        %v1031 = vsel %vm959, %v1028, %v1030
        %v1032 = vrot.slane %v469, 2
        %v1033 = vrot.slane %v419, 2
        %v1034 = vsel %vm959, %v1032, %v1033
        %v1035 = vrot.slane %v485, 2
        %v1036 = vsel %vm959, %v1033, %v1035
        %v1037 = vsel %vm603, %v961, 0
        %v1039 = vsel %vm603, %v964, 0
        %v1041 = vsel %vm603, %v966, 0
        %v1043 = vsel %vm603, %v969, 0
        %v1045 = vsel %vm603, %v971, 0
        %v1047 = vsel %vm603, %v974, 0
        %v1049 = vsel %vm603, %v976, 0
        %v1051 = vsel %vm603, %v979, 0
        %v1053 = vsel %vm603, %v981, 0
        %v1055 = vsel %vm603, %v984, 0
        %v1057 = vsel %vm603, %v986, 0
        %v1059 = vsel %vm603, %v989, 0
        %v1061 = vsel %vm603, %v991, 0
        %v1063 = vsel %vm603, %v994, 0
        %v1065 = vsel %vm603, %v996, 0
        %v1067 = vsel %vm603, %v999, 0
        %v1069 = vsel %vm603, %v1001, 0
        %v1071 = vsel %vm603, %v1004, 0
        %v1073 = vsel %vm603, %v1006, 0
        %v1075 = vsel %vm603, %v1009, 0
        %v1077 = vsel %vm603, %v1011, 0
        %v1079 = vsel %vm603, %v1014, 0
        %v1081 = vsel %vm603, %v1016, 0
        %v1083 = vsel %vm603, %v1019, 0
        %v1085 = vsel %vm603, %v1021, 0
        %v1087 = vsel %vm603, %v1024, 0
        %v1089 = vsel %vm603, %v1026, 0
        %v1091 = vsel %vm603, %v1029, 0
        %v1093 = vsel %vm603, %v1031, 0
        %v1095 = vsel %vm603, %v1034, 0
        %v1097 = vsel %vm603, %v1036, 0
        %v1100 = vsel %vm666, %v488, 0
        %1102 = vmatpush.msra.mxu0 0.0
        %1103 = vmatpush.msra.mxu0 0.0
        %1104 = vmatpush.msra.mxu0 0.0
        %1105 = vmatpush.msra.mxu0 0.0
        %1106 = vmatpush.msra.mxu0 0.0
        %1107 = vmatpush.msra.mxu0 0.0
        %1108 = vmatpush.msra.mxu0 0.0
        %1109 = vmatpush.msra.mxu0 0.0
        %1110 = vmatpush.msra.mxu0 0.0
        %1111 = vmatpush.msra.mxu0 0.0
        %1112 = vmatpush.msra.mxu0 0.0
        %1113 = vmatpush.msra.mxu0 0.0
        %1114 = vmatpush.msra.mxu0 0.0
        %1115 = vmatpush.msra.mxu0 0.0
        %1116 = vmatpush.msra.mxu0 0.0
        %1117 = vmatpush.msra.mxu0 %v1100
        %1118 = vmatmul.f32.gmra.mxu0 %v1037
        %v1119 = vpop.f32.mrf.mxu0
        %v1120 = vadd.f32 0.0, %v1119
        %1121 = vmatmul.f32.gmra.mxu0 %v1037
        %v1122 = vpop.f32.mrf.mxu0
        %v1123 = vadd.f32 0.0, %v1122
        %1124 = vmatmul.f32.gmra.mxu0 %v1039
        %v1125 = vpop.f32.mrf.mxu0
        %v1126 = vadd.f32 0.0, %v1125
        %1127 = vmatmul.f32.gmra.mxu0 %v1041
        %v1128 = vpop.f32.mrf.mxu0
        %v1129 = vadd.f32 0.0, %v1128
        %1130 = vmatmul.f32.gmra.mxu0 %v1043
        %v1131 = vpop.f32.mrf.mxu0
        %v1132 = vadd.f32 0.0, %v1131
        %1133 = vmatmul.f32.gmra.mxu0 %v1045
        %v1134 = vpop.f32.mrf.mxu0
        %v1135 = vadd.f32 0.0, %v1134
        %1136 = vmatmul.f32.gmra.mxu0 %v1047
        %v1137 = vpop.f32.mrf.mxu0
        %v1138 = vadd.f32 0.0, %v1137
        %1139 = vmatmul.f32.gmra.mxu0 %v1049
        %v1140 = vpop.f32.mrf.mxu0
        %v1141 = vadd.f32 0.0, %v1140
        %1142 = vmatmul.f32.gmra.mxu0 %v1051
        %v1143 = vpop.f32.mrf.mxu0
        %v1144 = vadd.f32 0.0, %v1143
        %1145 = vmatmul.f32.gmra.mxu0 %v1053
        %v1146 = vpop.f32.mrf.mxu0
        %v1147 = vadd.f32 0.0, %v1146
        %1148 = vmatmul.f32.gmra.mxu0 %v1055
        %v1149 = vpop.f32.mrf.mxu0
        %v1150 = vadd.f32 0.0, %v1149
        %1151 = vmatmul.f32.gmra.mxu0 %v1057
        %v1152 = vpop.f32.mrf.mxu0
        %v1153 = vadd.f32 0.0, %v1152
        %1154 = vmatmul.f32.gmra.mxu0 %v1059
        %v1155 = vpop.f32.mrf.mxu0
        %v1156 = vadd.f32 0.0, %v1155
        %1157 = vmatmul.f32.gmra.mxu0 %v1061
        %v1158 = vpop.f32.mrf.mxu0
        %v1159 = vadd.f32 0.0, %v1158
        %1160 = vmatmul.f32.gmra.mxu0 %v1063
        %v1161 = vpop.f32.mrf.mxu0
        %v1162 = vadd.f32 0.0, %v1161
        %1163 = vmatmul.f32.gmra.mxu0 %v1065
        %v1164 = vpop.f32.mrf.mxu0
        %v1165 = vadd.f32 0.0, %v1164
        %1166 = vmatmul.f32.gmra.mxu0 %v1067
        %v1167 = vpop.f32.mrf.mxu0
        %v1168 = vadd.f32 0.0, %v1167
        %1169 = vmatmul.f32.gmra.mxu0 %v1069
        %v1170 = vpop.f32.mrf.mxu0
        %v1171 = vadd.f32 0.0, %v1170
        %1172 = vmatmul.f32.gmra.mxu0 %v1071
        %v1173 = vpop.f32.mrf.mxu0
        %v1174 = vadd.f32 0.0, %v1173
        %1175 = vmatmul.f32.gmra.mxu0 %v1073
        %v1176 = vpop.f32.mrf.mxu0
        %v1177 = vadd.f32 0.0, %v1176
        %1178 = vmatmul.f32.gmra.mxu0 %v1075
        %v1179 = vpop.f32.mrf.mxu0
        %v1180 = vadd.f32 0.0, %v1179
        %1181 = vmatmul.f32.gmra.mxu0 %v1077
        %v1182 = vpop.f32.mrf.mxu0
        %v1183 = vadd.f32 0.0, %v1182
        %1184 = vmatmul.f32.gmra.mxu0 %v1079
        %v1185 = vpop.f32.mrf.mxu0
        %v1186 = vadd.f32 0.0, %v1185
        %1187 = vmatmul.f32.gmra.mxu0 %v1081
        %v1188 = vpop.f32.mrf.mxu0
        %v1189 = vadd.f32 0.0, %v1188
        %1190 = vmatmul.f32.gmra.mxu0 %v1083
        %v1191 = vpop.f32.mrf.mxu0
        %v1192 = vadd.f32 0.0, %v1191
        %1193 = vmatmul.f32.gmra.mxu0 %v1085
        %v1194 = vpop.f32.mrf.mxu0
        %v1195 = vadd.f32 0.0, %v1194
        %1196 = vmatmul.f32.gmra.mxu0 %v1087
        %v1197 = vpop.f32.mrf.mxu0
        %v1198 = vadd.f32 0.0, %v1197
        %1199 = vmatmul.f32.gmra.mxu0 %v1089
        %v1200 = vpop.f32.mrf.mxu0
        %v1201 = vadd.f32 0.0, %v1200
        %1202 = vmatmul.f32.gmra.mxu0 %v1091
        %v1203 = vpop.f32.mrf.mxu0
        %v1204 = vadd.f32 0.0, %v1203
        %1205 = vmatmul.f32.gmra.mxu0 %v1093
        %v1206 = vpop.f32.mrf.mxu0
        %v1207 = vadd.f32 0.0, %v1206
        %1208 = vmatmul.f32.gmra.mxu0 %v1095
        %v1209 = vpop.f32.mrf.mxu0
        %v1210 = vadd.f32 0.0, %v1209
        %1211 = vmatmul.f32.gmra.mxu0 %v1097
        %v1212 = vpop.f32.mrf.mxu0
        %v1213 = vadd.f32 0.0, %v1212
        %1214 = vdwg.mxu0
        %v1215 = vadd.f32 %v864, %v1120
        %v1216 = vadd.f32 %v867, %v1123
        %v1217 = vadd.f32 %v870, %v1126
        %v1218 = vadd.f32 %v873, %v1129
        %v1219 = vadd.f32 %v876, %v1132
        %v1220 = vadd.f32 %v879, %v1135
        %v1221 = vadd.f32 %v882, %v1138
        %v1222 = vadd.f32 %v885, %v1141
        %v1223 = vadd.f32 %v888, %v1144
        %v1224 = vadd.f32 %v891, %v1147
        %v1225 = vadd.f32 %v894, %v1150
        %v1226 = vadd.f32 %v897, %v1153
        %v1227 = vadd.f32 %v900, %v1156
        %v1228 = vadd.f32 %v903, %v1159
        %v1229 = vadd.f32 %v906, %v1162
        %v1230 = vadd.f32 %v909, %v1165
        %v1231 = vadd.f32 %v912, %v1168
        %v1232 = vadd.f32 %v915, %v1171
        %v1233 = vadd.f32 %v918, %v1174
        %v1234 = vadd.f32 %v921, %v1177
        %v1235 = vadd.f32 %v924, %v1180
        %v1236 = vadd.f32 %v927, %v1183
        %v1237 = vadd.f32 %v930, %v1186
        %v1238 = vadd.f32 %v933, %v1189
        %v1239 = vadd.f32 %v936, %v1192
        %v1240 = vadd.f32 %v939, %v1195
        %v1241 = vadd.f32 %v942, %v1198
        %v1242 = vadd.f32 %v945, %v1201
        %v1243 = vadd.f32 %v948, %v1204
        %v1244 = vadd.f32 %v951, %v1207
        %v1245 = vadd.f32 %v954, %v1210
        %v1246 = vadd.f32 %v957, %v1213
        %v1247 = vrot.slane %v488, 4
        %v1249 = vsel %vm603, %v470, 0
        %v1251 = vsel %vm603, %v422, 0
        %v1253 = vsel %vm666, %v1247, 0
        %1255 = vmatpush.msra.mxu0 0.0
        %1256 = vmatpush.msra.mxu0 0.0
        %1257 = vmatpush.msra.mxu0 0.0
        %1258 = vmatpush.msra.mxu0 0.0
        %1259 = vmatpush.msra.mxu0 0.0
        %1260 = vmatpush.msra.mxu0 0.0
        %1261 = vmatpush.msra.mxu0 0.0
        %1262 = vmatpush.msra.mxu0 0.0
        %1263 = vmatpush.msra.mxu0 0.0
        %1264 = vmatpush.msra.mxu0 0.0
        %1265 = vmatpush.msra.mxu0 0.0
        %1266 = vmatpush.msra.mxu0 0.0
        %1267 = vmatpush.msra.mxu0 0.0
        %1268 = vmatpush.msra.mxu0 0.0
        %1269 = vmatpush.msra.mxu0 0.0
        %1270 = vmatpush.msra.mxu0 %v1253
        %1271 = vmatmul.f32.gmra.mxu0 %v784
        %v1272 = vpop.f32.mrf.mxu0
        %v1273 = vadd.f32 0.0, %v1272
        %1274 = vmatmul.f32.gmra.mxu0 %v786
        %v1275 = vpop.f32.mrf.mxu0
        %v1276 = vadd.f32 0.0, %v1275
        %1277 = vmatmul.f32.gmra.mxu0 %v788
        %v1278 = vpop.f32.mrf.mxu0
        %v1279 = vadd.f32 0.0, %v1278
        %1280 = vmatmul.f32.gmra.mxu0 %v790
        %v1281 = vpop.f32.mrf.mxu0
        %v1282 = vadd.f32 0.0, %v1281
        %1283 = vmatmul.f32.gmra.mxu0 %v792
        %v1284 = vpop.f32.mrf.mxu0
        %v1285 = vadd.f32 0.0, %v1284
        %1286 = vmatmul.f32.gmra.mxu0 %v794
        %v1287 = vpop.f32.mrf.mxu0
        %v1288 = vadd.f32 0.0, %v1287
        %1289 = vmatmul.f32.gmra.mxu0 %v796
        %v1290 = vpop.f32.mrf.mxu0
        %v1291 = vadd.f32 0.0, %v1290
        %1292 = vmatmul.f32.gmra.mxu0 %v798
        %v1293 = vpop.f32.mrf.mxu0
        %v1294 = vadd.f32 0.0, %v1293
        %1295 = vmatmul.f32.gmra.mxu0 %v800
        %v1296 = vpop.f32.mrf.mxu0
        %v1297 = vadd.f32 0.0, %v1296
        %1298 = vmatmul.f32.gmra.mxu0 %v802
        %v1299 = vpop.f32.mrf.mxu0
        %v1300 = vadd.f32 0.0, %v1299
        %1301 = vmatmul.f32.gmra.mxu0 %v804
        %v1302 = vpop.f32.mrf.mxu0
        %v1303 = vadd.f32 0.0, %v1302
        %1304 = vmatmul.f32.gmra.mxu0 %v806
        %v1305 = vpop.f32.mrf.mxu0
        %v1306 = vadd.f32 0.0, %v1305
        %1307 = vmatmul.f32.gmra.mxu0 %v808
        %v1308 = vpop.f32.mrf.mxu0
        %v1309 = vadd.f32 0.0, %v1308
        %1310 = vmatmul.f32.gmra.mxu0 %v810
        %v1311 = vpop.f32.mrf.mxu0
        %v1312 = vadd.f32 0.0, %v1311
        %1313 = vmatmul.f32.gmra.mxu0 %v812
        %v1314 = vpop.f32.mrf.mxu0
        %v1315 = vadd.f32 0.0, %v1314
        %1316 = vmatmul.f32.gmra.mxu0 %v814
        %v1317 = vpop.f32.mrf.mxu0
        %v1318 = vadd.f32 0.0, %v1317
        %1319 = vmatmul.f32.gmra.mxu0 %v816
        %v1320 = vpop.f32.mrf.mxu0
        %v1321 = vadd.f32 0.0, %v1320
        %1322 = vmatmul.f32.gmra.mxu0 %v818
        %v1323 = vpop.f32.mrf.mxu0
        %v1324 = vadd.f32 0.0, %v1323
        %1325 = vmatmul.f32.gmra.mxu0 %v820
        %v1326 = vpop.f32.mrf.mxu0
        %v1327 = vadd.f32 0.0, %v1326
        %1328 = vmatmul.f32.gmra.mxu0 %v822
        %v1329 = vpop.f32.mrf.mxu0
        %v1330 = vadd.f32 0.0, %v1329
        %1331 = vmatmul.f32.gmra.mxu0 %v824
        %v1332 = vpop.f32.mrf.mxu0
        %v1333 = vadd.f32 0.0, %v1332
        %1334 = vmatmul.f32.gmra.mxu0 %v826
        %v1335 = vpop.f32.mrf.mxu0
        %v1336 = vadd.f32 0.0, %v1335
        %1337 = vmatmul.f32.gmra.mxu0 %v828
        %v1338 = vpop.f32.mrf.mxu0
        %v1339 = vadd.f32 0.0, %v1338
        %1340 = vmatmul.f32.gmra.mxu0 %v830
        %v1341 = vpop.f32.mrf.mxu0
        %v1342 = vadd.f32 0.0, %v1341
        %1343 = vmatmul.f32.gmra.mxu0 %v832
        %v1344 = vpop.f32.mrf.mxu0
        %v1345 = vadd.f32 0.0, %v1344
        %1346 = vmatmul.f32.gmra.mxu0 %v834
        %v1347 = vpop.f32.mrf.mxu0
        %v1348 = vadd.f32 0.0, %v1347
        %1349 = vmatmul.f32.gmra.mxu0 %v836
        %v1350 = vpop.f32.mrf.mxu0
        %v1351 = vadd.f32 0.0, %v1350
        %1352 = vmatmul.f32.gmra.mxu0 %v838
        %v1353 = vpop.f32.mrf.mxu0
        %v1354 = vadd.f32 0.0, %v1353
        %1355 = vmatmul.f32.gmra.mxu0 %v840
        %v1356 = vpop.f32.mrf.mxu0
        %v1357 = vadd.f32 0.0, %v1356
        %1358 = vmatmul.f32.gmra.mxu0 %v842
        %v1359 = vpop.f32.mrf.mxu0
        %v1360 = vadd.f32 0.0, %v1359
        %1361 = vmatmul.f32.gmra.mxu0 %v1249
        %v1362 = vpop.f32.mrf.mxu0
        %v1363 = vadd.f32 0.0, %v1362
        %1364 = vmatmul.f32.gmra.mxu0 %v1251
        %v1365 = vpop.f32.mrf.mxu0
        %v1366 = vadd.f32 0.0, %v1365
        %1367 = vdwg.mxu0
        %v1368 = vadd.f32 %v1215, %v1273
        %v1369 = vadd.f32 %v1216, %v1276
        %v1370 = vadd.f32 %v1217, %v1279
        %v1371 = vadd.f32 %v1218, %v1282
        %v1372 = vadd.f32 %v1219, %v1285
        %v1373 = vadd.f32 %v1220, %v1288
        %v1374 = vadd.f32 %v1221, %v1291
        %v1375 = vadd.f32 %v1222, %v1294
        %v1376 = vadd.f32 %v1223, %v1297
        %v1377 = vadd.f32 %v1224, %v1300
        %v1378 = vadd.f32 %v1225, %v1303
        %v1379 = vadd.f32 %v1226, %v1306
        %v1380 = vadd.f32 %v1227, %v1309
        %v1381 = vadd.f32 %v1228, %v1312
        %v1382 = vadd.f32 %v1229, %v1315
        %v1383 = vadd.f32 %v1230, %v1318
        %v1384 = vadd.f32 %v1231, %v1321
        %v1385 = vadd.f32 %v1232, %v1324
        %v1386 = vadd.f32 %v1233, %v1327
        %v1387 = vadd.f32 %v1234, %v1330
        %v1388 = vadd.f32 %v1235, %v1333
        %v1389 = vadd.f32 %v1236, %v1336
        %v1390 = vadd.f32 %v1237, %v1339
        %v1391 = vadd.f32 %v1238, %v1342
        %v1392 = vadd.f32 %v1239, %v1345
        %v1393 = vadd.f32 %v1240, %v1348
        %v1394 = vadd.f32 %v1241, %v1351
        %v1395 = vadd.f32 %v1242, %v1354
        %v1396 = vadd.f32 %v1243, %v1357
        %v1397 = vadd.f32 %v1244, %v1360
        %v1398 = vadd.f32 %v1245, %v1363
        %v1399 = vadd.f32 %v1246, %v1366
        %v1401 = vrot.slane %v470, 1
        %v1402 = vrot.slane %v422, 1
        %v1403 = vsel %vm523, %v1401, %v1402
        %v1404 = vrot.slane %v486, 1
        %v1405 = vsel %vm523, %v1402, %v1404
        %v1406 = vsel %vm603, %v1403, 0
        %v1408 = vsel %vm603, %v1405, 0
        %v1411 = vsel %vm666, %v489, 0
        %1413 = vmatpush.msra.mxu0 0.0
        %1414 = vmatpush.msra.mxu0 0.0
        %1415 = vmatpush.msra.mxu0 0.0
        %1416 = vmatpush.msra.mxu0 0.0
        %1417 = vmatpush.msra.mxu0 0.0
        %1418 = vmatpush.msra.mxu0 0.0
        %1419 = vmatpush.msra.mxu0 0.0
        %1420 = vmatpush.msra.mxu0 0.0
        %1421 = vmatpush.msra.mxu0 0.0
        %1422 = vmatpush.msra.mxu0 0.0
        %1423 = vmatpush.msra.mxu0 0.0
        %1424 = vmatpush.msra.mxu0 0.0
        %1425 = vmatpush.msra.mxu0 0.0
        %1426 = vmatpush.msra.mxu0 0.0
        %1427 = vmatpush.msra.mxu0 0.0
        %1428 = vmatpush.msra.mxu0 %v1411
        %1429 = vmatmul.f32.gmra.mxu0 %v606
        %v1430 = vpop.f32.mrf.mxu0
        %v1431 = vadd.f32 0.0, %v1430
        %1432 = vmatmul.f32.gmra.mxu0 %v608
        %v1433 = vpop.f32.mrf.mxu0
        %v1434 = vadd.f32 0.0, %v1433
        %1435 = vmatmul.f32.gmra.mxu0 %v610
        %v1436 = vpop.f32.mrf.mxu0
        %v1437 = vadd.f32 0.0, %v1436
        %1438 = vmatmul.f32.gmra.mxu0 %v612
        %v1439 = vpop.f32.mrf.mxu0
        %v1440 = vadd.f32 0.0, %v1439
        %1441 = vmatmul.f32.gmra.mxu0 %v614
        %v1442 = vpop.f32.mrf.mxu0
        %v1443 = vadd.f32 0.0, %v1442
        %1444 = vmatmul.f32.gmra.mxu0 %v616
        %v1445 = vpop.f32.mrf.mxu0
        %v1446 = vadd.f32 0.0, %v1445
        %1447 = vmatmul.f32.gmra.mxu0 %v618
        %v1448 = vpop.f32.mrf.mxu0
        %v1449 = vadd.f32 0.0, %v1448
        %1450 = vmatmul.f32.gmra.mxu0 %v620
        %v1451 = vpop.f32.mrf.mxu0
        %v1452 = vadd.f32 0.0, %v1451
        %1453 = vmatmul.f32.gmra.mxu0 %v622
        %v1454 = vpop.f32.mrf.mxu0
        %v1455 = vadd.f32 0.0, %v1454
        %1456 = vmatmul.f32.gmra.mxu0 %v624
        %v1457 = vpop.f32.mrf.mxu0
        %v1458 = vadd.f32 0.0, %v1457
        %1459 = vmatmul.f32.gmra.mxu0 %v626
        %v1460 = vpop.f32.mrf.mxu0
        %v1461 = vadd.f32 0.0, %v1460
        %1462 = vmatmul.f32.gmra.mxu0 %v628
        %v1463 = vpop.f32.mrf.mxu0
        %v1464 = vadd.f32 0.0, %v1463
        %1465 = vmatmul.f32.gmra.mxu0 %v630
        %v1466 = vpop.f32.mrf.mxu0
        %v1467 = vadd.f32 0.0, %v1466
        %1468 = vmatmul.f32.gmra.mxu0 %v632
        %v1469 = vpop.f32.mrf.mxu0
        %v1470 = vadd.f32 0.0, %v1469
        %1471 = vmatmul.f32.gmra.mxu0 %v634
        %v1472 = vpop.f32.mrf.mxu0
        %v1473 = vadd.f32 0.0, %v1472
        %1474 = vmatmul.f32.gmra.mxu0 %v636
        %v1475 = vpop.f32.mrf.mxu0
        %v1476 = vadd.f32 0.0, %v1475
        %1477 = vmatmul.f32.gmra.mxu0 %v638
        %v1478 = vpop.f32.mrf.mxu0
        %v1479 = vadd.f32 0.0, %v1478
        %1480 = vmatmul.f32.gmra.mxu0 %v640
        %v1481 = vpop.f32.mrf.mxu0
        %v1482 = vadd.f32 0.0, %v1481
        %1483 = vmatmul.f32.gmra.mxu0 %v642
        %v1484 = vpop.f32.mrf.mxu0
        %v1485 = vadd.f32 0.0, %v1484
        %1486 = vmatmul.f32.gmra.mxu0 %v644
        %v1487 = vpop.f32.mrf.mxu0
        %v1488 = vadd.f32 0.0, %v1487
        %1489 = vmatmul.f32.gmra.mxu0 %v646
        %v1490 = vpop.f32.mrf.mxu0
        %v1491 = vadd.f32 0.0, %v1490
        %1492 = vmatmul.f32.gmra.mxu0 %v648
        %v1493 = vpop.f32.mrf.mxu0
        %v1494 = vadd.f32 0.0, %v1493
        %1495 = vmatmul.f32.gmra.mxu0 %v650
        %v1496 = vpop.f32.mrf.mxu0
        %v1497 = vadd.f32 0.0, %v1496
        %1498 = vmatmul.f32.gmra.mxu0 %v652
        %v1499 = vpop.f32.mrf.mxu0
        %v1500 = vadd.f32 0.0, %v1499
        %1501 = vmatmul.f32.gmra.mxu0 %v654
        %v1502 = vpop.f32.mrf.mxu0
        %v1503 = vadd.f32 0.0, %v1502
        %1504 = vmatmul.f32.gmra.mxu0 %v656
        %v1505 = vpop.f32.mrf.mxu0
        %v1506 = vadd.f32 0.0, %v1505
        %1507 = vmatmul.f32.gmra.mxu0 %v658
        %v1508 = vpop.f32.mrf.mxu0
        %v1509 = vadd.f32 0.0, %v1508
        %1510 = vmatmul.f32.gmra.mxu0 %v660
        %v1511 = vpop.f32.mrf.mxu0
        %v1512 = vadd.f32 0.0, %v1511
        %1513 = vmatmul.f32.gmra.mxu0 %v662
        %v1514 = vpop.f32.mrf.mxu0
        %v1515 = vadd.f32 0.0, %v1514
        %1516 = vmatmul.f32.gmra.mxu0 %v664
        %v1517 = vpop.f32.mrf.mxu0
        %v1518 = vadd.f32 0.0, %v1517
        %1519 = vmatmul.f32.gmra.mxu0 %v1406
        %v1520 = vpop.f32.mrf.mxu0
        %v1521 = vadd.f32 0.0, %v1520
        %1522 = vmatmul.f32.gmra.mxu0 %v1408
        %v1523 = vpop.f32.mrf.mxu0
        %v1524 = vadd.f32 0.0, %v1523
        %1525 = vdwg.mxu0
        %v1526 = vadd.f32 %v1368, %v1431
        %v1527 = vadd.f32 %v1369, %v1434
        %v1528 = vadd.f32 %v1370, %v1437
        %v1529 = vadd.f32 %v1371, %v1440
        %v1530 = vadd.f32 %v1372, %v1443
        %v1531 = vadd.f32 %v1373, %v1446
        %v1532 = vadd.f32 %v1374, %v1449
        %v1533 = vadd.f32 %v1375, %v1452
        %v1534 = vadd.f32 %v1376, %v1455
        %v1535 = vadd.f32 %v1377, %v1458
        %v1536 = vadd.f32 %v1378, %v1461
        %v1537 = vadd.f32 %v1379, %v1464
        %v1538 = vadd.f32 %v1380, %v1467
        %v1539 = vadd.f32 %v1381, %v1470
        %v1540 = vadd.f32 %v1382, %v1473
        %v1541 = vadd.f32 %v1383, %v1476
        %v1542 = vadd.f32 %v1384, %v1479
        %v1543 = vadd.f32 %v1385, %v1482
        %v1544 = vadd.f32 %v1386, %v1485
        %v1545 = vadd.f32 %v1387, %v1488
        %v1546 = vadd.f32 %v1388, %v1491
        %v1547 = vadd.f32 %v1389, %v1494
        %v1548 = vadd.f32 %v1390, %v1497
        %v1549 = vadd.f32 %v1391, %v1500
        %v1550 = vadd.f32 %v1392, %v1503
        %v1551 = vadd.f32 %v1393, %v1506
        %v1552 = vadd.f32 %v1394, %v1509
        %v1553 = vadd.f32 %v1395, %v1512
        %v1554 = vadd.f32 %v1396, %v1515
        %v1555 = vadd.f32 %v1397, %v1518
        %v1556 = vadd.f32 %v1398, %v1521
        %v1557 = vadd.f32 %v1399, %v1524
        %v1558 = vrot.slane %v470, 2
        %v1559 = vrot.slane %v422, 2
        %v1560 = vsel %vm959, %v1558, %v1559
        %v1561 = vrot.slane %v486, 2
        %v1562 = vsel %vm959, %v1559, %v1561
        %v1563 = vrot.slane %v489, 4
        %v1564 = vsel %vm603, %v1560, 0
        %v1566 = vsel %vm603, %v1562, 0
        %v1568 = vsel %vm666, %v1563, 0
        %1570 = vmatpush.msra.mxu0 0.0
        %1571 = vmatpush.msra.mxu0 0.0
        %1572 = vmatpush.msra.mxu0 0.0
        %1573 = vmatpush.msra.mxu0 0.0
        %1574 = vmatpush.msra.mxu0 0.0
        %1575 = vmatpush.msra.mxu0 0.0
        %1576 = vmatpush.msra.mxu0 0.0
        %1577 = vmatpush.msra.mxu0 0.0
        %1578 = vmatpush.msra.mxu0 0.0
        %1579 = vmatpush.msra.mxu0 0.0
        %1580 = vmatpush.msra.mxu0 0.0
        %1581 = vmatpush.msra.mxu0 0.0
        %1582 = vmatpush.msra.mxu0 0.0
        %1583 = vmatpush.msra.mxu0 0.0
        %1584 = vmatpush.msra.mxu0 0.0
        %1585 = vmatpush.msra.mxu0 %v1568
        %1586 = vmatmul.f32.gmra.mxu0 %v1039
        %v1587 = vpop.f32.mrf.mxu0
        %v1588 = vadd.f32 0.0, %v1587
        %1589 = vmatmul.f32.gmra.mxu0 %v1041
        %v1590 = vpop.f32.mrf.mxu0
        %v1591 = vadd.f32 0.0, %v1590
        %1592 = vmatmul.f32.gmra.mxu0 %v1043
        %v1593 = vpop.f32.mrf.mxu0
        %v1594 = vadd.f32 0.0, %v1593
        %1595 = vmatmul.f32.gmra.mxu0 %v1045
        %v1596 = vpop.f32.mrf.mxu0
        %v1597 = vadd.f32 0.0, %v1596
        %1598 = vmatmul.f32.gmra.mxu0 %v1047
        %v1599 = vpop.f32.mrf.mxu0
        %v1600 = vadd.f32 0.0, %v1599
        %1601 = vmatmul.f32.gmra.mxu0 %v1049
        %v1602 = vpop.f32.mrf.mxu0
        %v1603 = vadd.f32 0.0, %v1602
        %1604 = vmatmul.f32.gmra.mxu0 %v1051
        %v1605 = vpop.f32.mrf.mxu0
        %v1606 = vadd.f32 0.0, %v1605
        %1607 = vmatmul.f32.gmra.mxu0 %v1053
        %v1608 = vpop.f32.mrf.mxu0
        %v1609 = vadd.f32 0.0, %v1608
        %1610 = vmatmul.f32.gmra.mxu0 %v1055
        %v1611 = vpop.f32.mrf.mxu0
        %v1612 = vadd.f32 0.0, %v1611
        %1613 = vmatmul.f32.gmra.mxu0 %v1057
        %v1614 = vpop.f32.mrf.mxu0
        %v1615 = vadd.f32 0.0, %v1614
        %1616 = vmatmul.f32.gmra.mxu0 %v1059
        %v1617 = vpop.f32.mrf.mxu0
        %v1618 = vadd.f32 0.0, %v1617
        %1619 = vmatmul.f32.gmra.mxu0 %v1061
        %v1620 = vpop.f32.mrf.mxu0
        %v1621 = vadd.f32 0.0, %v1620
        %1622 = vmatmul.f32.gmra.mxu0 %v1063
        %v1623 = vpop.f32.mrf.mxu0
        %v1624 = vadd.f32 0.0, %v1623
        %1625 = vmatmul.f32.gmra.mxu0 %v1065
        %v1626 = vpop.f32.mrf.mxu0
        %v1627 = vadd.f32 0.0, %v1626
        %1628 = vmatmul.f32.gmra.mxu0 %v1067
        %v1629 = vpop.f32.mrf.mxu0
        %v1630 = vadd.f32 0.0, %v1629
        %1631 = vmatmul.f32.gmra.mxu0 %v1069
        %v1632 = vpop.f32.mrf.mxu0
        %v1633 = vadd.f32 0.0, %v1632
        %1634 = vmatmul.f32.gmra.mxu0 %v1071
        %v1635 = vpop.f32.mrf.mxu0
        %v1636 = vadd.f32 0.0, %v1635
        %1637 = vmatmul.f32.gmra.mxu0 %v1073
        %v1638 = vpop.f32.mrf.mxu0
        %v1639 = vadd.f32 0.0, %v1638
        %1640 = vmatmul.f32.gmra.mxu0 %v1075
        %v1641 = vpop.f32.mrf.mxu0
        %v1642 = vadd.f32 0.0, %v1641
        %1643 = vmatmul.f32.gmra.mxu0 %v1077
        %v1644 = vpop.f32.mrf.mxu0
        %v1645 = vadd.f32 0.0, %v1644
        %1646 = vmatmul.f32.gmra.mxu0 %v1079
        %v1647 = vpop.f32.mrf.mxu0
        %v1648 = vadd.f32 0.0, %v1647
        %1649 = vmatmul.f32.gmra.mxu0 %v1081
        %v1650 = vpop.f32.mrf.mxu0
        %v1651 = vadd.f32 0.0, %v1650
        %1652 = vmatmul.f32.gmra.mxu0 %v1083
        %v1653 = vpop.f32.mrf.mxu0
        %v1654 = vadd.f32 0.0, %v1653
        %1655 = vmatmul.f32.gmra.mxu0 %v1085
        %v1656 = vpop.f32.mrf.mxu0
        %v1657 = vadd.f32 0.0, %v1656
        %1658 = vmatmul.f32.gmra.mxu0 %v1087
        %v1659 = vpop.f32.mrf.mxu0
        %v1660 = vadd.f32 0.0, %v1659
        %1661 = vmatmul.f32.gmra.mxu0 %v1089
        %v1662 = vpop.f32.mrf.mxu0
        %v1663 = vadd.f32 0.0, %v1662
        %1664 = vmatmul.f32.gmra.mxu0 %v1091
        %v1665 = vpop.f32.mrf.mxu0
        %v1666 = vadd.f32 0.0, %v1665
        %1667 = vmatmul.f32.gmra.mxu0 %v1093
        %v1668 = vpop.f32.mrf.mxu0
        %v1669 = vadd.f32 0.0, %v1668
        %1670 = vmatmul.f32.gmra.mxu0 %v1095
        %v1671 = vpop.f32.mrf.mxu0
        %v1672 = vadd.f32 0.0, %v1671
        %1673 = vmatmul.f32.gmra.mxu0 %v1097
        %v1674 = vpop.f32.mrf.mxu0
        %v1675 = vadd.f32 0.0, %v1674
        %1676 = vmatmul.f32.gmra.mxu0 %v1564
        %v1677 = vpop.f32.mrf.mxu0
        %v1678 = vadd.f32 0.0, %v1677
        %1679 = vmatmul.f32.gmra.mxu0 %v1566
        %v1680 = vpop.f32.mrf.mxu0
        %v1681 = vadd.f32 0.0, %v1680
        %1682 = vdwg.mxu0
        %v1683 = vadd.f32 %v1526, %v1588
        %v1684 = vadd.f32 %v1527, %v1591
        %v1685 = vadd.f32 %v1528, %v1594
        %v1686 = vadd.f32 %v1529, %v1597
        %v1687 = vadd.f32 %v1530, %v1600
        %v1688 = vadd.f32 %v1531, %v1603
        %v1689 = vadd.f32 %v1532, %v1606
        %v1690 = vadd.f32 %v1533, %v1609
        %v1691 = vadd.f32 %v1534, %v1612
        %v1692 = vadd.f32 %v1535, %v1615
        %v1693 = vadd.f32 %v1536, %v1618
        %v1694 = vadd.f32 %v1537, %v1621
        %v1695 = vadd.f32 %v1538, %v1624
        %v1696 = vadd.f32 %v1539, %v1627
        %v1697 = vadd.f32 %v1540, %v1630
        %v1698 = vadd.f32 %v1541, %v1633
        %v1699 = vadd.f32 %v1542, %v1636
        %v1700 = vadd.f32 %v1543, %v1639
        %v1701 = vadd.f32 %v1544, %v1642
        %v1702 = vadd.f32 %v1545, %v1645
        %v1703 = vadd.f32 %v1546, %v1648
        %v1704 = vadd.f32 %v1547, %v1651
        %v1705 = vadd.f32 %v1548, %v1654
        %v1706 = vadd.f32 %v1549, %v1657
        %v1707 = vadd.f32 %v1550, %v1660
        %v1708 = vadd.f32 %v1551, %v1663
        %v1709 = vadd.f32 %v1552, %v1666
        %v1710 = vadd.f32 %v1553, %v1669
        %v1711 = vadd.f32 %v1554, %v1672
        %v1712 = vadd.f32 %v1555, %v1675
        %v1713 = vadd.f32 %v1556, %v1678
        %v1714 = vadd.f32 %v1557, %v1681
        %v1716 = vsel %vm666, %v490, 0
        %1718 = vmatpush.msra.mxu0 0.0
        %1719 = vmatpush.msra.mxu0 0.0
        %1720 = vmatpush.msra.mxu0 0.0
        %1721 = vmatpush.msra.mxu0 0.0
        %1722 = vmatpush.msra.mxu0 0.0
        %1723 = vmatpush.msra.mxu0 0.0
        %1724 = vmatpush.msra.mxu0 0.0
        %1725 = vmatpush.msra.mxu0 0.0
        %1726 = vmatpush.msra.mxu0 0.0
        %1727 = vmatpush.msra.mxu0 0.0
        %1728 = vmatpush.msra.mxu0 0.0
        %1729 = vmatpush.msra.mxu0 0.0
        %1730 = vmatpush.msra.mxu0 0.0
        %1731 = vmatpush.msra.mxu0 0.0
        %1732 = vmatpush.msra.mxu0 0.0
        %1733 = vmatpush.msra.mxu0 %v1716
        %1734 = vmatmul.f32.gmra.mxu0 %v788
        %v1735 = vpop.f32.mrf.mxu0
        %v1736 = vadd.f32 0.0, %v1735
        %1737 = vmatmul.f32.gmra.mxu0 %v790
        %v1738 = vpop.f32.mrf.mxu0
        %v1739 = vadd.f32 0.0, %v1738
        %1740 = vmatmul.f32.gmra.mxu0 %v792
        %v1741 = vpop.f32.mrf.mxu0
        %v1742 = vadd.f32 0.0, %v1741
        %1743 = vmatmul.f32.gmra.mxu0 %v794
        %v1744 = vpop.f32.mrf.mxu0
        %v1745 = vadd.f32 0.0, %v1744
        %1746 = vmatmul.f32.gmra.mxu0 %v796
        %v1747 = vpop.f32.mrf.mxu0
        %v1748 = vadd.f32 0.0, %v1747
        %1749 = vmatmul.f32.gmra.mxu0 %v798
        %v1750 = vpop.f32.mrf.mxu0
        %v1751 = vadd.f32 0.0, %v1750
        %1752 = vmatmul.f32.gmra.mxu0 %v800
        %v1753 = vpop.f32.mrf.mxu0
        %v1754 = vadd.f32 0.0, %v1753
        %1755 = vmatmul.f32.gmra.mxu0 %v802
        %v1756 = vpop.f32.mrf.mxu0
        %v1757 = vadd.f32 0.0, %v1756
        %1758 = vmatmul.f32.gmra.mxu0 %v804
        %v1759 = vpop.f32.mrf.mxu0
        %v1760 = vadd.f32 0.0, %v1759
        %1761 = vmatmul.f32.gmra.mxu0 %v806
        %v1762 = vpop.f32.mrf.mxu0
        %v1763 = vadd.f32 0.0, %v1762
        %1764 = vmatmul.f32.gmra.mxu0 %v808
        %v1765 = vpop.f32.mrf.mxu0
        %v1766 = vadd.f32 0.0, %v1765
        %1767 = vmatmul.f32.gmra.mxu0 %v810
        %v1768 = vpop.f32.mrf.mxu0
        %v1769 = vadd.f32 0.0, %v1768
        %1770 = vmatmul.f32.gmra.mxu0 %v812
        %v1771 = vpop.f32.mrf.mxu0
        %v1772 = vadd.f32 0.0, %v1771
        %1773 = vmatmul.f32.gmra.mxu0 %v814
        %v1774 = vpop.f32.mrf.mxu0
        %v1775 = vadd.f32 0.0, %v1774
        %1776 = vmatmul.f32.gmra.mxu0 %v816
        %v1777 = vpop.f32.mrf.mxu0
        %v1778 = vadd.f32 0.0, %v1777
        %1779 = vmatmul.f32.gmra.mxu0 %v818
        %v1780 = vpop.f32.mrf.mxu0
        %v1781 = vadd.f32 0.0, %v1780
        %1782 = vmatmul.f32.gmra.mxu0 %v820
        %v1783 = vpop.f32.mrf.mxu0
        %v1784 = vadd.f32 0.0, %v1783
        %1785 = vmatmul.f32.gmra.mxu0 %v822
        %v1786 = vpop.f32.mrf.mxu0
        %v1787 = vadd.f32 0.0, %v1786
        %1788 = vmatmul.f32.gmra.mxu0 %v824
        %v1789 = vpop.f32.mrf.mxu0
        %v1790 = vadd.f32 0.0, %v1789
        %1791 = vmatmul.f32.gmra.mxu0 %v826
        %v1792 = vpop.f32.mrf.mxu0
        %v1793 = vadd.f32 0.0, %v1792
        %1794 = vmatmul.f32.gmra.mxu0 %v828
        %v1795 = vpop.f32.mrf.mxu0
        %v1796 = vadd.f32 0.0, %v1795
        %1797 = vmatmul.f32.gmra.mxu0 %v830
        %v1798 = vpop.f32.mrf.mxu0
        %v1799 = vadd.f32 0.0, %v1798
        %1800 = vmatmul.f32.gmra.mxu0 %v832
        %v1801 = vpop.f32.mrf.mxu0
        %v1802 = vadd.f32 0.0, %v1801
        %1803 = vmatmul.f32.gmra.mxu0 %v834
        %v1804 = vpop.f32.mrf.mxu0
        %v1805 = vadd.f32 0.0, %v1804
        %1806 = vmatmul.f32.gmra.mxu0 %v836
        %v1807 = vpop.f32.mrf.mxu0
        %v1808 = vadd.f32 0.0, %v1807
        %1809 = vmatmul.f32.gmra.mxu0 %v838
        %v1810 = vpop.f32.mrf.mxu0
        %v1811 = vadd.f32 0.0, %v1810
        %1812 = vmatmul.f32.gmra.mxu0 %v840
        %v1813 = vpop.f32.mrf.mxu0
        %v1814 = vadd.f32 0.0, %v1813
        %1815 = vmatmul.f32.gmra.mxu0 %v842
        %v1816 = vpop.f32.mrf.mxu0
        %v1817 = vadd.f32 0.0, %v1816
        %1818 = vmatmul.f32.gmra.mxu0 %v1249
        %v1819 = vpop.f32.mrf.mxu0
        %v1820 = vadd.f32 0.0, %v1819
        %1821 = vmatmul.f32.gmra.mxu0 %v1251
        %v1822 = vpop.f32.mrf.mxu0
        %v1823 = vadd.f32 0.0, %v1822
        %1824 = vmatmul.f32.gmra.mxu0 %v782
        %v1825 = vpop.f32.mrf.mxu0
        %v1826 = vadd.f32 0.0, %v1825
        %1827 = vmatmul.f32.gmra.mxu0 %v782
        %v1828 = vpop.f32.mrf.mxu0
        %v1829 = vadd.f32 0.0, %v1828
        %1830 = vdwg.mxu0
        %v1831 = vadd.f32 %v1683, %v1736
        %v1832 = vadd.f32 %v1684, %v1739
        %v1833 = vadd.f32 %v1685, %v1742
        %v1834 = vadd.f32 %v1686, %v1745
        %v1835 = vadd.f32 %v1687, %v1748
        %v1836 = vadd.f32 %v1688, %v1751
        %v1837 = vadd.f32 %v1689, %v1754
        %v1838 = vadd.f32 %v1690, %v1757
        %v1839 = vadd.f32 %v1691, %v1760
        %v1840 = vadd.f32 %v1692, %v1763
        %v1841 = vadd.f32 %v1693, %v1766
        %v1842 = vadd.f32 %v1694, %v1769
        %v1843 = vadd.f32 %v1695, %v1772
        %v1844 = vadd.f32 %v1696, %v1775
        %v1845 = vadd.f32 %v1697, %v1778
        %v1846 = vadd.f32 %v1698, %v1781
        %v1847 = vadd.f32 %v1699, %v1784
        %v1848 = vadd.f32 %v1700, %v1787
        %v1849 = vadd.f32 %v1701, %v1790
        %v1850 = vadd.f32 %v1702, %v1793
        %v1851 = vadd.f32 %v1703, %v1796
        %v1852 = vadd.f32 %v1704, %v1799
        %v1853 = vadd.f32 %v1705, %v1802
        %v1854 = vadd.f32 %v1706, %v1805
        %v1855 = vadd.f32 %v1707, %v1808
        %v1856 = vadd.f32 %v1708, %v1811
        %v1857 = vadd.f32 %v1709, %v1814
        %v1858 = vadd.f32 %v1710, %v1817
        %v1859 = vadd.f32 %v1711, %v1820
        %v1860 = vadd.f32 %v1712, %v1823
        %v1861 = vadd.f32 %v1713, %v1826
        %v1862 = vadd.f32 %v1714, %v1829
        %v1863 = vrot.slane %v490, 4
        %v1864 = vsel %vm666, %v1863, 0
        %1866 = vmatpush.msra.mxu0 0.0
        %1867 = vmatpush.msra.mxu0 0.0
        %1868 = vmatpush.msra.mxu0 0.0
        %1869 = vmatpush.msra.mxu0 0.0
        %1870 = vmatpush.msra.mxu0 0.0
        %1871 = vmatpush.msra.mxu0 0.0
        %1872 = vmatpush.msra.mxu0 0.0
        %1873 = vmatpush.msra.mxu0 0.0
        %1874 = vmatpush.msra.mxu0 0.0
        %1875 = vmatpush.msra.mxu0 0.0
        %1876 = vmatpush.msra.mxu0 0.0
        %1877 = vmatpush.msra.mxu0 0.0
        %1878 = vmatpush.msra.mxu0 0.0
        %1879 = vmatpush.msra.mxu0 0.0
        %1880 = vmatpush.msra.mxu0 0.0
        %1881 = vmatpush.msra.mxu0 %v1864
        %1882 = vmatmul.f32.gmra.mxu0 %v610
        %v1883 = vpop.f32.mrf.mxu0
        %v1884 = vadd.f32 0.0, %v1883
        %1885 = vmatmul.f32.gmra.mxu0 %v612
        %v1886 = vpop.f32.mrf.mxu0
        %v1887 = vadd.f32 0.0, %v1886
        %1888 = vmatmul.f32.gmra.mxu0 %v614
        %v1889 = vpop.f32.mrf.mxu0
        %v1890 = vadd.f32 0.0, %v1889
        %1891 = vmatmul.f32.gmra.mxu0 %v616
        %v1892 = vpop.f32.mrf.mxu0
        %v1893 = vadd.f32 0.0, %v1892
        %1894 = vmatmul.f32.gmra.mxu0 %v618
        %v1895 = vpop.f32.mrf.mxu0
        %v1896 = vadd.f32 0.0, %v1895
        %1897 = vmatmul.f32.gmra.mxu0 %v620
        %v1898 = vpop.f32.mrf.mxu0
        %v1899 = vadd.f32 0.0, %v1898
        %1900 = vmatmul.f32.gmra.mxu0 %v622
        %v1901 = vpop.f32.mrf.mxu0
        %v1902 = vadd.f32 0.0, %v1901
        %1903 = vmatmul.f32.gmra.mxu0 %v624
        %v1904 = vpop.f32.mrf.mxu0
        %v1905 = vadd.f32 0.0, %v1904
        %1906 = vmatmul.f32.gmra.mxu0 %v626
        %v1907 = vpop.f32.mrf.mxu0
        %v1908 = vadd.f32 0.0, %v1907
        %1909 = vmatmul.f32.gmra.mxu0 %v628
        %v1910 = vpop.f32.mrf.mxu0
        %v1911 = vadd.f32 0.0, %v1910
        %1912 = vmatmul.f32.gmra.mxu0 %v630
        %v1913 = vpop.f32.mrf.mxu0
        %v1914 = vadd.f32 0.0, %v1913
        %1915 = vmatmul.f32.gmra.mxu0 %v632
        %v1916 = vpop.f32.mrf.mxu0
        %v1917 = vadd.f32 0.0, %v1916
        %1918 = vmatmul.f32.gmra.mxu0 %v634
        %v1919 = vpop.f32.mrf.mxu0
        %v1920 = vadd.f32 0.0, %v1919
        %1921 = vmatmul.f32.gmra.mxu0 %v636
        %v1922 = vpop.f32.mrf.mxu0
        %v1923 = vadd.f32 0.0, %v1922
        %1924 = vmatmul.f32.gmra.mxu0 %v638
        %v1925 = vpop.f32.mrf.mxu0
        %v1926 = vadd.f32 0.0, %v1925
        %1927 = vmatmul.f32.gmra.mxu0 %v640
        %v1928 = vpop.f32.mrf.mxu0
        %v1929 = vadd.f32 0.0, %v1928
        %1930 = vmatmul.f32.gmra.mxu0 %v642
        %v1931 = vpop.f32.mrf.mxu0
        %v1932 = vadd.f32 0.0, %v1931
        %1933 = vmatmul.f32.gmra.mxu0 %v644
        %v1934 = vpop.f32.mrf.mxu0
        %v1935 = vadd.f32 0.0, %v1934
        %1936 = vmatmul.f32.gmra.mxu0 %v646
        %v1937 = vpop.f32.mrf.mxu0
        %v1938 = vadd.f32 0.0, %v1937
        %1939 = vmatmul.f32.gmra.mxu0 %v648
        %v1940 = vpop.f32.mrf.mxu0
        %v1941 = vadd.f32 0.0, %v1940
        %1942 = vmatmul.f32.gmra.mxu0 %v650
        %v1943 = vpop.f32.mrf.mxu0
        %v1944 = vadd.f32 0.0, %v1943
        %1945 = vmatmul.f32.gmra.mxu0 %v652
        %v1946 = vpop.f32.mrf.mxu0
        %v1947 = vadd.f32 0.0, %v1946
        %1948 = vmatmul.f32.gmra.mxu0 %v654
        %v1949 = vpop.f32.mrf.mxu0
        %v1950 = vadd.f32 0.0, %v1949
        %1951 = vmatmul.f32.gmra.mxu0 %v656
        %v1952 = vpop.f32.mrf.mxu0
        %v1953 = vadd.f32 0.0, %v1952
        %1954 = vmatmul.f32.gmra.mxu0 %v658
        %v1955 = vpop.f32.mrf.mxu0
        %v1956 = vadd.f32 0.0, %v1955
        %1957 = vmatmul.f32.gmra.mxu0 %v660
        %v1958 = vpop.f32.mrf.mxu0
        %v1959 = vadd.f32 0.0, %v1958
        %1960 = vmatmul.f32.gmra.mxu0 %v662
        %v1961 = vpop.f32.mrf.mxu0
        %v1962 = vadd.f32 0.0, %v1961
        %1963 = vmatmul.f32.gmra.mxu0 %v664
        %v1964 = vpop.f32.mrf.mxu0
        %v1965 = vadd.f32 0.0, %v1964
        %1966 = vmatmul.f32.gmra.mxu0 %v1406
        %v1967 = vpop.f32.mrf.mxu0
        %v1968 = vadd.f32 0.0, %v1967
        %1969 = vmatmul.f32.gmra.mxu0 %v1408
        %v1970 = vpop.f32.mrf.mxu0
        %v1971 = vadd.f32 0.0, %v1970
        %1972 = vmatmul.f32.gmra.mxu0 %v604
        %v1973 = vpop.f32.mrf.mxu0
        %v1974 = vadd.f32 0.0, %v1973
        %1975 = vmatmul.f32.gmra.mxu0 %v604
        %v1976 = vpop.f32.mrf.mxu0
        %v1977 = vadd.f32 0.0, %v1976
        %1978 = vdwg.mxu0
        %v1979 = vadd.f32 %v1831, %v1884
        %v1980 = vadd.f32 %v1832, %v1887
        %v1981 = vadd.f32 %v1833, %v1890
        %v1982 = vadd.f32 %v1834, %v1893
        %v1983 = vadd.f32 %v1835, %v1896
        %v1984 = vadd.f32 %v1836, %v1899
        %v1985 = vadd.f32 %v1837, %v1902
        %v1986 = vadd.f32 %v1838, %v1905
        %v1987 = vadd.f32 %v1839, %v1908
        %v1988 = vadd.f32 %v1840, %v1911
        %v1989 = vadd.f32 %v1841, %v1914
        %v1990 = vadd.f32 %v1842, %v1917
        %v1991 = vadd.f32 %v1843, %v1920
        %v1992 = vadd.f32 %v1844, %v1923
        %v1993 = vadd.f32 %v1845, %v1926
        %v1994 = vadd.f32 %v1846, %v1929
        %v1995 = vadd.f32 %v1847, %v1932
        %v1996 = vadd.f32 %v1848, %v1935
        %v1997 = vadd.f32 %v1849, %v1938
        %v1998 = vadd.f32 %v1850, %v1941
        %v1999 = vadd.f32 %v1851, %v1944
        %v2000 = vadd.f32 %v1852, %v1947
        %v2001 = vadd.f32 %v1853, %v1950
        %v2002 = vadd.f32 %v1854, %v1953
        %v2003 = vadd.f32 %v1855, %v1956
        %v2004 = vadd.f32 %v1856, %v1959
        %v2005 = vadd.f32 %v1857, %v1962
        %v2006 = vadd.f32 %v1858, %v1965
        %v2007 = vadd.f32 %v1859, %v1968
        %v2008 = vadd.f32 %v1860, %v1971
        %v2009 = vadd.f32 %v1861, %v1974
        %v2010 = vadd.f32 %v1862, %v1977
        %v2012 = vsel %vm666, %v491, 0
        %2014 = vmatpush.msra.mxu0 0.0
        %2015 = vmatpush.msra.mxu0 0.0
        %2016 = vmatpush.msra.mxu0 0.0
        %2017 = vmatpush.msra.mxu0 0.0
        %2018 = vmatpush.msra.mxu0 0.0
        %2019 = vmatpush.msra.mxu0 0.0
        %2020 = vmatpush.msra.mxu0 0.0
        %2021 = vmatpush.msra.mxu0 0.0
        %2022 = vmatpush.msra.mxu0 0.0
        %2023 = vmatpush.msra.mxu0 0.0
        %2024 = vmatpush.msra.mxu0 0.0
        %2025 = vmatpush.msra.mxu0 0.0
        %2026 = vmatpush.msra.mxu0 0.0
        %2027 = vmatpush.msra.mxu0 0.0
        %2028 = vmatpush.msra.mxu0 0.0
        %2029 = vmatpush.msra.mxu0 %v2012
        %2030 = vmatmul.f32.gmra.mxu0 %v1043
        %v2031 = vpop.f32.mrf.mxu0
        %v2032 = vadd.f32 0.0, %v2031
        %2033 = vmatmul.f32.gmra.mxu0 %v1045
        %v2034 = vpop.f32.mrf.mxu0
        %v2035 = vadd.f32 0.0, %v2034
        %2036 = vmatmul.f32.gmra.mxu0 %v1047
        %v2037 = vpop.f32.mrf.mxu0
        %v2038 = vadd.f32 0.0, %v2037
        %2039 = vmatmul.f32.gmra.mxu0 %v1049
        %v2040 = vpop.f32.mrf.mxu0
        %v2041 = vadd.f32 0.0, %v2040
        %2042 = vmatmul.f32.gmra.mxu0 %v1051
        %v2043 = vpop.f32.mrf.mxu0
        %v2044 = vadd.f32 0.0, %v2043
        %2045 = vmatmul.f32.gmra.mxu0 %v1053
        %v2046 = vpop.f32.mrf.mxu0
        %v2047 = vadd.f32 0.0, %v2046
        %2048 = vmatmul.f32.gmra.mxu0 %v1055
        %v2049 = vpop.f32.mrf.mxu0
        %v2050 = vadd.f32 0.0, %v2049
        %2051 = vmatmul.f32.gmra.mxu0 %v1057
        %v2052 = vpop.f32.mrf.mxu0
        %v2053 = vadd.f32 0.0, %v2052
        %2054 = vmatmul.f32.gmra.mxu0 %v1059
        %v2055 = vpop.f32.mrf.mxu0
        %v2056 = vadd.f32 0.0, %v2055
        %2057 = vmatmul.f32.gmra.mxu0 %v1061
        %v2058 = vpop.f32.mrf.mxu0
        %v2059 = vadd.f32 0.0, %v2058
        %2060 = vmatmul.f32.gmra.mxu0 %v1063
        %v2061 = vpop.f32.mrf.mxu0
        %v2062 = vadd.f32 0.0, %v2061
        %2063 = vmatmul.f32.gmra.mxu0 %v1065
        %v2064 = vpop.f32.mrf.mxu0
        %v2065 = vadd.f32 0.0, %v2064
        %2066 = vmatmul.f32.gmra.mxu0 %v1067
        %v2067 = vpop.f32.mrf.mxu0
        %v2068 = vadd.f32 0.0, %v2067
        %2069 = vmatmul.f32.gmra.mxu0 %v1069
        %v2070 = vpop.f32.mrf.mxu0
        %v2071 = vadd.f32 0.0, %v2070
        %2072 = vmatmul.f32.gmra.mxu0 %v1071
        %v2073 = vpop.f32.mrf.mxu0
        %v2074 = vadd.f32 0.0, %v2073
        %2075 = vmatmul.f32.gmra.mxu0 %v1073
        %v2076 = vpop.f32.mrf.mxu0
        %v2077 = vadd.f32 0.0, %v2076
        %2078 = vmatmul.f32.gmra.mxu0 %v1075
        %v2079 = vpop.f32.mrf.mxu0
        %v2080 = vadd.f32 0.0, %v2079
        %2081 = vmatmul.f32.gmra.mxu0 %v1077
        %v2082 = vpop.f32.mrf.mxu0
        %v2083 = vadd.f32 0.0, %v2082
        %2084 = vmatmul.f32.gmra.mxu0 %v1079
        %v2085 = vpop.f32.mrf.mxu0
        %v2086 = vadd.f32 0.0, %v2085
        %2087 = vmatmul.f32.gmra.mxu0 %v1081
        %v2088 = vpop.f32.mrf.mxu0
        %v2089 = vadd.f32 0.0, %v2088
        %2090 = vmatmul.f32.gmra.mxu0 %v1083
        %v2091 = vpop.f32.mrf.mxu0
        %v2092 = vadd.f32 0.0, %v2091
        %2093 = vmatmul.f32.gmra.mxu0 %v1085
        %v2094 = vpop.f32.mrf.mxu0
        %v2095 = vadd.f32 0.0, %v2094
        %2096 = vmatmul.f32.gmra.mxu0 %v1087
        %v2097 = vpop.f32.mrf.mxu0
        %v2098 = vadd.f32 0.0, %v2097
        %2099 = vmatmul.f32.gmra.mxu0 %v1089
        %v2100 = vpop.f32.mrf.mxu0
        %v2101 = vadd.f32 0.0, %v2100
        %2102 = vmatmul.f32.gmra.mxu0 %v1091
        %v2103 = vpop.f32.mrf.mxu0
        %v2104 = vadd.f32 0.0, %v2103
        %2105 = vmatmul.f32.gmra.mxu0 %v1093
        %v2106 = vpop.f32.mrf.mxu0
        %v2107 = vadd.f32 0.0, %v2106
        %2108 = vmatmul.f32.gmra.mxu0 %v1095
        %v2109 = vpop.f32.mrf.mxu0
        %v2110 = vadd.f32 0.0, %v2109
        %2111 = vmatmul.f32.gmra.mxu0 %v1097
        %v2112 = vpop.f32.mrf.mxu0
        %v2113 = vadd.f32 0.0, %v2112
        %2114 = vmatmul.f32.gmra.mxu0 %v1564
        %v2115 = vpop.f32.mrf.mxu0
        %v2116 = vadd.f32 0.0, %v2115
        %2117 = vmatmul.f32.gmra.mxu0 %v1566
        %v2118 = vpop.f32.mrf.mxu0
        %v2119 = vadd.f32 0.0, %v2118
        %2120 = vmatmul.f32.gmra.mxu0 %v1037
        %v2121 = vpop.f32.mrf.mxu0
        %v2122 = vadd.f32 0.0, %v2121
        %2123 = vmatmul.f32.gmra.mxu0 %v1037
        %v2124 = vpop.f32.mrf.mxu0
        %v2125 = vadd.f32 0.0, %v2124
        %2126 = vdwg.mxu0
        %v2127 = vadd.f32 %v1979, %v2032
        %v2128 = vadd.f32 %v1980, %v2035
        %v2129 = vadd.f32 %v1981, %v2038
        %v2130 = vadd.f32 %v1982, %v2041
        %v2131 = vadd.f32 %v1983, %v2044
        %v2132 = vadd.f32 %v1984, %v2047
        %v2133 = vadd.f32 %v1985, %v2050
        %v2134 = vadd.f32 %v1986, %v2053
        %v2135 = vadd.f32 %v1987, %v2056
        %v2136 = vadd.f32 %v1988, %v2059
        %v2137 = vadd.f32 %v1989, %v2062
        %v2138 = vadd.f32 %v1990, %v2065
        %v2139 = vadd.f32 %v1991, %v2068
        %v2140 = vadd.f32 %v1992, %v2071
        %v2141 = vadd.f32 %v1993, %v2074
        %v2142 = vadd.f32 %v1994, %v2077
        %v2143 = vadd.f32 %v1995, %v2080
        %v2144 = vadd.f32 %v1996, %v2083
        %v2145 = vadd.f32 %v1997, %v2086
        %v2146 = vadd.f32 %v1998, %v2089
        %v2147 = vadd.f32 %v1999, %v2092
        %v2148 = vadd.f32 %v2000, %v2095
        %v2149 = vadd.f32 %v2001, %v2098
        %v2150 = vadd.f32 %v2002, %v2101
        %v2151 = vadd.f32 %v2003, %v2104
        %v2152 = vadd.f32 %v2004, %v2107
        %v2153 = vadd.f32 %v2005, %v2110
        %v2154 = vadd.f32 %v2006, %v2113
        %v2155 = vadd.f32 %v2007, %v2116
        %v2156 = vadd.f32 %v2008, %v2119
        %v2157 = vadd.f32 %v2009, %v2122
        %v2158 = vadd.f32 %v2010, %v2125
        %v2160 = vperm.slane %v309, 0
        %v2162 = vadd.f32 %v2127, %v2160
        %v2163 = vadd.f32 %v2128, %v2160
        %v2164 = vadd.f32 %v2129, %v2160
        %v2165 = vadd.f32 %v2130, %v2160
        %v2166 = vadd.f32 %v2131, %v2160
        %v2167 = vadd.f32 %v2132, %v2160
        %v2168 = vadd.f32 %v2133, %v2160
        %v2169 = vadd.f32 %v2134, %v2160
        %v2170 = vadd.f32 %v2135, %v2160
        %v2171 = vadd.f32 %v2136, %v2160
        %v2172 = vadd.f32 %v2137, %v2160
        %v2173 = vadd.f32 %v2138, %v2160
        %v2174 = vadd.f32 %v2139, %v2160
        %v2175 = vadd.f32 %v2140, %v2160
        %v2176 = vadd.f32 %v2141, %v2160
        %v2177 = vadd.f32 %v2142, %v2160
        %v2178 = vadd.f32 %v2143, %v2160
        %v2179 = vadd.f32 %v2144, %v2160
        %v2180 = vadd.f32 %v2145, %v2160
        %v2181 = vadd.f32 %v2146, %v2160
        %v2182 = vadd.f32 %v2147, %v2160
        %v2183 = vadd.f32 %v2148, %v2160
        %v2184 = vadd.f32 %v2149, %v2160
        %v2185 = vadd.f32 %v2150, %v2160
        %v2186 = vadd.f32 %v2151, %v2160
        %v2187 = vadd.f32 %v2152, %v2160
        %v2188 = vadd.f32 %v2153, %v2160
        %v2189 = vadd.f32 %v2154, %v2160
        %v2190 = vadd.f32 %v2155, %v2160
        %v2191 = vadd.f32 %v2156, %v2160
        %v2192 = vadd.f32 %v2157, %v2160
        %v2193 = vadd.f32 %v2158, %v2160
        %v2194 = vld [vmem:[%s4] sm:$0x1]
        %v2195 = vmax.f32 %v2162, 0.0
        %v2196 = vmax.f32 %v2163, 0.0
        %v2197 = vmax.f32 %v2164, 0.0
        %v2198 = vmax.f32 %v2165, 0.0
        %v2199 = vmax.f32 %v2166, 0.0
        %v2200 = vmax.f32 %v2167, 0.0
        %v2201 = vmax.f32 %v2168, 0.0
        %v2202 = vmax.f32 %v2169, 0.0
        %v2203 = vmax.f32 %v2170, 0.0
        %v2204 = vmax.f32 %v2171, 0.0
        %v2205 = vmax.f32 %v2172, 0.0
        %v2206 = vmax.f32 %v2173, 0.0
        %v2207 = vmax.f32 %v2174, 0.0
        %v2208 = vmax.f32 %v2175, 0.0
        %v2209 = vmax.f32 %v2176, 0.0
        %v2210 = vmax.f32 %v2177, 0.0
        %v2211 = vmax.f32 %v2178, 0.0
        %v2212 = vmax.f32 %v2179, 0.0
        %v2213 = vmax.f32 %v2180, 0.0
        %v2214 = vmax.f32 %v2181, 0.0
        %v2215 = vmax.f32 %v2182, 0.0
        %v2216 = vmax.f32 %v2183, 0.0
        %v2217 = vmax.f32 %v2184, 0.0
        %v2218 = vmax.f32 %v2185, 0.0
        %v2219 = vmax.f32 %v2186, 0.0
        %v2220 = vmax.f32 %v2187, 0.0
        %v2221 = vmax.f32 %v2188, 0.0
        %v2222 = vmax.f32 %v2189, 0.0
        %v2223 = vmax.f32 %v2190, 0.0
        %v2224 = vmax.f32 %v2191, 0.0
        %v2225 = vmax.f32 %v2192, 0.0
        %v2226 = vmax.f32 %v2193, 0.0
        %v2259 = vrot.slane %v2195, 7
        %v2260 = vrot.slane %v2196, 7
        %v2261 = vsel %vm374, %v2259, %v2260
        %v2262 = vrot.slane %v2197, 7
        %v2263 = vrot.slane %v2198, 7
        %v2264 = vsel %vm374, %v2262, %v2263
        %v2265 = vrot.slane %v2199, 7
        %v2266 = vrot.slane %v2200, 7
        %v2267 = vsel %vm374, %v2265, %v2266
        %v2268 = vrot.slane %v2201, 7
        %v2269 = vrot.slane %v2202, 7
        %v2270 = vsel %vm374, %v2268, %v2269
        %v2271 = vrot.slane %v2203, 7
        %v2272 = vrot.slane %v2204, 7
        %v2273 = vsel %vm374, %v2271, %v2272
        %v2274 = vrot.slane %v2205, 7
        %v2275 = vrot.slane %v2206, 7
        %v2276 = vsel %vm374, %v2274, %v2275
        %v2277 = vrot.slane %v2207, 7
        %v2278 = vrot.slane %v2208, 7
        %v2279 = vsel %vm374, %v2277, %v2278
        %v2280 = vrot.slane %v2209, 7
        %v2281 = vrot.slane %v2210, 7
        %v2282 = vsel %vm374, %v2280, %v2281
        %v2283 = vrot.slane %v2211, 7
        %v2284 = vrot.slane %v2212, 7
        %v2285 = vsel %vm374, %v2283, %v2284
        %v2286 = vrot.slane %v2213, 7
        %v2287 = vrot.slane %v2214, 7
        %v2288 = vsel %vm374, %v2286, %v2287
        %v2289 = vrot.slane %v2215, 7
        %v2290 = vrot.slane %v2216, 7
        %v2291 = vsel %vm374, %v2289, %v2290
        %v2292 = vrot.slane %v2217, 7
        %v2293 = vrot.slane %v2218, 7
        %v2294 = vsel %vm374, %v2292, %v2293
        %v2295 = vrot.slane %v2219, 7
        %v2296 = vrot.slane %v2220, 7
        %v2297 = vsel %vm374, %v2295, %v2296
        %v2298 = vrot.slane %v2221, 7
        %v2299 = vrot.slane %v2222, 7
        %v2300 = vsel %vm374, %v2298, %v2299
        %v2301 = vrot.slane %v2223, 7
        %v2302 = vrot.slane %v2224, 7
        %v2303 = vsel %vm374, %v2301, %v2302
        %v2304 = vrot.slane %v2225, 7
        %v2305 = vrot.slane %v2226, 7
        %v2306 = vsel %vm374, %v2304, %v2305
        %v2339 = vsel %vm374, 0.0, %v2259
        %v2340 = vsel %vm374, 0.0, %v2262
        %v2341 = vsel %vm374, 0.0, %v2265
        %v2342 = vsel %vm374, 0.0, %v2268
        %v2343 = vsel %vm374, 0.0, %v2271
        %v2344 = vsel %vm374, 0.0, %v2274
        %v2345 = vsel %vm374, 0.0, %v2277
        %v2346 = vsel %vm374, 0.0, %v2280
        %v2347 = vsel %vm374, 0.0, %v2283
        %v2348 = vsel %vm374, 0.0, %v2286
        %v2349 = vsel %vm374, 0.0, %v2289
        %v2350 = vsel %vm374, 0.0, %v2292
        %v2351 = vsel %vm374, 0.0, %v2295
        %v2352 = vsel %vm374, 0.0, %v2298
        %v2353 = vsel %vm374, 0.0, %v2301
        %v2354 = vsel %vm374, 0.0, %v2304
        %v2355 = vsel %vm374, %v2260, 0.0
        %v2356 = vsel %vm374, %v2263, 0.0
        %v2357 = vsel %vm374, %v2266, 0.0
        %v2358 = vsel %vm374, %v2269, 0.0
        %v2359 = vsel %vm374, %v2272, 0.0
        %v2360 = vsel %vm374, %v2275, 0.0
        %v2361 = vsel %vm374, %v2278, 0.0
        %v2362 = vsel %vm374, %v2281, 0.0
        %v2363 = vsel %vm374, %v2284, 0.0
        %v2364 = vsel %vm374, %v2287, 0.0
        %v2365 = vsel %vm374, %v2290, 0.0
        %v2366 = vsel %vm374, %v2293, 0.0
        %v2367 = vsel %vm374, %v2296, 0.0
        %v2368 = vsel %vm374, %v2299, 0.0
        %v2369 = vsel %vm374, %v2302, 0.0
        %v2370 = vsel %vm374, %v2305, 0.0
        %v2371 = vld [vmem:[%s3] sm:$0xff]
        %v2372 = vld [vmem:[%s3 + $0x8] sm:$0xff]
        %v2373 = vld [vmem:[%s3 + $0x10] sm:$0xff]
        %v2374 = vld [vmem:[%s3 + $0x18] sm:$0xff]
        %v2375 = vld [vmem:[%s3 + $0x20] sm:$0xff]
        %v2376 = vld [vmem:[%s3 + $0x28] sm:$0xff]
        %v2377 = vld [vmem:[%s3 + $0x30] sm:$0xff]
        %v2378 = vld [vmem:[%s3 + $0x38] sm:$0xff]
        %v2379 = vld [vmem:[%s3 + $0x40] sm:$0xff]
        %v2410 = vrot.slane %v2339, 1
        %v2411 = vrot.slane %v2261, 1
        %v2412 = vsel %vm523, %v2410, %v2411
        %v2413 = vrot.slane %v2355, 1
        %v2414 = vsel %vm523, %v2411, %v2413
        %v2415 = vrot.slane %v2340, 1
        %v2416 = vrot.slane %v2264, 1
        %v2417 = vsel %vm523, %v2415, %v2416
        %v2418 = vrot.slane %v2356, 1
        %v2419 = vsel %vm523, %v2416, %v2418
        %v2420 = vrot.slane %v2341, 1
        %v2421 = vrot.slane %v2267, 1
        %v2422 = vsel %vm523, %v2420, %v2421
        %v2423 = vrot.slane %v2357, 1
        %v2424 = vsel %vm523, %v2421, %v2423
        %v2425 = vrot.slane %v2342, 1
        %v2426 = vrot.slane %v2270, 1
        %v2427 = vsel %vm523, %v2425, %v2426
        %v2428 = vrot.slane %v2358, 1
        %v2429 = vsel %vm523, %v2426, %v2428
        %v2430 = vrot.slane %v2343, 1
        %v2431 = vrot.slane %v2273, 1
        %v2432 = vsel %vm523, %v2430, %v2431
        %v2433 = vrot.slane %v2359, 1
        %v2434 = vsel %vm523, %v2431, %v2433
        %v2435 = vrot.slane %v2344, 1
        %v2436 = vrot.slane %v2276, 1
        %v2437 = vsel %vm523, %v2435, %v2436
        %v2438 = vrot.slane %v2360, 1
        %v2439 = vsel %vm523, %v2436, %v2438
        %v2440 = vrot.slane %v2345, 1
        %v2441 = vrot.slane %v2279, 1
        %v2442 = vsel %vm523, %v2440, %v2441
        %v2443 = vrot.slane %v2361, 1
        %v2444 = vsel %vm523, %v2441, %v2443
        %v2445 = vrot.slane %v2346, 1
        %v2446 = vrot.slane %v2282, 1
        %v2447 = vsel %vm523, %v2445, %v2446
        %v2448 = vrot.slane %v2362, 1
        %v2449 = vsel %vm523, %v2446, %v2448
        %v2450 = vrot.slane %v2347, 1
        %v2451 = vrot.slane %v2285, 1
        %v2452 = vsel %vm523, %v2450, %v2451
        %v2453 = vrot.slane %v2363, 1
        %v2454 = vsel %vm523, %v2451, %v2453
        %v2455 = vrot.slane %v2348, 1
        %v2456 = vrot.slane %v2288, 1
        %v2457 = vsel %vm523, %v2455, %v2456
        %v2458 = vrot.slane %v2364, 1
        %v2459 = vsel %vm523, %v2456, %v2458
        %v2460 = vrot.slane %v2349, 1
        %v2461 = vrot.slane %v2291, 1
        %v2462 = vsel %vm523, %v2460, %v2461
        %v2463 = vrot.slane %v2365, 1
        %v2464 = vsel %vm523, %v2461, %v2463
        %v2465 = vrot.slane %v2350, 1
        %v2466 = vrot.slane %v2294, 1
        %v2467 = vsel %vm523, %v2465, %v2466
        %v2468 = vrot.slane %v2366, 1
        %v2469 = vsel %vm523, %v2466, %v2468
        %v2470 = vrot.slane %v2351, 1
        %v2471 = vrot.slane %v2297, 1
        %v2472 = vsel %vm523, %v2470, %v2471
        %v2473 = vrot.slane %v2367, 1
        %v2474 = vsel %vm523, %v2471, %v2473
        %v2475 = vrot.slane %v2352, 1
        %v2476 = vrot.slane %v2300, 1
        %v2477 = vsel %vm523, %v2475, %v2476
        %v2478 = vrot.slane %v2368, 1
        %v2479 = vsel %vm523, %v2476, %v2478
        %v2480 = vrot.slane %v2353, 1
        %v2481 = vrot.slane %v2303, 1
        %v2482 = vsel %vm523, %v2480, %v2481
        %v2483 = vrot.slane %v2369, 1
        %v2484 = vsel %vm523, %v2481, %v2483
        %vm2485 = vcmask 64512
        %v2486 = vsel %vm2485, %v525, 0
        %v2488 = vsel %vm2485, %v2412, 0
        %v2490 = vsel %vm2485, %v2414, 0
        %v2492 = vsel %vm2485, %v2417, 0
        %v2494 = vsel %vm2485, %v2419, 0
        %v2496 = vsel %vm2485, %v2422, 0
        %v2498 = vsel %vm2485, %v2424, 0
        %v2500 = vsel %vm2485, %v2427, 0
        %v2502 = vsel %vm2485, %v2429, 0
        %v2504 = vsel %vm2485, %v2432, 0
        %v2506 = vsel %vm2485, %v2434, 0
        %v2508 = vsel %vm2485, %v2437, 0
        %v2510 = vsel %vm2485, %v2439, 0
        %v2512 = vsel %vm2485, %v2442, 0
        %v2514 = vsel %vm2485, %v2444, 0
        %v2516 = vsel %vm2485, %v2447, 0
        %v2518 = vsel %vm2485, %v2449, 0
        %v2520 = vsel %vm2485, %v2452, 0
        %v2522 = vsel %vm2485, %v2454, 0
        %v2524 = vsel %vm2485, %v2457, 0
        %v2526 = vsel %vm2485, %v2459, 0
        %v2528 = vsel %vm2485, %v2462, 0
        %v2530 = vsel %vm2485, %v2464, 0
        %v2532 = vsel %vm2485, %v2467, 0
        %v2534 = vsel %vm2485, %v2469, 0
        %v2536 = vsel %vm2485, %v2472, 0
        %v2538 = vsel %vm2485, %v2474, 0
        %v2540 = vsel %vm2485, %v2477, 0
        %v2542 = vsel %vm2485, %v2479, 0
        %v2544 = vsel %vm2485, %v2482, 0
        %v2546 = vsel %vm2485, %v2484, 0
        %2548 = vmatpush.msra.mxu0 0.0
        %2549 = vmatpush.msra.mxu0 0.0
        %2550 = vmatpush.msra.mxu0 0.0
        %2551 = vmatpush.msra.mxu0 0.0
        %2552 = vmatpush.msra.mxu0 0.0
        %2553 = vmatpush.msra.mxu0 0.0
        %2554 = vmatpush.msra.mxu0 0.0
        %2555 = vmatpush.msra.mxu0 0.0
        %2556 = vmatpush.msra.mxu0 0.0
        %2557 = vmatpush.msra.mxu0 0.0
        %2558 = vmatpush.msra.mxu0 0.0
        %2559 = vmatpush.msra.mxu0 0.0
        %2560 = vmatpush.msra.mxu0 0.0
        %2561 = vmatpush.msra.mxu0 0.0
        %2562 = vmatpush.msra.mxu0 0.0
        %2563 = vmatpush.msra.mxu0 %v2372
        %2564 = vmatmul.f32.gmra.mxu0 %v2486
        %v2565 = vpop.f32.mrf.mxu0
        %v2566 = vadd.f32 0.0, %v2565
        %2567 = vmatmul.f32.gmra.mxu0 %v2486
        %v2568 = vpop.f32.mrf.mxu0
        %v2569 = vadd.f32 0.0, %v2568
        %2570 = vmatmul.f32.gmra.mxu0 %v2488
        %v2571 = vpop.f32.mrf.mxu0
        %v2572 = vadd.f32 0.0, %v2571
        %2573 = vmatmul.f32.gmra.mxu0 %v2490
        %v2574 = vpop.f32.mrf.mxu0
        %v2575 = vadd.f32 0.0, %v2574
        %2576 = vmatmul.f32.gmra.mxu0 %v2492
        %v2577 = vpop.f32.mrf.mxu0
        %v2578 = vadd.f32 0.0, %v2577
        %2579 = vmatmul.f32.gmra.mxu0 %v2494
        %v2580 = vpop.f32.mrf.mxu0
        %v2581 = vadd.f32 0.0, %v2580
        %2582 = vmatmul.f32.gmra.mxu0 %v2496
        %v2583 = vpop.f32.mrf.mxu0
        %v2584 = vadd.f32 0.0, %v2583
        %2585 = vmatmul.f32.gmra.mxu0 %v2498
        %v2586 = vpop.f32.mrf.mxu0
        %v2587 = vadd.f32 0.0, %v2586
        %2588 = vmatmul.f32.gmra.mxu0 %v2500
        %v2589 = vpop.f32.mrf.mxu0
        %v2590 = vadd.f32 0.0, %v2589
        %2591 = vmatmul.f32.gmra.mxu0 %v2502
        %v2592 = vpop.f32.mrf.mxu0
        %v2593 = vadd.f32 0.0, %v2592
        %2594 = vmatmul.f32.gmra.mxu0 %v2504
        %v2595 = vpop.f32.mrf.mxu0
        %v2596 = vadd.f32 0.0, %v2595
        %2597 = vmatmul.f32.gmra.mxu0 %v2506
        %v2598 = vpop.f32.mrf.mxu0
        %v2599 = vadd.f32 0.0, %v2598
        %2600 = vmatmul.f32.gmra.mxu0 %v2508
        %v2601 = vpop.f32.mrf.mxu0
        %v2602 = vadd.f32 0.0, %v2601
        %2603 = vmatmul.f32.gmra.mxu0 %v2510
        %v2604 = vpop.f32.mrf.mxu0
        %v2605 = vadd.f32 0.0, %v2604
        %2606 = vmatmul.f32.gmra.mxu0 %v2512
        %v2607 = vpop.f32.mrf.mxu0
        %v2608 = vadd.f32 0.0, %v2607
        %2609 = vmatmul.f32.gmra.mxu0 %v2514
        %v2610 = vpop.f32.mrf.mxu0
        %v2611 = vadd.f32 0.0, %v2610
        %2612 = vmatmul.f32.gmra.mxu0 %v2516
        %v2613 = vpop.f32.mrf.mxu0
        %v2614 = vadd.f32 0.0, %v2613
        %2615 = vmatmul.f32.gmra.mxu0 %v2518
        %v2616 = vpop.f32.mrf.mxu0
        %v2617 = vadd.f32 0.0, %v2616
        %2618 = vmatmul.f32.gmra.mxu0 %v2520
        %v2619 = vpop.f32.mrf.mxu0
        %v2620 = vadd.f32 0.0, %v2619
        %2621 = vmatmul.f32.gmra.mxu0 %v2522
        %v2622 = vpop.f32.mrf.mxu0
        %v2623 = vadd.f32 0.0, %v2622
        %2624 = vmatmul.f32.gmra.mxu0 %v2524
        %v2625 = vpop.f32.mrf.mxu0
        %v2626 = vadd.f32 0.0, %v2625
        %2627 = vmatmul.f32.gmra.mxu0 %v2526
        %v2628 = vpop.f32.mrf.mxu0
        %v2629 = vadd.f32 0.0, %v2628
        %2630 = vmatmul.f32.gmra.mxu0 %v2528
        %v2631 = vpop.f32.mrf.mxu0
        %v2632 = vadd.f32 0.0, %v2631
        %2633 = vmatmul.f32.gmra.mxu0 %v2530
        %v2634 = vpop.f32.mrf.mxu0
        %v2635 = vadd.f32 0.0, %v2634
        %2636 = vmatmul.f32.gmra.mxu0 %v2532
        %v2637 = vpop.f32.mrf.mxu0
        %v2638 = vadd.f32 0.0, %v2637
        %2639 = vmatmul.f32.gmra.mxu0 %v2534
        %v2640 = vpop.f32.mrf.mxu0
        %v2641 = vadd.f32 0.0, %v2640
        %2642 = vmatmul.f32.gmra.mxu0 %v2536
        %v2643 = vpop.f32.mrf.mxu0
        %v2644 = vadd.f32 0.0, %v2643
        %2645 = vmatmul.f32.gmra.mxu0 %v2538
        %v2646 = vpop.f32.mrf.mxu0
        %v2647 = vadd.f32 0.0, %v2646
        %2648 = vmatmul.f32.gmra.mxu0 %v2540
        %v2649 = vpop.f32.mrf.mxu0
        %v2650 = vadd.f32 0.0, %v2649
        %2651 = vmatmul.f32.gmra.mxu0 %v2542
        %v2652 = vpop.f32.mrf.mxu0
        %v2653 = vadd.f32 0.0, %v2652
        %2654 = vmatmul.f32.gmra.mxu0 %v2544
        %v2655 = vpop.f32.mrf.mxu0
        %v2656 = vadd.f32 0.0, %v2655
        %2657 = vmatmul.f32.gmra.mxu0 %v2546
        %v2658 = vpop.f32.mrf.mxu0
        %v2659 = vadd.f32 0.0, %v2658
        %2660 = vdwg.mxu0
        %v2661 = vsel %vm2485, 0.0, 0
        %v2663 = vsel %vm2485, %v2339, 0
        %v2665 = vsel %vm2485, %v2261, 0
        %v2667 = vsel %vm2485, %v2340, 0
        %v2669 = vsel %vm2485, %v2264, 0
        %v2671 = vsel %vm2485, %v2341, 0
        %v2673 = vsel %vm2485, %v2267, 0
        %v2675 = vsel %vm2485, %v2342, 0
        %v2677 = vsel %vm2485, %v2270, 0
        %v2679 = vsel %vm2485, %v2343, 0
        %v2681 = vsel %vm2485, %v2273, 0
        %v2683 = vsel %vm2485, %v2344, 0
        %v2685 = vsel %vm2485, %v2276, 0
        %v2687 = vsel %vm2485, %v2345, 0
        %v2689 = vsel %vm2485, %v2279, 0
        %v2691 = vsel %vm2485, %v2346, 0
        %v2693 = vsel %vm2485, %v2282, 0
        %v2695 = vsel %vm2485, %v2347, 0
        %v2697 = vsel %vm2485, %v2285, 0
        %v2699 = vsel %vm2485, %v2348, 0
        %v2701 = vsel %vm2485, %v2288, 0
        %v2703 = vsel %vm2485, %v2349, 0
        %v2705 = vsel %vm2485, %v2291, 0
        %v2707 = vsel %vm2485, %v2350, 0
        %v2709 = vsel %vm2485, %v2294, 0
        %v2711 = vsel %vm2485, %v2351, 0
        %v2713 = vsel %vm2485, %v2297, 0
        %v2715 = vsel %vm2485, %v2352, 0
        %v2717 = vsel %vm2485, %v2300, 0
        %v2719 = vsel %vm2485, %v2353, 0
        %v2721 = vsel %vm2485, %v2303, 0
        %2723 = vmatpush.msra.mxu0 0.0
        %2724 = vmatpush.msra.mxu0 0.0
        %2725 = vmatpush.msra.mxu0 0.0
        %2726 = vmatpush.msra.mxu0 0.0
        %2727 = vmatpush.msra.mxu0 0.0
        %2728 = vmatpush.msra.mxu0 0.0
        %2729 = vmatpush.msra.mxu0 0.0
        %2730 = vmatpush.msra.mxu0 0.0
        %2731 = vmatpush.msra.mxu0 0.0
        %2732 = vmatpush.msra.mxu0 0.0
        %2733 = vmatpush.msra.mxu0 0.0
        %2734 = vmatpush.msra.mxu0 0.0
        %2735 = vmatpush.msra.mxu0 0.0
        %2736 = vmatpush.msra.mxu0 0.0
        %2737 = vmatpush.msra.mxu0 0.0
        %2738 = vmatpush.msra.mxu0 %v2371
        %2739 = vmatmul.f32.gmra.mxu0 %v2661
        %v2740 = vpop.f32.mrf.mxu0
        %v2741 = vadd.f32 %v2566, %v2740
        %2742 = vmatmul.f32.gmra.mxu0 %v2661
        %v2743 = vpop.f32.mrf.mxu0
        %v2744 = vadd.f32 %v2569, %v2743
        %2745 = vmatmul.f32.gmra.mxu0 %v2663
        %v2746 = vpop.f32.mrf.mxu0
        %v2747 = vadd.f32 %v2572, %v2746
        %2748 = vmatmul.f32.gmra.mxu0 %v2665
        %v2749 = vpop.f32.mrf.mxu0
        %v2750 = vadd.f32 %v2575, %v2749
        %2751 = vmatmul.f32.gmra.mxu0 %v2667
        %v2752 = vpop.f32.mrf.mxu0
        %v2753 = vadd.f32 %v2578, %v2752
        %2754 = vmatmul.f32.gmra.mxu0 %v2669
        %v2755 = vpop.f32.mrf.mxu0
        %v2756 = vadd.f32 %v2581, %v2755
        %2757 = vmatmul.f32.gmra.mxu0 %v2671
        %v2758 = vpop.f32.mrf.mxu0
        %v2759 = vadd.f32 %v2584, %v2758
        %2760 = vmatmul.f32.gmra.mxu0 %v2673
        %v2761 = vpop.f32.mrf.mxu0
        %v2762 = vadd.f32 %v2587, %v2761
        %2763 = vmatmul.f32.gmra.mxu0 %v2675
        %v2764 = vpop.f32.mrf.mxu0
        %v2765 = vadd.f32 %v2590, %v2764
        %2766 = vmatmul.f32.gmra.mxu0 %v2677
        %v2767 = vpop.f32.mrf.mxu0
        %v2768 = vadd.f32 %v2593, %v2767
        %2769 = vmatmul.f32.gmra.mxu0 %v2679
        %v2770 = vpop.f32.mrf.mxu0
        %v2771 = vadd.f32 %v2596, %v2770
        %2772 = vmatmul.f32.gmra.mxu0 %v2681
        %v2773 = vpop.f32.mrf.mxu0
        %v2774 = vadd.f32 %v2599, %v2773
        %2775 = vmatmul.f32.gmra.mxu0 %v2683
        %v2776 = vpop.f32.mrf.mxu0
        %v2777 = vadd.f32 %v2602, %v2776
        %2778 = vmatmul.f32.gmra.mxu0 %v2685
        %v2779 = vpop.f32.mrf.mxu0
        %v2780 = vadd.f32 %v2605, %v2779
        %2781 = vmatmul.f32.gmra.mxu0 %v2687
        %v2782 = vpop.f32.mrf.mxu0
        %v2783 = vadd.f32 %v2608, %v2782
        %2784 = vmatmul.f32.gmra.mxu0 %v2689
        %v2785 = vpop.f32.mrf.mxu0
        %v2786 = vadd.f32 %v2611, %v2785
        %2787 = vmatmul.f32.gmra.mxu0 %v2691
        %v2788 = vpop.f32.mrf.mxu0
        %v2789 = vadd.f32 %v2614, %v2788
        %2790 = vmatmul.f32.gmra.mxu0 %v2693
        %v2791 = vpop.f32.mrf.mxu0
        %v2792 = vadd.f32 %v2617, %v2791
        %2793 = vmatmul.f32.gmra.mxu0 %v2695
        %v2794 = vpop.f32.mrf.mxu0
        %v2795 = vadd.f32 %v2620, %v2794
        %2796 = vmatmul.f32.gmra.mxu0 %v2697
        %v2797 = vpop.f32.mrf.mxu0
        %v2798 = vadd.f32 %v2623, %v2797
        %2799 = vmatmul.f32.gmra.mxu0 %v2699
        %v2800 = vpop.f32.mrf.mxu0
        %v2801 = vadd.f32 %v2626, %v2800
        %2802 = vmatmul.f32.gmra.mxu0 %v2701
        %v2803 = vpop.f32.mrf.mxu0
        %v2804 = vadd.f32 %v2629, %v2803
        %2805 = vmatmul.f32.gmra.mxu0 %v2703
        %v2806 = vpop.f32.mrf.mxu0
        %v2807 = vadd.f32 %v2632, %v2806
        %2808 = vmatmul.f32.gmra.mxu0 %v2705
        %v2809 = vpop.f32.mrf.mxu0
        %v2810 = vadd.f32 %v2635, %v2809
        %2811 = vmatmul.f32.gmra.mxu0 %v2707
        %v2812 = vpop.f32.mrf.mxu0
        %v2813 = vadd.f32 %v2638, %v2812
        %2814 = vmatmul.f32.gmra.mxu0 %v2709
        %v2815 = vpop.f32.mrf.mxu0
        %v2816 = vadd.f32 %v2641, %v2815
        %2817 = vmatmul.f32.gmra.mxu0 %v2711
        %v2818 = vpop.f32.mrf.mxu0
        %v2819 = vadd.f32 %v2644, %v2818
        %2820 = vmatmul.f32.gmra.mxu0 %v2713
        %v2821 = vpop.f32.mrf.mxu0
        %v2822 = vadd.f32 %v2647, %v2821
        %2823 = vmatmul.f32.gmra.mxu0 %v2715
        %v2824 = vpop.f32.mrf.mxu0
        %v2825 = vadd.f32 %v2650, %v2824
        %2826 = vmatmul.f32.gmra.mxu0 %v2717
        %v2827 = vpop.f32.mrf.mxu0
        %v2828 = vadd.f32 %v2653, %v2827
        %2829 = vmatmul.f32.gmra.mxu0 %v2719
        %v2830 = vpop.f32.mrf.mxu0
        %v2831 = vadd.f32 %v2656, %v2830
        %2832 = vmatmul.f32.gmra.mxu0 %v2721
        %v2833 = vpop.f32.mrf.mxu0
        %v2834 = vadd.f32 %v2659, %v2833
        %2835 = vdwg.mxu0
        %v2836 = vrot.slane %v2339, 2
        %v2837 = vrot.slane %v2261, 2
        %v2838 = vsel %vm959, %v2836, %v2837
        %v2839 = vrot.slane %v2355, 2
        %v2840 = vsel %vm959, %v2837, %v2839
        %v2841 = vrot.slane %v2340, 2
        %v2842 = vrot.slane %v2264, 2
        %v2843 = vsel %vm959, %v2841, %v2842
        %v2844 = vrot.slane %v2356, 2
        %v2845 = vsel %vm959, %v2842, %v2844
        %v2846 = vrot.slane %v2341, 2
        %v2847 = vrot.slane %v2267, 2
        %v2848 = vsel %vm959, %v2846, %v2847
        %v2849 = vrot.slane %v2357, 2
        %v2850 = vsel %vm959, %v2847, %v2849
        %v2851 = vrot.slane %v2342, 2
        %v2852 = vrot.slane %v2270, 2
        %v2853 = vsel %vm959, %v2851, %v2852
        %v2854 = vrot.slane %v2358, 2
        %v2855 = vsel %vm959, %v2852, %v2854
        %v2856 = vrot.slane %v2343, 2
        %v2857 = vrot.slane %v2273, 2
        %v2858 = vsel %vm959, %v2856, %v2857
        %v2859 = vrot.slane %v2359, 2
        %v2860 = vsel %vm959, %v2857, %v2859
        %v2861 = vrot.slane %v2344, 2
        %v2862 = vrot.slane %v2276, 2
        %v2863 = vsel %vm959, %v2861, %v2862
        %v2864 = vrot.slane %v2360, 2
        %v2865 = vsel %vm959, %v2862, %v2864
        %v2866 = vrot.slane %v2345, 2
        %v2867 = vrot.slane %v2279, 2
        %v2868 = vsel %vm959, %v2866, %v2867
        %v2869 = vrot.slane %v2361, 2
        %v2870 = vsel %vm959, %v2867, %v2869
        %v2871 = vrot.slane %v2346, 2
        %v2872 = vrot.slane %v2282, 2
        %v2873 = vsel %vm959, %v2871, %v2872
        %v2874 = vrot.slane %v2362, 2
        %v2875 = vsel %vm959, %v2872, %v2874
        %v2876 = vrot.slane %v2347, 2
        %v2877 = vrot.slane %v2285, 2
        %v2878 = vsel %vm959, %v2876, %v2877
        %v2879 = vrot.slane %v2363, 2
        %v2880 = vsel %vm959, %v2877, %v2879
        %v2881 = vrot.slane %v2348, 2
        %v2882 = vrot.slane %v2288, 2
        %v2883 = vsel %vm959, %v2881, %v2882
        %v2884 = vrot.slane %v2364, 2
        %v2885 = vsel %vm959, %v2882, %v2884
        %v2886 = vrot.slane %v2349, 2
        %v2887 = vrot.slane %v2291, 2
        %v2888 = vsel %vm959, %v2886, %v2887
        %v2889 = vrot.slane %v2365, 2
        %v2890 = vsel %vm959, %v2887, %v2889
        %v2891 = vrot.slane %v2350, 2
        %v2892 = vrot.slane %v2294, 2
        %v2893 = vsel %vm959, %v2891, %v2892
        %v2894 = vrot.slane %v2366, 2
        %v2895 = vsel %vm959, %v2892, %v2894
        %v2896 = vrot.slane %v2351, 2
        %v2897 = vrot.slane %v2297, 2
        %v2898 = vsel %vm959, %v2896, %v2897
        %v2899 = vrot.slane %v2367, 2
        %v2900 = vsel %vm959, %v2897, %v2899
        %v2901 = vrot.slane %v2352, 2
        %v2902 = vrot.slane %v2300, 2
        %v2903 = vsel %vm959, %v2901, %v2902
        %v2904 = vrot.slane %v2368, 2
        %v2905 = vsel %vm959, %v2902, %v2904
        %v2906 = vrot.slane %v2353, 2
        %v2907 = vrot.slane %v2303, 2
        %v2908 = vsel %vm959, %v2906, %v2907
        %v2909 = vrot.slane %v2369, 2
        %v2910 = vsel %vm959, %v2907, %v2909
        %v2911 = vsel %vm2485, %v961, 0
        %v2913 = vsel %vm2485, %v2838, 0
        %v2915 = vsel %vm2485, %v2840, 0
        %v2917 = vsel %vm2485, %v2843, 0
        %v2919 = vsel %vm2485, %v2845, 0
        %v2921 = vsel %vm2485, %v2848, 0
        %v2923 = vsel %vm2485, %v2850, 0
        %v2925 = vsel %vm2485, %v2853, 0
        %v2927 = vsel %vm2485, %v2855, 0
        %v2929 = vsel %vm2485, %v2858, 0
        %v2931 = vsel %vm2485, %v2860, 0
        %v2933 = vsel %vm2485, %v2863, 0
        %v2935 = vsel %vm2485, %v2865, 0
        %v2937 = vsel %vm2485, %v2868, 0
        %v2939 = vsel %vm2485, %v2870, 0
        %v2941 = vsel %vm2485, %v2873, 0
        %v2943 = vsel %vm2485, %v2875, 0
        %v2945 = vsel %vm2485, %v2878, 0
        %v2947 = vsel %vm2485, %v2880, 0
        %v2949 = vsel %vm2485, %v2883, 0
        %v2951 = vsel %vm2485, %v2885, 0
        %v2953 = vsel %vm2485, %v2888, 0
        %v2955 = vsel %vm2485, %v2890, 0
        %v2957 = vsel %vm2485, %v2893, 0
        %v2959 = vsel %vm2485, %v2895, 0
        %v2961 = vsel %vm2485, %v2898, 0
        %v2963 = vsel %vm2485, %v2900, 0
        %v2965 = vsel %vm2485, %v2903, 0
        %v2967 = vsel %vm2485, %v2905, 0
        %v2969 = vsel %vm2485, %v2908, 0
        %v2971 = vsel %vm2485, %v2910, 0
        %2973 = vmatpush.msra.mxu0 0.0
        %2974 = vmatpush.msra.mxu0 0.0
        %2975 = vmatpush.msra.mxu0 0.0
        %2976 = vmatpush.msra.mxu0 0.0
        %2977 = vmatpush.msra.mxu0 0.0
        %2978 = vmatpush.msra.mxu0 0.0
        %2979 = vmatpush.msra.mxu0 0.0
        %2980 = vmatpush.msra.mxu0 0.0
        %2981 = vmatpush.msra.mxu0 0.0
        %2982 = vmatpush.msra.mxu0 0.0
        %2983 = vmatpush.msra.mxu0 0.0
        %2984 = vmatpush.msra.mxu0 0.0
        %2985 = vmatpush.msra.mxu0 0.0
        %2986 = vmatpush.msra.mxu0 0.0
        %2987 = vmatpush.msra.mxu0 0.0
        %2988 = vmatpush.msra.mxu0 %v2373
        %2989 = vmatmul.f32.gmra.mxu0 %v2911
        %v2990 = vpop.f32.mrf.mxu0
        %v2991 = vadd.f32 0.0, %v2990
        %2992 = vmatmul.f32.gmra.mxu0 %v2911
        %v2993 = vpop.f32.mrf.mxu0
        %v2994 = vadd.f32 0.0, %v2993
        %2995 = vmatmul.f32.gmra.mxu0 %v2913
        %v2996 = vpop.f32.mrf.mxu0
        %v2997 = vadd.f32 0.0, %v2996
        %2998 = vmatmul.f32.gmra.mxu0 %v2915
        %v2999 = vpop.f32.mrf.mxu0
        %v3000 = vadd.f32 0.0, %v2999
        %3001 = vmatmul.f32.gmra.mxu0 %v2917
        %v3002 = vpop.f32.mrf.mxu0
        %v3003 = vadd.f32 0.0, %v3002
        %3004 = vmatmul.f32.gmra.mxu0 %v2919
        %v3005 = vpop.f32.mrf.mxu0
        %v3006 = vadd.f32 0.0, %v3005
        %3007 = vmatmul.f32.gmra.mxu0 %v2921
        %v3008 = vpop.f32.mrf.mxu0
        %v3009 = vadd.f32 0.0, %v3008
        %3010 = vmatmul.f32.gmra.mxu0 %v2923
        %v3011 = vpop.f32.mrf.mxu0
        %v3012 = vadd.f32 0.0, %v3011
        %3013 = vmatmul.f32.gmra.mxu0 %v2925
        %v3014 = vpop.f32.mrf.mxu0
        %v3015 = vadd.f32 0.0, %v3014
        %3016 = vmatmul.f32.gmra.mxu0 %v2927
        %v3017 = vpop.f32.mrf.mxu0
        %v3018 = vadd.f32 0.0, %v3017
        %3019 = vmatmul.f32.gmra.mxu0 %v2929
        %v3020 = vpop.f32.mrf.mxu0
        %v3021 = vadd.f32 0.0, %v3020
        %3022 = vmatmul.f32.gmra.mxu0 %v2931
        %v3023 = vpop.f32.mrf.mxu0
        %v3024 = vadd.f32 0.0, %v3023
        %3025 = vmatmul.f32.gmra.mxu0 %v2933
        %v3026 = vpop.f32.mrf.mxu0
        %v3027 = vadd.f32 0.0, %v3026
        %3028 = vmatmul.f32.gmra.mxu0 %v2935
        %v3029 = vpop.f32.mrf.mxu0
        %v3030 = vadd.f32 0.0, %v3029
        %3031 = vmatmul.f32.gmra.mxu0 %v2937
        %v3032 = vpop.f32.mrf.mxu0
        %v3033 = vadd.f32 0.0, %v3032
        %3034 = vmatmul.f32.gmra.mxu0 %v2939
        %v3035 = vpop.f32.mrf.mxu0
        %v3036 = vadd.f32 0.0, %v3035
        %3037 = vmatmul.f32.gmra.mxu0 %v2941
        %v3038 = vpop.f32.mrf.mxu0
        %v3039 = vadd.f32 0.0, %v3038
        %3040 = vmatmul.f32.gmra.mxu0 %v2943
        %v3041 = vpop.f32.mrf.mxu0
        %v3042 = vadd.f32 0.0, %v3041
        %3043 = vmatmul.f32.gmra.mxu0 %v2945
        %v3044 = vpop.f32.mrf.mxu0
        %v3045 = vadd.f32 0.0, %v3044
        %3046 = vmatmul.f32.gmra.mxu0 %v2947
        %v3047 = vpop.f32.mrf.mxu0
        %v3048 = vadd.f32 0.0, %v3047
        %3049 = vmatmul.f32.gmra.mxu0 %v2949
        %v3050 = vpop.f32.mrf.mxu0
        %v3051 = vadd.f32 0.0, %v3050
        %3052 = vmatmul.f32.gmra.mxu0 %v2951
        %v3053 = vpop.f32.mrf.mxu0
        %v3054 = vadd.f32 0.0, %v3053
        %3055 = vmatmul.f32.gmra.mxu0 %v2953
        %v3056 = vpop.f32.mrf.mxu0
        %v3057 = vadd.f32 0.0, %v3056
        %3058 = vmatmul.f32.gmra.mxu0 %v2955
        %v3059 = vpop.f32.mrf.mxu0
        %v3060 = vadd.f32 0.0, %v3059
        %3061 = vmatmul.f32.gmra.mxu0 %v2957
        %v3062 = vpop.f32.mrf.mxu0
        %v3063 = vadd.f32 0.0, %v3062
        %3064 = vmatmul.f32.gmra.mxu0 %v2959
        %v3065 = vpop.f32.mrf.mxu0
        %v3066 = vadd.f32 0.0, %v3065
        %3067 = vmatmul.f32.gmra.mxu0 %v2961
        %v3068 = vpop.f32.mrf.mxu0
        %v3069 = vadd.f32 0.0, %v3068
        %3070 = vmatmul.f32.gmra.mxu0 %v2963
        %v3071 = vpop.f32.mrf.mxu0
        %v3072 = vadd.f32 0.0, %v3071
        %3073 = vmatmul.f32.gmra.mxu0 %v2965
        %v3074 = vpop.f32.mrf.mxu0
        %v3075 = vadd.f32 0.0, %v3074
        %3076 = vmatmul.f32.gmra.mxu0 %v2967
        %v3077 = vpop.f32.mrf.mxu0
        %v3078 = vadd.f32 0.0, %v3077
        %3079 = vmatmul.f32.gmra.mxu0 %v2969
        %v3080 = vpop.f32.mrf.mxu0
        %v3081 = vadd.f32 0.0, %v3080
        %3082 = vmatmul.f32.gmra.mxu0 %v2971
        %v3083 = vpop.f32.mrf.mxu0
        %v3084 = vadd.f32 0.0, %v3083
        %3085 = vdwg.mxu0
        %v3086 = vadd.f32 %v2741, %v2991
        %v3087 = vadd.f32 %v2744, %v2994
        %v3088 = vadd.f32 %v2747, %v2997
        %v3089 = vadd.f32 %v2750, %v3000
        %v3090 = vadd.f32 %v2753, %v3003
        %v3091 = vadd.f32 %v2756, %v3006
        %v3092 = vadd.f32 %v2759, %v3009
        %v3093 = vadd.f32 %v2762, %v3012
        %v3094 = vadd.f32 %v2765, %v3015
        %v3095 = vadd.f32 %v2768, %v3018
        %v3096 = vadd.f32 %v2771, %v3021
        %v3097 = vadd.f32 %v2774, %v3024
        %v3098 = vadd.f32 %v2777, %v3027
        %v3099 = vadd.f32 %v2780, %v3030
        %v3100 = vadd.f32 %v2783, %v3033
        %v3101 = vadd.f32 %v2786, %v3036
        %v3102 = vadd.f32 %v2789, %v3039
        %v3103 = vadd.f32 %v2792, %v3042
        %v3104 = vadd.f32 %v2795, %v3045
        %v3105 = vadd.f32 %v2798, %v3048
        %v3106 = vadd.f32 %v2801, %v3051
        %v3107 = vadd.f32 %v2804, %v3054
        %v3108 = vadd.f32 %v2807, %v3057
        %v3109 = vadd.f32 %v2810, %v3060
        %v3110 = vadd.f32 %v2813, %v3063
        %v3111 = vadd.f32 %v2816, %v3066
        %v3112 = vadd.f32 %v2819, %v3069
        %v3113 = vadd.f32 %v2822, %v3072
        %v3114 = vadd.f32 %v2825, %v3075
        %v3115 = vadd.f32 %v2828, %v3078
        %v3116 = vadd.f32 %v2831, %v3081
        %v3117 = vadd.f32 %v2834, %v3084
        %v3119 = vsel %vm2485, %v2354, 0
        %v3121 = vsel %vm2485, %v2306, 0
        %3123 = vmatpush.msra.mxu0 0.0
        %3124 = vmatpush.msra.mxu0 0.0
        %3125 = vmatpush.msra.mxu0 0.0
        %3126 = vmatpush.msra.mxu0 0.0
        %3127 = vmatpush.msra.mxu0 0.0
        %3128 = vmatpush.msra.mxu0 0.0
        %3129 = vmatpush.msra.mxu0 0.0
        %3130 = vmatpush.msra.mxu0 0.0
        %3131 = vmatpush.msra.mxu0 0.0
        %3132 = vmatpush.msra.mxu0 0.0
        %3133 = vmatpush.msra.mxu0 0.0
        %3134 = vmatpush.msra.mxu0 0.0
        %3135 = vmatpush.msra.mxu0 0.0
        %3136 = vmatpush.msra.mxu0 0.0
        %3137 = vmatpush.msra.mxu0 0.0
        %3138 = vmatpush.msra.mxu0 %v2374
        %3139 = vmatmul.f32.gmra.mxu0 %v2663
        %v3140 = vpop.f32.mrf.mxu0
        %v3141 = vadd.f32 0.0, %v3140
        %3142 = vmatmul.f32.gmra.mxu0 %v2665
        %v3143 = vpop.f32.mrf.mxu0
        %v3144 = vadd.f32 0.0, %v3143
        %3145 = vmatmul.f32.gmra.mxu0 %v2667
        %v3146 = vpop.f32.mrf.mxu0
        %v3147 = vadd.f32 0.0, %v3146
        %3148 = vmatmul.f32.gmra.mxu0 %v2669
        %v3149 = vpop.f32.mrf.mxu0
        %v3150 = vadd.f32 0.0, %v3149
        %3151 = vmatmul.f32.gmra.mxu0 %v2671
        %v3152 = vpop.f32.mrf.mxu0
        %v3153 = vadd.f32 0.0, %v3152
        %3154 = vmatmul.f32.gmra.mxu0 %v2673
        %v3155 = vpop.f32.mrf.mxu0
        %v3156 = vadd.f32 0.0, %v3155
        %3157 = vmatmul.f32.gmra.mxu0 %v2675
        %v3158 = vpop.f32.mrf.mxu0
        %v3159 = vadd.f32 0.0, %v3158
        %3160 = vmatmul.f32.gmra.mxu0 %v2677
        %v3161 = vpop.f32.mrf.mxu0
        %v3162 = vadd.f32 0.0, %v3161
        %3163 = vmatmul.f32.gmra.mxu0 %v2679
        %v3164 = vpop.f32.mrf.mxu0
        %v3165 = vadd.f32 0.0, %v3164
        %3166 = vmatmul.f32.gmra.mxu0 %v2681
        %v3167 = vpop.f32.mrf.mxu0
        %v3168 = vadd.f32 0.0, %v3167
        %3169 = vmatmul.f32.gmra.mxu0 %v2683
        %v3170 = vpop.f32.mrf.mxu0
        %v3171 = vadd.f32 0.0, %v3170
        %3172 = vmatmul.f32.gmra.mxu0 %v2685
        %v3173 = vpop.f32.mrf.mxu0
        %v3174 = vadd.f32 0.0, %v3173
        %3175 = vmatmul.f32.gmra.mxu0 %v2687
        %v3176 = vpop.f32.mrf.mxu0
        %v3177 = vadd.f32 0.0, %v3176
        %3178 = vmatmul.f32.gmra.mxu0 %v2689
        %v3179 = vpop.f32.mrf.mxu0
        %v3180 = vadd.f32 0.0, %v3179
        %3181 = vmatmul.f32.gmra.mxu0 %v2691
        %v3182 = vpop.f32.mrf.mxu0
        %v3183 = vadd.f32 0.0, %v3182
        %3184 = vmatmul.f32.gmra.mxu0 %v2693
        %v3185 = vpop.f32.mrf.mxu0
        %v3186 = vadd.f32 0.0, %v3185
        %3187 = vmatmul.f32.gmra.mxu0 %v2695
        %v3188 = vpop.f32.mrf.mxu0
        %v3189 = vadd.f32 0.0, %v3188
        %3190 = vmatmul.f32.gmra.mxu0 %v2697
        %v3191 = vpop.f32.mrf.mxu0
        %v3192 = vadd.f32 0.0, %v3191
        %3193 = vmatmul.f32.gmra.mxu0 %v2699
        %v3194 = vpop.f32.mrf.mxu0
        %v3195 = vadd.f32 0.0, %v3194
        %3196 = vmatmul.f32.gmra.mxu0 %v2701
        %v3197 = vpop.f32.mrf.mxu0
        %v3198 = vadd.f32 0.0, %v3197
        %3199 = vmatmul.f32.gmra.mxu0 %v2703
        %v3200 = vpop.f32.mrf.mxu0
        %v3201 = vadd.f32 0.0, %v3200
        %3202 = vmatmul.f32.gmra.mxu0 %v2705
        %v3203 = vpop.f32.mrf.mxu0
        %v3204 = vadd.f32 0.0, %v3203
        %3205 = vmatmul.f32.gmra.mxu0 %v2707
        %v3206 = vpop.f32.mrf.mxu0
        %v3207 = vadd.f32 0.0, %v3206
        %3208 = vmatmul.f32.gmra.mxu0 %v2709
        %v3209 = vpop.f32.mrf.mxu0
        %v3210 = vadd.f32 0.0, %v3209
        %3211 = vmatmul.f32.gmra.mxu0 %v2711
        %v3212 = vpop.f32.mrf.mxu0
        %v3213 = vadd.f32 0.0, %v3212
        %3214 = vmatmul.f32.gmra.mxu0 %v2713
        %v3215 = vpop.f32.mrf.mxu0
        %v3216 = vadd.f32 0.0, %v3215
        %3217 = vmatmul.f32.gmra.mxu0 %v2715
        %v3218 = vpop.f32.mrf.mxu0
        %v3219 = vadd.f32 0.0, %v3218
        %3220 = vmatmul.f32.gmra.mxu0 %v2717
        %v3221 = vpop.f32.mrf.mxu0
        %v3222 = vadd.f32 0.0, %v3221
        %3223 = vmatmul.f32.gmra.mxu0 %v2719
        %v3224 = vpop.f32.mrf.mxu0
        %v3225 = vadd.f32 0.0, %v3224
        %3226 = vmatmul.f32.gmra.mxu0 %v2721
        %v3227 = vpop.f32.mrf.mxu0
        %v3228 = vadd.f32 0.0, %v3227
        %3229 = vmatmul.f32.gmra.mxu0 %v3119
        %v3230 = vpop.f32.mrf.mxu0
        %v3231 = vadd.f32 0.0, %v3230
        %3232 = vmatmul.f32.gmra.mxu0 %v3121
        %v3233 = vpop.f32.mrf.mxu0
        %v3234 = vadd.f32 0.0, %v3233
        %3235 = vdwg.mxu0
        %v3236 = vadd.f32 %v3086, %v3141
        %v3237 = vadd.f32 %v3087, %v3144
        %v3238 = vadd.f32 %v3088, %v3147
        %v3239 = vadd.f32 %v3089, %v3150
        %v3240 = vadd.f32 %v3090, %v3153
        %v3241 = vadd.f32 %v3091, %v3156
        %v3242 = vadd.f32 %v3092, %v3159
        %v3243 = vadd.f32 %v3093, %v3162
        %v3244 = vadd.f32 %v3094, %v3165
        %v3245 = vadd.f32 %v3095, %v3168
        %v3246 = vadd.f32 %v3096, %v3171
        %v3247 = vadd.f32 %v3097, %v3174
        %v3248 = vadd.f32 %v3098, %v3177
        %v3249 = vadd.f32 %v3099, %v3180
        %v3250 = vadd.f32 %v3100, %v3183
        %v3251 = vadd.f32 %v3101, %v3186
        %v3252 = vadd.f32 %v3102, %v3189
        %v3253 = vadd.f32 %v3103, %v3192
        %v3254 = vadd.f32 %v3104, %v3195
        %v3255 = vadd.f32 %v3105, %v3198
        %v3256 = vadd.f32 %v3106, %v3201
        %v3257 = vadd.f32 %v3107, %v3204
        %v3258 = vadd.f32 %v3108, %v3207
        %v3259 = vadd.f32 %v3109, %v3210
        %v3260 = vadd.f32 %v3110, %v3213
        %v3261 = vadd.f32 %v3111, %v3216
        %v3262 = vadd.f32 %v3112, %v3219
        %v3263 = vadd.f32 %v3113, %v3222
        %v3264 = vadd.f32 %v3114, %v3225
        %v3265 = vadd.f32 %v3115, %v3228
        %v3266 = vadd.f32 %v3116, %v3231
        %v3267 = vadd.f32 %v3117, %v3234
        %v3269 = vrot.slane %v2354, 1
        %v3270 = vrot.slane %v2306, 1
        %v3271 = vsel %vm523, %v3269, %v3270
        %v3272 = vrot.slane %v2370, 1
        %v3273 = vsel %vm523, %v3270, %v3272
        %v3274 = vsel %vm2485, %v3271, 0
        %v3276 = vsel %vm2485, %v3273, 0
        %3278 = vmatpush.msra.mxu0 0.0
        %3279 = vmatpush.msra.mxu0 0.0
        %3280 = vmatpush.msra.mxu0 0.0
        %3281 = vmatpush.msra.mxu0 0.0
        %3282 = vmatpush.msra.mxu0 0.0
        %3283 = vmatpush.msra.mxu0 0.0
        %3284 = vmatpush.msra.mxu0 0.0
        %3285 = vmatpush.msra.mxu0 0.0
        %3286 = vmatpush.msra.mxu0 0.0
        %3287 = vmatpush.msra.mxu0 0.0
        %3288 = vmatpush.msra.mxu0 0.0
        %3289 = vmatpush.msra.mxu0 0.0
        %3290 = vmatpush.msra.mxu0 0.0
        %3291 = vmatpush.msra.mxu0 0.0
        %3292 = vmatpush.msra.mxu0 0.0
        %3293 = vmatpush.msra.mxu0 %v2375
        %3294 = vmatmul.f32.gmra.mxu0 %v2488
        %v3295 = vpop.f32.mrf.mxu0
        %v3296 = vadd.f32 0.0, %v3295
        %3297 = vmatmul.f32.gmra.mxu0 %v2490
        %v3298 = vpop.f32.mrf.mxu0
        %v3299 = vadd.f32 0.0, %v3298
        %3300 = vmatmul.f32.gmra.mxu0 %v2492
        %v3301 = vpop.f32.mrf.mxu0
        %v3302 = vadd.f32 0.0, %v3301
        %3303 = vmatmul.f32.gmra.mxu0 %v2494
        %v3304 = vpop.f32.mrf.mxu0
        %v3305 = vadd.f32 0.0, %v3304
        %3306 = vmatmul.f32.gmra.mxu0 %v2496
        %v3307 = vpop.f32.mrf.mxu0
        %v3308 = vadd.f32 0.0, %v3307
        %3309 = vmatmul.f32.gmra.mxu0 %v2498
        %v3310 = vpop.f32.mrf.mxu0
        %v3311 = vadd.f32 0.0, %v3310
        %3312 = vmatmul.f32.gmra.mxu0 %v2500
        %v3313 = vpop.f32.mrf.mxu0
        %v3314 = vadd.f32 0.0, %v3313
        %3315 = vmatmul.f32.gmra.mxu0 %v2502
        %v3316 = vpop.f32.mrf.mxu0
        %v3317 = vadd.f32 0.0, %v3316
        %3318 = vmatmul.f32.gmra.mxu0 %v2504
        %v3319 = vpop.f32.mrf.mxu0
        %v3320 = vadd.f32 0.0, %v3319
        %3321 = vmatmul.f32.gmra.mxu0 %v2506
        %v3322 = vpop.f32.mrf.mxu0
        %v3323 = vadd.f32 0.0, %v3322
        %3324 = vmatmul.f32.gmra.mxu0 %v2508
        %v3325 = vpop.f32.mrf.mxu0
        %v3326 = vadd.f32 0.0, %v3325
        %3327 = vmatmul.f32.gmra.mxu0 %v2510
        %v3328 = vpop.f32.mrf.mxu0
        %v3329 = vadd.f32 0.0, %v3328
        %3330 = vmatmul.f32.gmra.mxu0 %v2512
        %v3331 = vpop.f32.mrf.mxu0
        %v3332 = vadd.f32 0.0, %v3331
        %3333 = vmatmul.f32.gmra.mxu0 %v2514
        %v3334 = vpop.f32.mrf.mxu0
        %v3335 = vadd.f32 0.0, %v3334
        %3336 = vmatmul.f32.gmra.mxu0 %v2516
        %v3337 = vpop.f32.mrf.mxu0
        %v3338 = vadd.f32 0.0, %v3337
        %3339 = vmatmul.f32.gmra.mxu0 %v2518
        %v3340 = vpop.f32.mrf.mxu0
        %v3341 = vadd.f32 0.0, %v3340
        %3342 = vmatmul.f32.gmra.mxu0 %v2520
        %v3343 = vpop.f32.mrf.mxu0
        %v3344 = vadd.f32 0.0, %v3343
        %3345 = vmatmul.f32.gmra.mxu0 %v2522
        %v3346 = vpop.f32.mrf.mxu0
        %v3347 = vadd.f32 0.0, %v3346
        %3348 = vmatmul.f32.gmra.mxu0 %v2524
        %v3349 = vpop.f32.mrf.mxu0
        %v3350 = vadd.f32 0.0, %v3349
        %3351 = vmatmul.f32.gmra.mxu0 %v2526
        %v3352 = vpop.f32.mrf.mxu0
        %v3353 = vadd.f32 0.0, %v3352
        %3354 = vmatmul.f32.gmra.mxu0 %v2528
        %v3355 = vpop.f32.mrf.mxu0
        %v3356 = vadd.f32 0.0, %v3355
        %3357 = vmatmul.f32.gmra.mxu0 %v2530
        %v3358 = vpop.f32.mrf.mxu0
        %v3359 = vadd.f32 0.0, %v3358
        %3360 = vmatmul.f32.gmra.mxu0 %v2532
        %v3361 = vpop.f32.mrf.mxu0
        %v3362 = vadd.f32 0.0, %v3361
        %3363 = vmatmul.f32.gmra.mxu0 %v2534
        %v3364 = vpop.f32.mrf.mxu0
        %v3365 = vadd.f32 0.0, %v3364
        %3366 = vmatmul.f32.gmra.mxu0 %v2536
        %v3367 = vpop.f32.mrf.mxu0
        %v3368 = vadd.f32 0.0, %v3367
        %3369 = vmatmul.f32.gmra.mxu0 %v2538
        %v3370 = vpop.f32.mrf.mxu0
        %v3371 = vadd.f32 0.0, %v3370
        %3372 = vmatmul.f32.gmra.mxu0 %v2540
        %v3373 = vpop.f32.mrf.mxu0
        %v3374 = vadd.f32 0.0, %v3373
        %3375 = vmatmul.f32.gmra.mxu0 %v2542
        %v3376 = vpop.f32.mrf.mxu0
        %v3377 = vadd.f32 0.0, %v3376
        %3378 = vmatmul.f32.gmra.mxu0 %v2544
        %v3379 = vpop.f32.mrf.mxu0
        %v3380 = vadd.f32 0.0, %v3379
        %3381 = vmatmul.f32.gmra.mxu0 %v2546
        %v3382 = vpop.f32.mrf.mxu0
        %v3383 = vadd.f32 0.0, %v3382
        %3384 = vmatmul.f32.gmra.mxu0 %v3274
        %v3385 = vpop.f32.mrf.mxu0
        %v3386 = vadd.f32 0.0, %v3385
        %3387 = vmatmul.f32.gmra.mxu0 %v3276
        %v3388 = vpop.f32.mrf.mxu0
        %v3389 = vadd.f32 0.0, %v3388
        %3390 = vdwg.mxu0
        %v3391 = vadd.f32 %v3236, %v3296
        %v3392 = vadd.f32 %v3237, %v3299
        %v3393 = vadd.f32 %v3238, %v3302
        %v3394 = vadd.f32 %v3239, %v3305
        %v3395 = vadd.f32 %v3240, %v3308
        %v3396 = vadd.f32 %v3241, %v3311
        %v3397 = vadd.f32 %v3242, %v3314
        %v3398 = vadd.f32 %v3243, %v3317
        %v3399 = vadd.f32 %v3244, %v3320
        %v3400 = vadd.f32 %v3245, %v3323
        %v3401 = vadd.f32 %v3246, %v3326
        %v3402 = vadd.f32 %v3247, %v3329
        %v3403 = vadd.f32 %v3248, %v3332
        %v3404 = vadd.f32 %v3249, %v3335
        %v3405 = vadd.f32 %v3250, %v3338
        %v3406 = vadd.f32 %v3251, %v3341
        %v3407 = vadd.f32 %v3252, %v3344
        %v3408 = vadd.f32 %v3253, %v3347
        %v3409 = vadd.f32 %v3254, %v3350
        %v3410 = vadd.f32 %v3255, %v3353
        %v3411 = vadd.f32 %v3256, %v3356
        %v3412 = vadd.f32 %v3257, %v3359
        %v3413 = vadd.f32 %v3258, %v3362
        %v3414 = vadd.f32 %v3259, %v3365
        %v3415 = vadd.f32 %v3260, %v3368
        %v3416 = vadd.f32 %v3261, %v3371
        %v3417 = vadd.f32 %v3262, %v3374
        %v3418 = vadd.f32 %v3263, %v3377
        %v3419 = vadd.f32 %v3264, %v3380
        %v3420 = vadd.f32 %v3265, %v3383
        %v3421 = vadd.f32 %v3266, %v3386
        %v3422 = vadd.f32 %v3267, %v3389
        %v3423 = vrot.slane %v2354, 2
        %v3424 = vrot.slane %v2306, 2
        %v3425 = vsel %vm959, %v3423, %v3424
        %v3426 = vrot.slane %v2370, 2
        %v3427 = vsel %vm959, %v3424, %v3426
        %v3428 = vsel %vm2485, %v3425, 0
        %v3430 = vsel %vm2485, %v3427, 0
        %3432 = vmatpush.msra.mxu0 0.0
        %3433 = vmatpush.msra.mxu0 0.0
        %3434 = vmatpush.msra.mxu0 0.0
        %3435 = vmatpush.msra.mxu0 0.0
        %3436 = vmatpush.msra.mxu0 0.0
        %3437 = vmatpush.msra.mxu0 0.0
        %3438 = vmatpush.msra.mxu0 0.0
        %3439 = vmatpush.msra.mxu0 0.0
        %3440 = vmatpush.msra.mxu0 0.0
        %3441 = vmatpush.msra.mxu0 0.0
        %3442 = vmatpush.msra.mxu0 0.0
        %3443 = vmatpush.msra.mxu0 0.0
        %3444 = vmatpush.msra.mxu0 0.0
        %3445 = vmatpush.msra.mxu0 0.0
        %3446 = vmatpush.msra.mxu0 0.0
        %3447 = vmatpush.msra.mxu0 %v2376
        %3448 = vmatmul.f32.gmra.mxu0 %v2913
        %v3449 = vpop.f32.mrf.mxu0
        %v3450 = vadd.f32 0.0, %v3449
        %3451 = vmatmul.f32.gmra.mxu0 %v2915
        %v3452 = vpop.f32.mrf.mxu0
        %v3453 = vadd.f32 0.0, %v3452
        %3454 = vmatmul.f32.gmra.mxu0 %v2917
        %v3455 = vpop.f32.mrf.mxu0
        %v3456 = vadd.f32 0.0, %v3455
        %3457 = vmatmul.f32.gmra.mxu0 %v2919
        %v3458 = vpop.f32.mrf.mxu0
        %v3459 = vadd.f32 0.0, %v3458
        %3460 = vmatmul.f32.gmra.mxu0 %v2921
        %v3461 = vpop.f32.mrf.mxu0
        %v3462 = vadd.f32 0.0, %v3461
        %3463 = vmatmul.f32.gmra.mxu0 %v2923
        %v3464 = vpop.f32.mrf.mxu0
        %v3465 = vadd.f32 0.0, %v3464
        %3466 = vmatmul.f32.gmra.mxu0 %v2925
        %v3467 = vpop.f32.mrf.mxu0
        %v3468 = vadd.f32 0.0, %v3467
        %3469 = vmatmul.f32.gmra.mxu0 %v2927
        %v3470 = vpop.f32.mrf.mxu0
        %v3471 = vadd.f32 0.0, %v3470
        %3472 = vmatmul.f32.gmra.mxu0 %v2929
        %v3473 = vpop.f32.mrf.mxu0
        %v3474 = vadd.f32 0.0, %v3473
        %3475 = vmatmul.f32.gmra.mxu0 %v2931
        %v3476 = vpop.f32.mrf.mxu0
        %v3477 = vadd.f32 0.0, %v3476
        %3478 = vmatmul.f32.gmra.mxu0 %v2933
        %v3479 = vpop.f32.mrf.mxu0
        %v3480 = vadd.f32 0.0, %v3479
        %3481 = vmatmul.f32.gmra.mxu0 %v2935
        %v3482 = vpop.f32.mrf.mxu0
        %v3483 = vadd.f32 0.0, %v3482
        %3484 = vmatmul.f32.gmra.mxu0 %v2937
        %v3485 = vpop.f32.mrf.mxu0
        %v3486 = vadd.f32 0.0, %v3485
        %3487 = vmatmul.f32.gmra.mxu0 %v2939
        %v3488 = vpop.f32.mrf.mxu0
        %v3489 = vadd.f32 0.0, %v3488
        %3490 = vmatmul.f32.gmra.mxu0 %v2941
        %v3491 = vpop.f32.mrf.mxu0
        %v3492 = vadd.f32 0.0, %v3491
        %3493 = vmatmul.f32.gmra.mxu0 %v2943
        %v3494 = vpop.f32.mrf.mxu0
        %v3495 = vadd.f32 0.0, %v3494
        %3496 = vmatmul.f32.gmra.mxu0 %v2945
        %v3497 = vpop.f32.mrf.mxu0
        %v3498 = vadd.f32 0.0, %v3497
        %3499 = vmatmul.f32.gmra.mxu0 %v2947
        %v3500 = vpop.f32.mrf.mxu0
        %v3501 = vadd.f32 0.0, %v3500
        %3502 = vmatmul.f32.gmra.mxu0 %v2949
        %v3503 = vpop.f32.mrf.mxu0
        %v3504 = vadd.f32 0.0, %v3503
        %3505 = vmatmul.f32.gmra.mxu0 %v2951
        %v3506 = vpop.f32.mrf.mxu0
        %v3507 = vadd.f32 0.0, %v3506
        %3508 = vmatmul.f32.gmra.mxu0 %v2953
        %v3509 = vpop.f32.mrf.mxu0
        %v3510 = vadd.f32 0.0, %v3509
        %3511 = vmatmul.f32.gmra.mxu0 %v2955
        %v3512 = vpop.f32.mrf.mxu0
        %v3513 = vadd.f32 0.0, %v3512
        %3514 = vmatmul.f32.gmra.mxu0 %v2957
        %v3515 = vpop.f32.mrf.mxu0
        %v3516 = vadd.f32 0.0, %v3515
        %3517 = vmatmul.f32.gmra.mxu0 %v2959
        %v3518 = vpop.f32.mrf.mxu0
        %v3519 = vadd.f32 0.0, %v3518
        %3520 = vmatmul.f32.gmra.mxu0 %v2961
        %v3521 = vpop.f32.mrf.mxu0
        %v3522 = vadd.f32 0.0, %v3521
        %3523 = vmatmul.f32.gmra.mxu0 %v2963
        %v3524 = vpop.f32.mrf.mxu0
        %v3525 = vadd.f32 0.0, %v3524
        %3526 = vmatmul.f32.gmra.mxu0 %v2965
        %v3527 = vpop.f32.mrf.mxu0
        %v3528 = vadd.f32 0.0, %v3527
        %3529 = vmatmul.f32.gmra.mxu0 %v2967
        %v3530 = vpop.f32.mrf.mxu0
        %v3531 = vadd.f32 0.0, %v3530
        %3532 = vmatmul.f32.gmra.mxu0 %v2969
        %v3533 = vpop.f32.mrf.mxu0
        %v3534 = vadd.f32 0.0, %v3533
        %3535 = vmatmul.f32.gmra.mxu0 %v2971
        %v3536 = vpop.f32.mrf.mxu0
        %v3537 = vadd.f32 0.0, %v3536
        %3538 = vmatmul.f32.gmra.mxu0 %v3428
        %v3539 = vpop.f32.mrf.mxu0
        %v3540 = vadd.f32 0.0, %v3539
        %3541 = vmatmul.f32.gmra.mxu0 %v3430
        %v3542 = vpop.f32.mrf.mxu0
        %v3543 = vadd.f32 0.0, %v3542
        %3544 = vdwg.mxu0
        %v3545 = vadd.f32 %v3391, %v3450
        %v3546 = vadd.f32 %v3392, %v3453
        %v3547 = vadd.f32 %v3393, %v3456
        %v3548 = vadd.f32 %v3394, %v3459
        %v3549 = vadd.f32 %v3395, %v3462
        %v3550 = vadd.f32 %v3396, %v3465
        %v3551 = vadd.f32 %v3397, %v3468
        %v3552 = vadd.f32 %v3398, %v3471
        %v3553 = vadd.f32 %v3399, %v3474
        %v3554 = vadd.f32 %v3400, %v3477
        %v3555 = vadd.f32 %v3401, %v3480
        %v3556 = vadd.f32 %v3402, %v3483
        %v3557 = vadd.f32 %v3403, %v3486
        %v3558 = vadd.f32 %v3404, %v3489
        %v3559 = vadd.f32 %v3405, %v3492
        %v3560 = vadd.f32 %v3406, %v3495
        %v3561 = vadd.f32 %v3407, %v3498
        %v3562 = vadd.f32 %v3408, %v3501
        %v3563 = vadd.f32 %v3409, %v3504
        %v3564 = vadd.f32 %v3410, %v3507
        %v3565 = vadd.f32 %v3411, %v3510
        %v3566 = vadd.f32 %v3412, %v3513
        %v3567 = vadd.f32 %v3413, %v3516
        %v3568 = vadd.f32 %v3414, %v3519
        %v3569 = vadd.f32 %v3415, %v3522
        %v3570 = vadd.f32 %v3416, %v3525
        %v3571 = vadd.f32 %v3417, %v3528
        %v3572 = vadd.f32 %v3418, %v3531
        %v3573 = vadd.f32 %v3419, %v3534
        %v3574 = vadd.f32 %v3420, %v3537
        %v3575 = vadd.f32 %v3421, %v3540
        %v3576 = vadd.f32 %v3422, %v3543
        %3577 = vmatpush.msra.mxu0 0.0
        %3578 = vmatpush.msra.mxu0 0.0
        %3579 = vmatpush.msra.mxu0 0.0
        %3580 = vmatpush.msra.mxu0 0.0
        %3581 = vmatpush.msra.mxu0 0.0
        %3582 = vmatpush.msra.mxu0 0.0
        %3583 = vmatpush.msra.mxu0 0.0
        %3584 = vmatpush.msra.mxu0 0.0
        %3585 = vmatpush.msra.mxu0 0.0
        %3586 = vmatpush.msra.mxu0 0.0
        %3587 = vmatpush.msra.mxu0 0.0
        %3588 = vmatpush.msra.mxu0 0.0
        %3589 = vmatpush.msra.mxu0 0.0
        %3590 = vmatpush.msra.mxu0 0.0
        %3591 = vmatpush.msra.mxu0 0.0
        %3592 = vmatpush.msra.mxu0 %v2377
        %3593 = vmatmul.f32.gmra.mxu0 %v2667
        %v3594 = vpop.f32.mrf.mxu0
        %v3595 = vadd.f32 0.0, %v3594
        %3596 = vmatmul.f32.gmra.mxu0 %v2669
        %v3597 = vpop.f32.mrf.mxu0
        %v3598 = vadd.f32 0.0, %v3597
        %3599 = vmatmul.f32.gmra.mxu0 %v2671
        %v3600 = vpop.f32.mrf.mxu0
        %v3601 = vadd.f32 0.0, %v3600
        %3602 = vmatmul.f32.gmra.mxu0 %v2673
        %v3603 = vpop.f32.mrf.mxu0
        %v3604 = vadd.f32 0.0, %v3603
        %3605 = vmatmul.f32.gmra.mxu0 %v2675
        %v3606 = vpop.f32.mrf.mxu0
        %v3607 = vadd.f32 0.0, %v3606
        %3608 = vmatmul.f32.gmra.mxu0 %v2677
        %v3609 = vpop.f32.mrf.mxu0
        %v3610 = vadd.f32 0.0, %v3609
        %3611 = vmatmul.f32.gmra.mxu0 %v2679
        %v3612 = vpop.f32.mrf.mxu0
        %v3613 = vadd.f32 0.0, %v3612
        %3614 = vmatmul.f32.gmra.mxu0 %v2681
        %v3615 = vpop.f32.mrf.mxu0
        %v3616 = vadd.f32 0.0, %v3615
        %3617 = vmatmul.f32.gmra.mxu0 %v2683
        %v3618 = vpop.f32.mrf.mxu0
        %v3619 = vadd.f32 0.0, %v3618
        %3620 = vmatmul.f32.gmra.mxu0 %v2685
        %v3621 = vpop.f32.mrf.mxu0
        %v3622 = vadd.f32 0.0, %v3621
        %3623 = vmatmul.f32.gmra.mxu0 %v2687
        %v3624 = vpop.f32.mrf.mxu0
        %v3625 = vadd.f32 0.0, %v3624
        %3626 = vmatmul.f32.gmra.mxu0 %v2689
        %v3627 = vpop.f32.mrf.mxu0
        %v3628 = vadd.f32 0.0, %v3627
        %3629 = vmatmul.f32.gmra.mxu0 %v2691
        %v3630 = vpop.f32.mrf.mxu0
        %v3631 = vadd.f32 0.0, %v3630
        %3632 = vmatmul.f32.gmra.mxu0 %v2693
        %v3633 = vpop.f32.mrf.mxu0
        %v3634 = vadd.f32 0.0, %v3633
        %3635 = vmatmul.f32.gmra.mxu0 %v2695
        %v3636 = vpop.f32.mrf.mxu0
        %v3637 = vadd.f32 0.0, %v3636
        %3638 = vmatmul.f32.gmra.mxu0 %v2697
        %v3639 = vpop.f32.mrf.mxu0
        %v3640 = vadd.f32 0.0, %v3639
        %3641 = vmatmul.f32.gmra.mxu0 %v2699
        %v3642 = vpop.f32.mrf.mxu0
        %v3643 = vadd.f32 0.0, %v3642
        %3644 = vmatmul.f32.gmra.mxu0 %v2701
        %v3645 = vpop.f32.mrf.mxu0
        %v3646 = vadd.f32 0.0, %v3645
        %3647 = vmatmul.f32.gmra.mxu0 %v2703
        %v3648 = vpop.f32.mrf.mxu0
        %v3649 = vadd.f32 0.0, %v3648
        %3650 = vmatmul.f32.gmra.mxu0 %v2705
        %v3651 = vpop.f32.mrf.mxu0
        %v3652 = vadd.f32 0.0, %v3651
        %3653 = vmatmul.f32.gmra.mxu0 %v2707
        %v3654 = vpop.f32.mrf.mxu0
        %v3655 = vadd.f32 0.0, %v3654
        %3656 = vmatmul.f32.gmra.mxu0 %v2709
        %v3657 = vpop.f32.mrf.mxu0
        %v3658 = vadd.f32 0.0, %v3657
        %3659 = vmatmul.f32.gmra.mxu0 %v2711
        %v3660 = vpop.f32.mrf.mxu0
        %v3661 = vadd.f32 0.0, %v3660
        %3662 = vmatmul.f32.gmra.mxu0 %v2713
        %v3663 = vpop.f32.mrf.mxu0
        %v3664 = vadd.f32 0.0, %v3663
        %3665 = vmatmul.f32.gmra.mxu0 %v2715
        %v3666 = vpop.f32.mrf.mxu0
        %v3667 = vadd.f32 0.0, %v3666
        %3668 = vmatmul.f32.gmra.mxu0 %v2717
        %v3669 = vpop.f32.mrf.mxu0
        %v3670 = vadd.f32 0.0, %v3669
        %3671 = vmatmul.f32.gmra.mxu0 %v2719
        %v3672 = vpop.f32.mrf.mxu0
        %v3673 = vadd.f32 0.0, %v3672
        %3674 = vmatmul.f32.gmra.mxu0 %v2721
        %v3675 = vpop.f32.mrf.mxu0
        %v3676 = vadd.f32 0.0, %v3675
        %3677 = vmatmul.f32.gmra.mxu0 %v3119
        %v3678 = vpop.f32.mrf.mxu0
        %v3679 = vadd.f32 0.0, %v3678
        %3680 = vmatmul.f32.gmra.mxu0 %v3121
        %v3681 = vpop.f32.mrf.mxu0
        %v3682 = vadd.f32 0.0, %v3681
        %3683 = vmatmul.f32.gmra.mxu0 %v2661
        %v3684 = vpop.f32.mrf.mxu0
        %v3685 = vadd.f32 0.0, %v3684
        %3686 = vmatmul.f32.gmra.mxu0 %v2661
        %v3687 = vpop.f32.mrf.mxu0
        %v3688 = vadd.f32 0.0, %v3687
        %3689 = vdwg.mxu0
        %v3690 = vadd.f32 %v3545, %v3595
        %v3691 = vadd.f32 %v3546, %v3598
        %v3692 = vadd.f32 %v3547, %v3601
        %v3693 = vadd.f32 %v3548, %v3604
        %v3694 = vadd.f32 %v3549, %v3607
        %v3695 = vadd.f32 %v3550, %v3610
        %v3696 = vadd.f32 %v3551, %v3613
        %v3697 = vadd.f32 %v3552, %v3616
        %v3698 = vadd.f32 %v3553, %v3619
        %v3699 = vadd.f32 %v3554, %v3622
        %v3700 = vadd.f32 %v3555, %v3625
        %v3701 = vadd.f32 %v3556, %v3628
        %v3702 = vadd.f32 %v3557, %v3631
        %v3703 = vadd.f32 %v3558, %v3634
        %v3704 = vadd.f32 %v3559, %v3637
        %v3705 = vadd.f32 %v3560, %v3640
        %v3706 = vadd.f32 %v3561, %v3643
        %v3707 = vadd.f32 %v3562, %v3646
        %v3708 = vadd.f32 %v3563, %v3649
        %v3709 = vadd.f32 %v3564, %v3652
        %v3710 = vadd.f32 %v3565, %v3655
        %v3711 = vadd.f32 %v3566, %v3658
        %v3712 = vadd.f32 %v3567, %v3661
        %v3713 = vadd.f32 %v3568, %v3664
        %v3714 = vadd.f32 %v3569, %v3667
        %v3715 = vadd.f32 %v3570, %v3670
        %v3716 = vadd.f32 %v3571, %v3673
        %v3717 = vadd.f32 %v3572, %v3676
        %v3718 = vadd.f32 %v3573, %v3679
        %v3719 = vadd.f32 %v3574, %v3682
        %v3720 = vadd.f32 %v3575, %v3685
        %v3721 = vadd.f32 %v3576, %v3688
        %3722 = vmatpush.msra.mxu0 0.0
        %3723 = vmatpush.msra.mxu0 0.0
        %3724 = vmatpush.msra.mxu0 0.0
        %3725 = vmatpush.msra.mxu0 0.0
        %3726 = vmatpush.msra.mxu0 0.0
        %3727 = vmatpush.msra.mxu0 0.0
        %3728 = vmatpush.msra.mxu0 0.0
        %3729 = vmatpush.msra.mxu0 0.0
        %3730 = vmatpush.msra.mxu0 0.0
        %3731 = vmatpush.msra.mxu0 0.0
        %3732 = vmatpush.msra.mxu0 0.0
        %3733 = vmatpush.msra.mxu0 0.0
        %3734 = vmatpush.msra.mxu0 0.0
        %3735 = vmatpush.msra.mxu0 0.0
        %3736 = vmatpush.msra.mxu0 0.0
        %3737 = vmatpush.msra.mxu0 %v2378
        %3738 = vmatmul.f32.gmra.mxu0 %v2492
        %v3739 = vpop.f32.mrf.mxu0
        %v3740 = vadd.f32 0.0, %v3739
        %3741 = vmatmul.f32.gmra.mxu0 %v2494
        %v3742 = vpop.f32.mrf.mxu0
        %v3743 = vadd.f32 0.0, %v3742
        %3744 = vmatmul.f32.gmra.mxu0 %v2496
        %v3745 = vpop.f32.mrf.mxu0
        %v3746 = vadd.f32 0.0, %v3745
        %3747 = vmatmul.f32.gmra.mxu0 %v2498
        %v3748 = vpop.f32.mrf.mxu0
        %v3749 = vadd.f32 0.0, %v3748
        %3750 = vmatmul.f32.gmra.mxu0 %v2500
        %v3751 = vpop.f32.mrf.mxu0
        %v3752 = vadd.f32 0.0, %v3751
        %3753 = vmatmul.f32.gmra.mxu0 %v2502
        %v3754 = vpop.f32.mrf.mxu0
        %v3755 = vadd.f32 0.0, %v3754
        %3756 = vmatmul.f32.gmra.mxu0 %v2504
        %v3757 = vpop.f32.mrf.mxu0
        %v3758 = vadd.f32 0.0, %v3757
        %3759 = vmatmul.f32.gmra.mxu0 %v2506
        %v3760 = vpop.f32.mrf.mxu0
        %v3761 = vadd.f32 0.0, %v3760
        %3762 = vmatmul.f32.gmra.mxu0 %v2508
        %v3763 = vpop.f32.mrf.mxu0
        %v3764 = vadd.f32 0.0, %v3763
        %3765 = vmatmul.f32.gmra.mxu0 %v2510
        %v3766 = vpop.f32.mrf.mxu0
        %v3767 = vadd.f32 0.0, %v3766
        %3768 = vmatmul.f32.gmra.mxu0 %v2512
        %v3769 = vpop.f32.mrf.mxu0
        %v3770 = vadd.f32 0.0, %v3769
        %3771 = vmatmul.f32.gmra.mxu0 %v2514
        %v3772 = vpop.f32.mrf.mxu0
        %v3773 = vadd.f32 0.0, %v3772
        %3774 = vmatmul.f32.gmra.mxu0 %v2516
        %v3775 = vpop.f32.mrf.mxu0
        %v3776 = vadd.f32 0.0, %v3775
        %3777 = vmatmul.f32.gmra.mxu0 %v2518
        %v3778 = vpop.f32.mrf.mxu0
        %v3779 = vadd.f32 0.0, %v3778
        %3780 = vmatmul.f32.gmra.mxu0 %v2520
        %v3781 = vpop.f32.mrf.mxu0
        %v3782 = vadd.f32 0.0, %v3781
        %3783 = vmatmul.f32.gmra.mxu0 %v2522
        %v3784 = vpop.f32.mrf.mxu0
        %v3785 = vadd.f32 0.0, %v3784
        %3786 = vmatmul.f32.gmra.mxu0 %v2524
        %v3787 = vpop.f32.mrf.mxu0
        %v3788 = vadd.f32 0.0, %v3787
        %3789 = vmatmul.f32.gmra.mxu0 %v2526
        %v3790 = vpop.f32.mrf.mxu0
        %v3791 = vadd.f32 0.0, %v3790
        %3792 = vmatmul.f32.gmra.mxu0 %v2528
        %v3793 = vpop.f32.mrf.mxu0
        %v3794 = vadd.f32 0.0, %v3793
        %3795 = vmatmul.f32.gmra.mxu0 %v2530
        %v3796 = vpop.f32.mrf.mxu0
        %v3797 = vadd.f32 0.0, %v3796
        %3798 = vmatmul.f32.gmra.mxu0 %v2532
        %v3799 = vpop.f32.mrf.mxu0
        %v3800 = vadd.f32 0.0, %v3799
        %3801 = vmatmul.f32.gmra.mxu0 %v2534
        %v3802 = vpop.f32.mrf.mxu0
        %v3803 = vadd.f32 0.0, %v3802
        %3804 = vmatmul.f32.gmra.mxu0 %v2536
        %v3805 = vpop.f32.mrf.mxu0
        %v3806 = vadd.f32 0.0, %v3805
        %3807 = vmatmul.f32.gmra.mxu0 %v2538
        %v3808 = vpop.f32.mrf.mxu0
        %v3809 = vadd.f32 0.0, %v3808
        %3810 = vmatmul.f32.gmra.mxu0 %v2540
        %v3811 = vpop.f32.mrf.mxu0
        %v3812 = vadd.f32 0.0, %v3811
        %3813 = vmatmul.f32.gmra.mxu0 %v2542
        %v3814 = vpop.f32.mrf.mxu0
        %v3815 = vadd.f32 0.0, %v3814
        %3816 = vmatmul.f32.gmra.mxu0 %v2544
        %v3817 = vpop.f32.mrf.mxu0
        %v3818 = vadd.f32 0.0, %v3817
        %3819 = vmatmul.f32.gmra.mxu0 %v2546
        %v3820 = vpop.f32.mrf.mxu0
        %v3821 = vadd.f32 0.0, %v3820
        %3822 = vmatmul.f32.gmra.mxu0 %v3274
        %v3823 = vpop.f32.mrf.mxu0
        %v3824 = vadd.f32 0.0, %v3823
        %3825 = vmatmul.f32.gmra.mxu0 %v3276
        %v3826 = vpop.f32.mrf.mxu0
        %v3827 = vadd.f32 0.0, %v3826
        %3828 = vmatmul.f32.gmra.mxu0 %v2486
        %v3829 = vpop.f32.mrf.mxu0
        %v3830 = vadd.f32 0.0, %v3829
        %3831 = vmatmul.f32.gmra.mxu0 %v2486
        %v3832 = vpop.f32.mrf.mxu0
        %v3833 = vadd.f32 0.0, %v3832
        %3834 = vdwg.mxu0
        %v3835 = vadd.f32 %v3690, %v3740
        %v3836 = vadd.f32 %v3691, %v3743
        %v3837 = vadd.f32 %v3692, %v3746
        %v3838 = vadd.f32 %v3693, %v3749
        %v3839 = vadd.f32 %v3694, %v3752
        %v3840 = vadd.f32 %v3695, %v3755
        %v3841 = vadd.f32 %v3696, %v3758
        %v3842 = vadd.f32 %v3697, %v3761
        %v3843 = vadd.f32 %v3698, %v3764
        %v3844 = vadd.f32 %v3699, %v3767
        %v3845 = vadd.f32 %v3700, %v3770
        %v3846 = vadd.f32 %v3701, %v3773
        %v3847 = vadd.f32 %v3702, %v3776
        %v3848 = vadd.f32 %v3703, %v3779
        %v3849 = vadd.f32 %v3704, %v3782
        %v3850 = vadd.f32 %v3705, %v3785
        %v3851 = vadd.f32 %v3706, %v3788
        %v3852 = vadd.f32 %v3707, %v3791
        %v3853 = vadd.f32 %v3708, %v3794
        %v3854 = vadd.f32 %v3709, %v3797
        %v3855 = vadd.f32 %v3710, %v3800
        %v3856 = vadd.f32 %v3711, %v3803
        %v3857 = vadd.f32 %v3712, %v3806
        %v3858 = vadd.f32 %v3713, %v3809
        %v3859 = vadd.f32 %v3714, %v3812
        %v3860 = vadd.f32 %v3715, %v3815
        %v3861 = vadd.f32 %v3716, %v3818
        %v3862 = vadd.f32 %v3717, %v3821
        %v3863 = vadd.f32 %v3718, %v3824
        %v3864 = vadd.f32 %v3719, %v3827
        %v3865 = vadd.f32 %v3720, %v3830
        %v3866 = vadd.f32 %v3721, %v3833
        %3867 = vmatpush.msra.mxu0 0.0
        %3868 = vmatpush.msra.mxu0 0.0
        %3869 = vmatpush.msra.mxu0 0.0
        %3870 = vmatpush.msra.mxu0 0.0
        %3871 = vmatpush.msra.mxu0 0.0
        %3872 = vmatpush.msra.mxu0 0.0
        %3873 = vmatpush.msra.mxu0 0.0
        %3874 = vmatpush.msra.mxu0 0.0
        %3875 = vmatpush.msra.mxu0 0.0
        %3876 = vmatpush.msra.mxu0 0.0
        %3877 = vmatpush.msra.mxu0 0.0
        %3878 = vmatpush.msra.mxu0 0.0
        %3879 = vmatpush.msra.mxu0 0.0
        %3880 = vmatpush.msra.mxu0 0.0
        %3881 = vmatpush.msra.mxu0 0.0
        %3882 = vmatpush.msra.mxu0 %v2379
        %3883 = vmatmul.f32.gmra.mxu0 %v2917
        %v3884 = vpop.f32.mrf.mxu0
        %v3885 = vadd.f32 0.0, %v3884
        %3886 = vmatmul.f32.gmra.mxu0 %v2919
        %v3887 = vpop.f32.mrf.mxu0
        %v3888 = vadd.f32 0.0, %v3887
        %3889 = vmatmul.f32.gmra.mxu0 %v2921
        %v3890 = vpop.f32.mrf.mxu0
        %v3891 = vadd.f32 0.0, %v3890
        %3892 = vmatmul.f32.gmra.mxu0 %v2923
        %v3893 = vpop.f32.mrf.mxu0
        %v3894 = vadd.f32 0.0, %v3893
        %3895 = vmatmul.f32.gmra.mxu0 %v2925
        %v3896 = vpop.f32.mrf.mxu0
        %v3897 = vadd.f32 0.0, %v3896
        %3898 = vmatmul.f32.gmra.mxu0 %v2927
        %v3899 = vpop.f32.mrf.mxu0
        %v3900 = vadd.f32 0.0, %v3899
        %3901 = vmatmul.f32.gmra.mxu0 %v2929
        %v3902 = vpop.f32.mrf.mxu0
        %v3903 = vadd.f32 0.0, %v3902
        %3904 = vmatmul.f32.gmra.mxu0 %v2931
        %v3905 = vpop.f32.mrf.mxu0
        %v3906 = vadd.f32 0.0, %v3905
        %3907 = vmatmul.f32.gmra.mxu0 %v2933
        %v3908 = vpop.f32.mrf.mxu0
        %v3909 = vadd.f32 0.0, %v3908
        %3910 = vmatmul.f32.gmra.mxu0 %v2935
        %v3911 = vpop.f32.mrf.mxu0
        %v3912 = vadd.f32 0.0, %v3911
        %3913 = vmatmul.f32.gmra.mxu0 %v2937
        %v3914 = vpop.f32.mrf.mxu0
        %v3915 = vadd.f32 0.0, %v3914
        %3916 = vmatmul.f32.gmra.mxu0 %v2939
        %v3917 = vpop.f32.mrf.mxu0
        %v3918 = vadd.f32 0.0, %v3917
        %3919 = vmatmul.f32.gmra.mxu0 %v2941
        %v3920 = vpop.f32.mrf.mxu0
        %v3921 = vadd.f32 0.0, %v3920
        %3922 = vmatmul.f32.gmra.mxu0 %v2943
        %v3923 = vpop.f32.mrf.mxu0
        %v3924 = vadd.f32 0.0, %v3923
        %3925 = vmatmul.f32.gmra.mxu0 %v2945
        %v3926 = vpop.f32.mrf.mxu0
        %v3927 = vadd.f32 0.0, %v3926
        %3928 = vmatmul.f32.gmra.mxu0 %v2947
        %v3929 = vpop.f32.mrf.mxu0
        %v3930 = vadd.f32 0.0, %v3929
        %3931 = vmatmul.f32.gmra.mxu0 %v2949
        %v3932 = vpop.f32.mrf.mxu0
        %v3933 = vadd.f32 0.0, %v3932
        %3934 = vmatmul.f32.gmra.mxu0 %v2951
        %v3935 = vpop.f32.mrf.mxu0
        %v3936 = vadd.f32 0.0, %v3935
        %3937 = vmatmul.f32.gmra.mxu0 %v2953
        %v3938 = vpop.f32.mrf.mxu0
        %v3939 = vadd.f32 0.0, %v3938
        %3940 = vmatmul.f32.gmra.mxu0 %v2955
        %v3941 = vpop.f32.mrf.mxu0
        %v3942 = vadd.f32 0.0, %v3941
        %3943 = vmatmul.f32.gmra.mxu0 %v2957
        %v3944 = vpop.f32.mrf.mxu0
        %v3945 = vadd.f32 0.0, %v3944
        %3946 = vmatmul.f32.gmra.mxu0 %v2959
        %v3947 = vpop.f32.mrf.mxu0
        %v3948 = vadd.f32 0.0, %v3947
        %3949 = vmatmul.f32.gmra.mxu0 %v2961
        %v3950 = vpop.f32.mrf.mxu0
        %v3951 = vadd.f32 0.0, %v3950
        %3952 = vmatmul.f32.gmra.mxu0 %v2963
        %v3953 = vpop.f32.mrf.mxu0
        %v3954 = vadd.f32 0.0, %v3953
        %3955 = vmatmul.f32.gmra.mxu0 %v2965
        %v3956 = vpop.f32.mrf.mxu0
        %v3957 = vadd.f32 0.0, %v3956
        %3958 = vmatmul.f32.gmra.mxu0 %v2967
        %v3959 = vpop.f32.mrf.mxu0
        %v3960 = vadd.f32 0.0, %v3959
        %3961 = vmatmul.f32.gmra.mxu0 %v2969
        %v3962 = vpop.f32.mrf.mxu0
        %v3963 = vadd.f32 0.0, %v3962
        %3964 = vmatmul.f32.gmra.mxu0 %v2971
        %v3965 = vpop.f32.mrf.mxu0
        %v3966 = vadd.f32 0.0, %v3965
        %3967 = vmatmul.f32.gmra.mxu0 %v3428
        %v3968 = vpop.f32.mrf.mxu0
        %v3969 = vadd.f32 0.0, %v3968
        %3970 = vmatmul.f32.gmra.mxu0 %v3430
        %v3971 = vpop.f32.mrf.mxu0
        %v3972 = vadd.f32 0.0, %v3971
        %3973 = vmatmul.f32.gmra.mxu0 %v2911
        %v3974 = vpop.f32.mrf.mxu0
        %v3975 = vadd.f32 0.0, %v3974
        %3976 = vmatmul.f32.gmra.mxu0 %v2911
        %v3977 = vpop.f32.mrf.mxu0
        %v3978 = vadd.f32 0.0, %v3977
        %3979 = vdwg.mxu0
        %v3980 = vadd.f32 %v3835, %v3885
        %v3981 = vadd.f32 %v3836, %v3888
        %v3982 = vadd.f32 %v3837, %v3891
        %v3983 = vadd.f32 %v3838, %v3894
        %v3984 = vadd.f32 %v3839, %v3897
        %v3985 = vadd.f32 %v3840, %v3900
        %v3986 = vadd.f32 %v3841, %v3903
        %v3987 = vadd.f32 %v3842, %v3906
        %v3988 = vadd.f32 %v3843, %v3909
        %v3989 = vadd.f32 %v3844, %v3912
        %v3990 = vadd.f32 %v3845, %v3915
        %v3991 = vadd.f32 %v3846, %v3918
        %v3992 = vadd.f32 %v3847, %v3921
        %v3993 = vadd.f32 %v3848, %v3924
        %v3994 = vadd.f32 %v3849, %v3927
        %v3995 = vadd.f32 %v3850, %v3930
        %v3996 = vadd.f32 %v3851, %v3933
        %v3997 = vadd.f32 %v3852, %v3936
        %v3998 = vadd.f32 %v3853, %v3939
        %v3999 = vadd.f32 %v3854, %v3942
        %v4000 = vadd.f32 %v3855, %v3945
        %v4001 = vadd.f32 %v3856, %v3948
        %v4002 = vadd.f32 %v3857, %v3951
        %v4003 = vadd.f32 %v3858, %v3954
        %v4004 = vadd.f32 %v3859, %v3957
        %v4005 = vadd.f32 %v3860, %v3960
        %v4006 = vadd.f32 %v3861, %v3963
        %v4007 = vadd.f32 %v3862, %v3966
        %v4008 = vadd.f32 %v3863, %v3969
        %v4009 = vadd.f32 %v3864, %v3972
        %v4010 = vadd.f32 %v3865, %v3975
        %v4011 = vadd.f32 %v3866, %v3978
        %v4013 = vperm.slane %v2194, 0
        %v4015 = vadd.f32 %v3980, %v4013
        %v4016 = vadd.f32 %v3981, %v4013
        %v4017 = vadd.f32 %v3982, %v4013
        %v4018 = vadd.f32 %v3983, %v4013
        %v4019 = vadd.f32 %v3984, %v4013
        %v4020 = vadd.f32 %v3985, %v4013
        %v4021 = vadd.f32 %v3986, %v4013
        %v4022 = vadd.f32 %v3987, %v4013
        %v4023 = vadd.f32 %v3988, %v4013
        %v4024 = vadd.f32 %v3989, %v4013
        %v4025 = vadd.f32 %v3990, %v4013
        %v4026 = vadd.f32 %v3991, %v4013
        %v4027 = vadd.f32 %v3992, %v4013
        %v4028 = vadd.f32 %v3993, %v4013
        %v4029 = vadd.f32 %v3994, %v4013
        %v4030 = vadd.f32 %v3995, %v4013
        %v4031 = vadd.f32 %v3996, %v4013
        %v4032 = vadd.f32 %v3997, %v4013
        %v4033 = vadd.f32 %v3998, %v4013
        %v4034 = vadd.f32 %v3999, %v4013
        %v4035 = vadd.f32 %v4000, %v4013
        %v4036 = vadd.f32 %v4001, %v4013
        %v4037 = vadd.f32 %v4002, %v4013
        %v4038 = vadd.f32 %v4003, %v4013
        %v4039 = vadd.f32 %v4004, %v4013
        %v4040 = vadd.f32 %v4005, %v4013
        %v4041 = vadd.f32 %v4006, %v4013
        %v4042 = vadd.f32 %v4007, %v4013
        %v4043 = vadd.f32 %v4008, %v4013
        %v4044 = vadd.f32 %v4009, %v4013
        %v4045 = vadd.f32 %v4010, %v4013
        %v4046 = vadd.f32 %v4011, %v4013
        %v4079 = vrot.slane %v4015, 7
        %v4080 = vrot.slane %v4016, 7
        %v4081 = vsel %vm374, %v4079, %v4080
        %v4082 = vrot.slane %v4017, 7
        %v4083 = vrot.slane %v4018, 7
        %v4084 = vsel %vm374, %v4082, %v4083
        %v4085 = vrot.slane %v4019, 7
        %v4086 = vrot.slane %v4020, 7
        %v4087 = vsel %vm374, %v4085, %v4086
        %v4088 = vrot.slane %v4021, 7
        %v4089 = vrot.slane %v4022, 7
        %v4090 = vsel %vm374, %v4088, %v4089
        %v4091 = vrot.slane %v4023, 7
        %v4092 = vrot.slane %v4024, 7
        %v4093 = vsel %vm374, %v4091, %v4092
        %v4094 = vrot.slane %v4025, 7
        %v4095 = vrot.slane %v4026, 7
        %v4096 = vsel %vm374, %v4094, %v4095
        %v4097 = vrot.slane %v4027, 7
        %v4098 = vrot.slane %v4028, 7
        %v4099 = vsel %vm374, %v4097, %v4098
        %v4100 = vrot.slane %v4029, 7
        %v4101 = vrot.slane %v4030, 7
        %v4102 = vsel %vm374, %v4100, %v4101
        %v4103 = vrot.slane %v4031, 7
        %v4104 = vrot.slane %v4032, 7
        %v4105 = vsel %vm374, %v4103, %v4104
        %v4106 = vrot.slane %v4033, 7
        %v4107 = vrot.slane %v4034, 7
        %v4108 = vsel %vm374, %v4106, %v4107
        %v4109 = vrot.slane %v4035, 7
        %v4110 = vrot.slane %v4036, 7
        %v4111 = vsel %vm374, %v4109, %v4110
        %v4112 = vrot.slane %v4037, 7
        %v4113 = vrot.slane %v4038, 7
        %v4114 = vsel %vm374, %v4112, %v4113
        %v4115 = vrot.slane %v4039, 7
        %v4116 = vrot.slane %v4040, 7
        %v4117 = vsel %vm374, %v4115, %v4116
        %v4118 = vrot.slane %v4041, 7
        %v4119 = vrot.slane %v4042, 7
        %v4120 = vsel %vm374, %v4118, %v4119
        %v4121 = vrot.slane %v4043, 7
        %v4122 = vrot.slane %v4044, 7
        %v4123 = vsel %vm374, %v4121, %v4122
        %v4124 = vrot.slane %v4045, 7
        %v4125 = vrot.slane %v4046, 7
        %v4126 = vsel %vm374, %v4124, %v4125
        %v4175 = vsel %vm374, -inf, %v4079
        %v4176 = vsel %vm374, -inf, %v4082
        %v4177 = vsel %vm374, -inf, %v4085
        %v4178 = vsel %vm374, -inf, %v4088
        %v4179 = vsel %vm374, -inf, %v4091
        %v4180 = vsel %vm374, -inf, %v4094
        %v4181 = vsel %vm374, -inf, %v4097
        %v4182 = vsel %vm374, -inf, %v4100
        %v4183 = vsel %vm374, -inf, %v4103
        %v4184 = vsel %vm374, -inf, %v4106
        %v4185 = vsel %vm374, -inf, %v4109
        %v4186 = vsel %vm374, -inf, %v4112
        %v4187 = vsel %vm374, -inf, %v4115
        %v4188 = vsel %vm374, -inf, %v4118
        %v4189 = vsel %vm374, -inf, %v4121
        %v4190 = vsel %vm374, -inf, %v4124
        %v4191 = vsel %vm374, %v4080, -inf
        %v4192 = vsel %vm374, %v4083, -inf
        %v4193 = vsel %vm374, %v4086, -inf
        %v4194 = vsel %vm374, %v4089, -inf
        %v4195 = vsel %vm374, %v4092, -inf
        %v4196 = vsel %vm374, %v4095, -inf
        %v4197 = vsel %vm374, %v4098, -inf
        %v4198 = vsel %vm374, %v4101, -inf
        %v4199 = vsel %vm374, %v4104, -inf
        %v4200 = vsel %vm374, %v4107, -inf
        %v4201 = vsel %vm374, %v4110, -inf
        %v4202 = vsel %vm374, %v4113, -inf
        %v4203 = vsel %vm374, %v4116, -inf
        %v4204 = vsel %vm374, %v4119, -inf
        %v4205 = vsel %vm374, %v4122, -inf
        %v4206 = vsel %vm374, %v4125, -inf
        %v4207 = vmax.f32 %v4175, %v4176
        %v4208 = vmax.f32 %v4081, %v4084
        %v4209 = vmax.f32 %v4191, %v4192
        %v4210 = vmax.f32 %v4176, %v4177
        %v4211 = vmax.f32 %v4084, %v4087
        %v4212 = vmax.f32 %v4192, %v4193
        %v4213 = vmax.f32 %v4210, %v4178
        %v4214 = vmax.f32 %v4211, %v4090
        %v4215 = vmax.f32 %v4212, %v4194
        %v4216 = vmax.f32 %v4178, %v4179
        %v4217 = vmax.f32 %v4090, %v4093
        %v4218 = vmax.f32 %v4194, %v4195
        %v4219 = vmax.f32 %v4216, %v4180
        %v4220 = vmax.f32 %v4217, %v4096
        %v4221 = vmax.f32 %v4218, %v4196
        %v4222 = vmax.f32 %v4180, %v4181
        %v4223 = vmax.f32 %v4096, %v4099
        %v4224 = vmax.f32 %v4196, %v4197
        %v4225 = vmax.f32 %v4222, %v4182
        %v4226 = vmax.f32 %v4223, %v4102
        %v4227 = vmax.f32 %v4224, %v4198
        %v4228 = vmax.f32 %v4182, %v4183
        %v4229 = vmax.f32 %v4102, %v4105
        %v4230 = vmax.f32 %v4198, %v4199
        %v4231 = vmax.f32 %v4228, %v4184
        %v4232 = vmax.f32 %v4229, %v4108
        %v4233 = vmax.f32 %v4230, %v4200
        %v4234 = vmax.f32 %v4184, %v4185
        %v4235 = vmax.f32 %v4108, %v4111
        %v4236 = vmax.f32 %v4200, %v4201
        %v4237 = vmax.f32 %v4234, %v4186
        %v4238 = vmax.f32 %v4235, %v4114
        %v4239 = vmax.f32 %v4236, %v4202
        %v4240 = vmax.f32 %v4186, %v4187
        %v4241 = vmax.f32 %v4114, %v4117
        %v4242 = vmax.f32 %v4202, %v4203
        %v4243 = vmax.f32 %v4240, %v4188
        %v4244 = vmax.f32 %v4241, %v4120
        %v4245 = vmax.f32 %v4242, %v4204
        %v4246 = vmax.f32 %v4188, %v4189
        %v4247 = vmax.f32 %v4120, %v4123
        %v4248 = vmax.f32 %v4204, %v4205
        %v4249 = vmax.f32 %v4246, %v4190
        %v4250 = vmax.f32 %v4247, %v4126
        %v4251 = vmax.f32 %v4248, %v4206
        %v4276 = vrot.slane %v4207, 1
        %v4277 = vrot.slane %v4208, 1
        %v4278 = vsel %vm523, %v4276, %v4277
        %v4279 = vrot.slane %v4209, 1
        %v4280 = vsel %vm523, %v4277, %v4279
        %v4281 = vrot.slane %v4213, 1
        %v4282 = vrot.slane %v4214, 1
        %v4283 = vsel %vm523, %v4281, %v4282
        %v4284 = vrot.slane %v4215, 1
        %v4285 = vsel %vm523, %v4282, %v4284
        %v4286 = vrot.slane %v4219, 1
        %v4287 = vrot.slane %v4220, 1
        %v4288 = vsel %vm523, %v4286, %v4287
        %v4289 = vrot.slane %v4221, 1
        %v4290 = vsel %vm523, %v4287, %v4289
        %v4291 = vrot.slane %v4225, 1
        %v4292 = vrot.slane %v4226, 1
        %v4293 = vsel %vm523, %v4291, %v4292
        %v4294 = vrot.slane %v4227, 1
        %v4295 = vsel %vm523, %v4292, %v4294
        %v4296 = vrot.slane %v4231, 1
        %v4297 = vrot.slane %v4232, 1
        %v4298 = vsel %vm523, %v4296, %v4297
        %v4299 = vrot.slane %v4233, 1
        %v4300 = vsel %vm523, %v4297, %v4299
        %v4301 = vrot.slane %v4237, 1
        %v4302 = vrot.slane %v4238, 1
        %v4303 = vsel %vm523, %v4301, %v4302
        %v4304 = vrot.slane %v4239, 1
        %v4305 = vsel %vm523, %v4302, %v4304
        %v4306 = vrot.slane %v4243, 1
        %v4307 = vrot.slane %v4244, 1
        %v4308 = vsel %vm523, %v4306, %v4307
        %v4309 = vrot.slane %v4245, 1
        %v4310 = vsel %vm523, %v4307, %v4309
        %v4311 = vrot.slane %v4249, 1
        %v4312 = vrot.slane %v4250, 1
        %v4313 = vsel %vm523, %v4311, %v4312
        %v4314 = vrot.slane %v4251, 1
        %v4315 = vsel %vm523, %v4312, %v4314
        %v4332 = vmax.f32 %v4207, %v4278
        %v4333 = vmax.f32 %v4208, %v4280
        %v4334 = vmax.f32 %v4213, %v4283
        %v4335 = vmax.f32 %v4214, %v4285
        %v4336 = vmax.f32 %v4219, %v4288
        %v4337 = vmax.f32 %v4220, %v4290
        %v4338 = vmax.f32 %v4225, %v4293
        %v4339 = vmax.f32 %v4226, %v4295
        %v4340 = vmax.f32 %v4231, %v4298
        %v4341 = vmax.f32 %v4232, %v4300
        %v4342 = vmax.f32 %v4237, %v4303
        %v4343 = vmax.f32 %v4238, %v4305
        %v4344 = vmax.f32 %v4243, %v4308
        %v4345 = vmax.f32 %v4244, %v4310
        %v4346 = vmax.f32 %v4249, %v4313
        %v4347 = vmax.f32 %v4250, %v4315
        %v4348 = vrot.slane %v4207, 2
        %v4349 = vrot.slane %v4208, 2
        %v4350 = vsel %vm959, %v4348, %v4349
        %v4351 = vrot.slane %v4209, 2
        %v4352 = vsel %vm959, %v4349, %v4351
        %v4353 = vrot.slane %v4213, 2
        %v4354 = vrot.slane %v4214, 2
        %v4355 = vsel %vm959, %v4353, %v4354
        %v4356 = vrot.slane %v4215, 2
        %v4357 = vsel %vm959, %v4354, %v4356
        %v4358 = vrot.slane %v4219, 2
        %v4359 = vrot.slane %v4220, 2
        %v4360 = vsel %vm959, %v4358, %v4359
        %v4361 = vrot.slane %v4221, 2
        %v4362 = vsel %vm959, %v4359, %v4361
        %v4363 = vrot.slane %v4225, 2
        %v4364 = vrot.slane %v4226, 2
        %v4365 = vsel %vm959, %v4363, %v4364
        %v4366 = vrot.slane %v4227, 2
        %v4367 = vsel %vm959, %v4364, %v4366
        %v4368 = vrot.slane %v4231, 2
        %v4369 = vrot.slane %v4232, 2
        %v4370 = vsel %vm959, %v4368, %v4369
        %v4371 = vrot.slane %v4233, 2
        %v4372 = vsel %vm959, %v4369, %v4371
        %v4373 = vrot.slane %v4237, 2
        %v4374 = vrot.slane %v4238, 2
        %v4375 = vsel %vm959, %v4373, %v4374
        %v4376 = vrot.slane %v4239, 2
        %v4377 = vsel %vm959, %v4374, %v4376
        %v4378 = vrot.slane %v4243, 2
        %v4379 = vrot.slane %v4244, 2
        %v4380 = vsel %vm959, %v4378, %v4379
        %v4381 = vrot.slane %v4245, 2
        %v4382 = vsel %vm959, %v4379, %v4381
        %v4383 = vrot.slane %v4249, 2
        %v4384 = vrot.slane %v4250, 2
        %v4385 = vsel %vm959, %v4383, %v4384
        %v4386 = vrot.slane %v4251, 2
        %v4387 = vsel %vm959, %v4384, %v4386
        %v4404 = vmax.f32 %v4332, %v4350
        %v4405 = vmax.f32 %v4333, %v4352
        %v4406 = vmax.f32 %v4334, %v4355
        %v4407 = vmax.f32 %v4335, %v4357
        %v4408 = vmax.f32 %v4336, %v4360
        %v4409 = vmax.f32 %v4337, %v4362
        %v4410 = vmax.f32 %v4338, %v4365
        %v4411 = vmax.f32 %v4339, %v4367
        %v4412 = vmax.f32 %v4340, %v4370
        %v4413 = vmax.f32 %v4341, %v4372
        %v4414 = vmax.f32 %v4342, %v4375
        %v4415 = vmax.f32 %v4343, %v4377
        %v4416 = vmax.f32 %v4344, %v4380
        %v4417 = vmax.f32 %v4345, %v4382
        %v4418 = vmax.f32 %v4346, %v4385
        %v4419 = vmax.f32 %v4347, %v4387
        %v4428 = vrot.slane %v4404, 1
        %v4429 = vrot.slane %v4406, 1
        %v4430 = vrot.slane %v4408, 1
        %v4431 = vrot.slane %v4410, 1
        %v4432 = vrot.slane %v4412, 1
        %v4433 = vrot.slane %v4414, 1
        %v4434 = vrot.slane %v4416, 1
        %v4435 = vrot.slane %v4418, 1
        %v4444 = vrot.slane %v4404, 2
        %v4445 = vrot.slane %v4406, 2
        %v4446 = vrot.slane %v4408, 2
        %v4447 = vrot.slane %v4410, 2
        %v4448 = vrot.slane %v4412, 2
        %v4449 = vrot.slane %v4414, 2
        %v4450 = vrot.slane %v4416, 2
        %v4451 = vrot.slane %v4418, 2
        %v4460 = vrot.slane %v4404, 3
        %v4461 = vrot.slane %v4406, 3
        %v4462 = vrot.slane %v4408, 3
        %v4463 = vrot.slane %v4410, 3
        %v4464 = vrot.slane %v4412, 3
        %v4465 = vrot.slane %v4414, 3
        %v4466 = vrot.slane %v4416, 3
        %v4467 = vrot.slane %v4418, 3
        %v4484 = vrot.slane %v4405, 4
        %v4485 = vrot.slane %v4407, 4
        %v4486 = vrot.slane %v4409, 4
        %v4487 = vrot.slane %v4411, 4
        %v4488 = vrot.slane %v4413, 4
        %v4489 = vrot.slane %v4415, 4
        %v4490 = vrot.slane %v4417, 4
        %v4491 = vrot.slane %v4419, 4
        %v4500 = vrot.slane %v4405, 5
        %v4501 = vrot.slane %v4407, 5
        %v4502 = vrot.slane %v4409, 5
        %v4503 = vrot.slane %v4411, 5
        %v4504 = vrot.slane %v4413, 5
        %v4505 = vrot.slane %v4415, 5
        %v4506 = vrot.slane %v4417, 5
        %v4507 = vrot.slane %v4419, 5
        %v4516 = vrot.slane %v4405, 6
        %v4517 = vrot.slane %v4407, 6
        %v4518 = vrot.slane %v4409, 6
        %v4519 = vrot.slane %v4411, 6
        %v4520 = vrot.slane %v4413, 6
        %v4521 = vrot.slane %v4415, 6
        %v4522 = vrot.slane %v4417, 6
        %v4523 = vrot.slane %v4419, 6
        %v4532 = vrot.slane %v4405, 7
        %v4533 = vrot.slane %v4407, 7
        %v4534 = vrot.slane %v4409, 7
        %v4535 = vrot.slane %v4411, 7
        %v4536 = vrot.slane %v4413, 7
        %v4537 = vrot.slane %v4415, 7
        %v4538 = vrot.slane %v4417, 7
        %v4539 = vrot.slane %v4419, 7
        %v4548 = vsel %vm374, %v4404, %v4428
        %v4549 = vsel %vm374, %v4406, %v4429
        %v4550 = vsel %vm374, %v4408, %v4430
        %v4551 = vsel %vm374, %v4410, %v4431
        %v4552 = vsel %vm374, %v4412, %v4432
        %v4553 = vsel %vm374, %v4414, %v4433
        %v4554 = vsel %vm374, %v4416, %v4434
        %v4555 = vsel %vm374, %v4418, %v4435
        %vm4556 = vcmask 1041408
        %v4557 = vsel %vm4556, %v4548, %v4444
        %v4558 = vsel %vm4556, %v4549, %v4445
        %v4559 = vsel %vm4556, %v4550, %v4446
        %v4560 = vsel %vm4556, %v4551, %v4447
        %v4561 = vsel %vm4556, %v4552, %v4448
        %v4562 = vsel %vm4556, %v4553, %v4449
        %v4563 = vsel %vm4556, %v4554, %v4450
        %v4564 = vsel %vm4556, %v4555, %v4451
        %vm4565 = vcmask 1042432
        %v4566 = vsel %vm4565, %v4557, %v4460
        %v4567 = vsel %vm4565, %v4558, %v4461
        %v4568 = vsel %vm4565, %v4559, %v4462
        %v4569 = vsel %vm4565, %v4560, %v4463
        %v4570 = vsel %vm4565, %v4561, %v4464
        %v4571 = vsel %vm4565, %v4562, %v4465
        %v4572 = vsel %vm4565, %v4563, %v4466
        %v4573 = vsel %vm4565, %v4564, %v4467
        %v4574 = vsel %vm666, %v4566, %v4484
        %v4575 = vsel %vm666, %v4567, %v4485
        %v4576 = vsel %vm666, %v4568, %v4486
        %v4577 = vsel %vm666, %v4569, %v4487
        %v4578 = vsel %vm666, %v4570, %v4488
        %v4579 = vsel %vm666, %v4571, %v4489
        %v4580 = vsel %vm666, %v4572, %v4490
        %v4581 = vsel %vm666, %v4573, %v4491
        %vm4582 = vcmask 1044480
        %v4583 = vsel %vm4582, %v4574, %v4500
        %v4584 = vsel %vm4582, %v4575, %v4501
        %v4585 = vsel %vm4582, %v4576, %v4502
        %v4586 = vsel %vm4582, %v4577, %v4503
        %v4587 = vsel %vm4582, %v4578, %v4504
        %v4588 = vsel %vm4582, %v4579, %v4505
        %v4589 = vsel %vm4582, %v4580, %v4506
        %v4590 = vsel %vm4582, %v4581, %v4507
        %v4591 = vsel %vm959, %v4583, %v4516
        %v4592 = vsel %vm959, %v4584, %v4517
        %v4593 = vsel %vm959, %v4585, %v4518
        %v4594 = vsel %vm959, %v4586, %v4519
        %v4595 = vsel %vm959, %v4587, %v4520
        %v4596 = vsel %vm959, %v4588, %v4521
        %v4597 = vsel %vm959, %v4589, %v4522
        %v4598 = vsel %vm959, %v4590, %v4523
        %v4599 = vsel %vm523, %v4591, %v4532
        %v4600 = vsel %vm523, %v4592, %v4533
        %v4601 = vsel %vm523, %v4593, %v4534
        %v4602 = vsel %vm523, %v4594, %v4535
        %v4603 = vsel %vm523, %v4595, %v4536
        %v4604 = vsel %vm523, %v4596, %v4537
        %v4605 = vsel %vm523, %v4597, %v4538
        %v4606 = vsel %vm523, %v4598, %v4539
        %v4615 = vrot.slane %v277, 1
        %v4616 = vrot.slane %v281, 1
        %v4617 = vrot.slane %v285, 1
        %v4618 = vrot.slane %v289, 1
        %v4619 = vrot.slane %v293, 1
        %v4620 = vrot.slane %v297, 1
        %v4621 = vrot.slane %v301, 1
        %v4622 = vrot.slane %v305, 1
        %v4631 = vrot.slane %v277, 2
        %v4632 = vrot.slane %v281, 2
        %v4633 = vrot.slane %v285, 2
        %v4634 = vrot.slane %v289, 2
        %v4635 = vrot.slane %v293, 2
        %v4636 = vrot.slane %v297, 2
        %v4637 = vrot.slane %v301, 2
        %v4638 = vrot.slane %v305, 2
        %v4647 = vrot.slane %v277, 3
        %v4648 = vrot.slane %v281, 3
        %v4649 = vrot.slane %v285, 3
        %v4650 = vrot.slane %v289, 3
        %v4651 = vrot.slane %v293, 3
        %v4652 = vrot.slane %v297, 3
        %v4653 = vrot.slane %v301, 3
        %v4654 = vrot.slane %v305, 3
        %v4671 = vrot.slane %v278, 4
        %v4672 = vrot.slane %v282, 4
        %v4673 = vrot.slane %v286, 4
        %v4674 = vrot.slane %v290, 4
        %v4675 = vrot.slane %v294, 4
        %v4676 = vrot.slane %v298, 4
        %v4677 = vrot.slane %v302, 4
        %v4678 = vrot.slane %v306, 4
        %v4687 = vrot.slane %v278, 5
        %v4688 = vrot.slane %v282, 5
        %v4689 = vrot.slane %v286, 5
        %v4690 = vrot.slane %v290, 5
        %v4691 = vrot.slane %v294, 5
        %v4692 = vrot.slane %v298, 5
        %v4693 = vrot.slane %v302, 5
        %v4694 = vrot.slane %v306, 5
        %v4703 = vrot.slane %v278, 6
        %v4704 = vrot.slane %v282, 6
        %v4705 = vrot.slane %v286, 6
        %v4706 = vrot.slane %v290, 6
        %v4707 = vrot.slane %v294, 6
        %v4708 = vrot.slane %v298, 6
        %v4709 = vrot.slane %v302, 6
        %v4710 = vrot.slane %v306, 6
        %v4719 = vrot.slane %v278, 7
        %v4720 = vrot.slane %v282, 7
        %v4721 = vrot.slane %v286, 7
        %v4722 = vrot.slane %v290, 7
        %v4723 = vrot.slane %v294, 7
        %v4724 = vrot.slane %v298, 7
        %v4725 = vrot.slane %v302, 7
        %v4726 = vrot.slane %v306, 7
        %v4735 = vsel %vm374, %v277, %v4615
        %v4736 = vsel %vm374, %v281, %v4616
        %v4737 = vsel %vm374, %v285, %v4617
        %v4738 = vsel %vm374, %v289, %v4618
        %v4739 = vsel %vm374, %v293, %v4619
        %v4740 = vsel %vm374, %v297, %v4620
        %v4741 = vsel %vm374, %v301, %v4621
        %v4742 = vsel %vm374, %v305, %v4622
        %v4743 = vsel %vm4556, %v4735, %v4631
        %v4744 = vsel %vm4556, %v4736, %v4632
        %v4745 = vsel %vm4556, %v4737, %v4633
        %v4746 = vsel %vm4556, %v4738, %v4634
        %v4747 = vsel %vm4556, %v4739, %v4635
        %v4748 = vsel %vm4556, %v4740, %v4636
        %v4749 = vsel %vm4556, %v4741, %v4637
        %v4750 = vsel %vm4556, %v4742, %v4638
        %v4751 = vsel %vm4565, %v4743, %v4647
        %v4752 = vsel %vm4565, %v4744, %v4648
        %v4753 = vsel %vm4565, %v4745, %v4649
        %v4754 = vsel %vm4565, %v4746, %v4650
        %v4755 = vsel %vm4565, %v4747, %v4651
        %v4756 = vsel %vm4565, %v4748, %v4652
        %v4757 = vsel %vm4565, %v4749, %v4653
        %v4758 = vsel %vm4565, %v4750, %v4654
        %v4759 = vsel %vm666, %v4751, %v4671
        %v4760 = vsel %vm666, %v4752, %v4672
        %v4761 = vsel %vm666, %v4753, %v4673
        %v4762 = vsel %vm666, %v4754, %v4674
        %v4763 = vsel %vm666, %v4755, %v4675
        %v4764 = vsel %vm666, %v4756, %v4676
        %v4765 = vsel %vm666, %v4757, %v4677
        %v4766 = vsel %vm666, %v4758, %v4678
        %v4767 = vsel %vm4582, %v4759, %v4687
        %v4768 = vsel %vm4582, %v4760, %v4688
        %v4769 = vsel %vm4582, %v4761, %v4689
        %v4770 = vsel %vm4582, %v4762, %v4690
        %v4771 = vsel %vm4582, %v4763, %v4691
        %v4772 = vsel %vm4582, %v4764, %v4692
        %v4773 = vsel %vm4582, %v4765, %v4693
        %v4774 = vsel %vm4582, %v4766, %v4694
        %v4775 = vsel %vm959, %v4767, %v4703
        %v4776 = vsel %vm959, %v4768, %v4704
        %v4777 = vsel %vm959, %v4769, %v4705
        %v4778 = vsel %vm959, %v4770, %v4706
        %v4779 = vsel %vm959, %v4771, %v4707
        %v4780 = vsel %vm959, %v4772, %v4708
        %v4781 = vsel %vm959, %v4773, %v4709
        %v4782 = vsel %vm959, %v4774, %v4710
        %v4783 = vsel %vm523, %v4775, %v4719
        %v4784 = vsel %vm523, %v4776, %v4720
        %v4785 = vsel %vm523, %v4777, %v4721
        %v4786 = vsel %vm523, %v4778, %v4722
        %v4787 = vsel %vm523, %v4779, %v4723
        %v4788 = vsel %vm523, %v4780, %v4724
        %v4789 = vsel %vm523, %v4781, %v4725
        %v4790 = vsel %vm523, %v4782, %v4726
        %v4791 = vld [vmem:[%s5] sm:$0xf]
        %v4792 = vld [vmem:[%s6] sm:$0x1]
        %v4794 = vperm.slane %v4792, 0
        %v4797 = vsel %vm603, %v4783, 0
        %v4800 = vsel %vm603, %v4784, 0
        %v4803 = vsel %vm603, %v4785, 0
        %v4806 = vsel %vm603, %v4786, 0
        %v4809 = vsel %vm603, %v4787, 0
        %v4812 = vsel %vm603, %v4788, 0
        %v4815 = vsel %vm603, %v4789, 0
        %v4818 = vsel %vm603, %v4790, 0
        %v4821 = vsel %vm666, %v4791, 0
        %4823 = vmatpush.msra.mxu0 0.0
        %4824 = vmatpush.msra.mxu0 0.0
        %4825 = vmatpush.msra.mxu0 0.0
        %4826 = vmatpush.msra.mxu0 0.0
        %4827 = vmatpush.msra.mxu0 0.0
        %4828 = vmatpush.msra.mxu0 0.0
        %4829 = vmatpush.msra.mxu0 0.0
        %4830 = vmatpush.msra.mxu0 0.0
        %4831 = vmatpush.msra.mxu0 0.0
        %4832 = vmatpush.msra.mxu0 0.0
        %4833 = vmatpush.msra.mxu0 0.0
        %4834 = vmatpush.msra.mxu0 0.0
        %4835 = vmatpush.msra.mxu0 0.0
        %4836 = vmatpush.msra.mxu0 0.0
        %4837 = vmatpush.msra.mxu0 0.0
        %4838 = vmatpush.msra.mxu0 %v4821
        %4839 = vmatmul.f32.gmra.mxu0 %v4797
        %v4840 = vpop.f32.mrf.mxu0
        %v4841 = vadd.f32 %v4794, %v4840
        %4842 = vmatmul.f32.gmra.mxu0 %v4800
        %v4843 = vpop.f32.mrf.mxu0
        %v4844 = vadd.f32 %v4794, %v4843
        %4845 = vmatmul.f32.gmra.mxu0 %v4803
        %v4846 = vpop.f32.mrf.mxu0
        %v4847 = vadd.f32 %v4794, %v4846
        %4848 = vmatmul.f32.gmra.mxu0 %v4806
        %v4849 = vpop.f32.mrf.mxu0
        %v4850 = vadd.f32 %v4794, %v4849
        %4851 = vmatmul.f32.gmra.mxu0 %v4809
        %v4852 = vpop.f32.mrf.mxu0
        %v4853 = vadd.f32 %v4794, %v4852
        %4854 = vmatmul.f32.gmra.mxu0 %v4812
        %v4855 = vpop.f32.mrf.mxu0
        %v4856 = vadd.f32 %v4794, %v4855
        %4857 = vmatmul.f32.gmra.mxu0 %v4815
        %v4858 = vpop.f32.mrf.mxu0
        %v4859 = vadd.f32 %v4794, %v4858
        %4860 = vmatmul.f32.gmra.mxu0 %v4818
        %v4861 = vpop.f32.mrf.mxu0
        %v4862 = vadd.f32 %v4794, %v4861
        %4863 = vdwg.mxu0
        %v4864 = vadd.f32 %v4599, %v4841
        %v4865 = vadd.f32 %v4600, %v4844
        %v4866 = vadd.f32 %v4601, %v4847
        %v4867 = vadd.f32 %v4602, %v4850
        %v4868 = vadd.f32 %v4603, %v4853
        %v4869 = vadd.f32 %v4604, %v4856
        %v4870 = vadd.f32 %v4605, %v4859
        %v4871 = vadd.f32 %v4606, %v4862
        %4872 = vst.msk [vmem:[%s271] sm:$0xff] %vm2485, %v4864
        %4873 = vst.msk [vmem:[%s271 + $0x8] sm:$0xff] %vm2485, %v4865
        %4874 = vst.msk [vmem:[%s271 + $0x10] sm:$0xff] %vm2485, %v4866
        %4875 = vst.msk [vmem:[%s271 + $0x18] sm:$0xff] %vm2485, %v4867
        %4876 = vst.msk [vmem:[%s271 + $0x20] sm:$0xff] %vm2485, %v4868
        %4877 = vst.msk [vmem:[%s271 + $0x28] sm:$0xff] %vm2485, %v4869
        %4878 = vst.msk [vmem:[%s271 + $0x30] sm:$0xff] %vm2485, %v4870
        %4879 = vst.msk [vmem:[%s271 + $0x38] sm:$0xff] %vm2485, %v4871
        %s4880 = sand.u32 %s181, 1
        %s4881 = scalar_lea.sflag [#allocation3], %s4880
        %s4882 = sand.u32 %s181, 1
        %s4883 = smul.addr %s4882, 64
        %s4884 = scalar_lea.vmem [#allocation2], %s4883
        // Predicated region
        $region49: #{tpu_custom_call.1} parent=47 // pred_check
          %p4885 = pneg %p191
        $region50: #{tpu_custom_call.1} parent=47 // pred_check_branch
          %4887 = sbr.rel (%p4885) target = $region52
        $region51: #{tpu_custom_call.1} parent=47 // pred_region
          %4889 = vsyncadd %s4881, 0
          %s4890 = smul.addr %s21, 8
          %s4891 = smul.addr %s4890, 8
          %s4892 = scalar_lea.hbm %s7, %s4891
          %s4893 = sshll.u32 %s4884, 4
          %s4894 = int_to_ptr.vmem [resolvable:$true] %s4893
          %s4895 = sshll.u32 %s4892, 4
          %s4896 = int_to_ptr.hbm [resolvable:$true] %s4895
          %4901 = dma.vmem_to_hbm [thread:$0]  %s4894, 1024, %s4896, %s4881, 128, 128, 8
        $region52: #{tpu_custom_call.1} parent=47 // pred_fallthru
          _
      $region48: #{tpu_custom_call.1} parent=5 // pred_fallthru
        _
      %p4902 = scmp.le.s32.totalorder 2, %s16
      // Predicated region
      $region53: #{tpu_custom_call.1} parent=5 // pred_check
        %p4903 = pneg %p4902
      $region54: #{tpu_custom_call.1} parent=5 // pred_check_branch
        %4905 = sbr.rel (%p4903) target = $region56
      $region55: #{tpu_custom_call.1} parent=5 // pred_region
        %s4906 = ssub.s32 %s16, 2
        // Predicated region
        $region57: #{tpu_custom_call.1} parent=55 // pred_check
          %p4907 = pneg %p197
        $region58: #{tpu_custom_call.1} parent=55 // pred_check_branch
          %4909 = sbr.rel (%p4907) target = $region60
        $region59: #{tpu_custom_call.1} parent=55 // pred_region
          %s4910 = sand.u32 %s182, 1
          %s4911 = scalar_lea.sflag [#allocation3], %s4910
          %s4912 = sand.u32 %s182, 1
          %s4913 = smul.addr %s4912, 64
          %s4914 = scalar_lea.vmem [#allocation2], %s4913
          %4916 = dma.done %s4911, 1024
        $region60: #{tpu_custom_call.1} parent=55 // pred_fallthru
          _
      $region56: #{tpu_custom_call.1} parent=5 // pred_fallthru
        _
    $region6: #{tpu_custom_call.1} parent=1 // loop_footer
      %s20 = sadd.s32 1, %s16
    $region7: #{tpu_custom_call.1} parent=1 // loop_footer_branch
      %15 = sbr.rel target = $region3
    $region8: #{tpu_custom_call.1} parent=1 // loop_exit
      _
    %4917 = vsyncpa [#allocation3], 1
    %s4918 = scalar_lea.sflag [#allocation3], 1
    %4919 = vsyncpa %s4918, 1

</llo_original>
